<compile_context>
chip_gen: v7x
topology: tpu7x:2x2x1
jax: 0.10.0
libtpu: 0.0.40
codegen_flags: <defaults>
</compile_context>

<pallas_src>
import functools

import jax
import jax.numpy as jnp
from jax.experimental import pallas as pl
from jax.experimental.pallas import tpu as pltpu


def _round_up(x, m):
    return (x + m - 1) // m * m


def _pad2d(a, mp, np_):
    m, n = a.shape
    if m == mp and n == np_:
        return a
    return jnp.pad(a, ((0, mp - m), (0, np_ - n)))


# ----------------- tiled matmul with fused bias/act/residual -----------------

def _matmul_kernel(x_ref, w_ref, b_ref, *rest, activation, has_residual):
    if has_residual:
        r_ref, o_ref, acc_ref = rest
    else:
        r_ref = None
        o_ref, acc_ref = rest

    @pl.when(pl.program_id(2) == 0)
    def _():
        acc_ref[...] = jnp.zeros_like(acc_ref)

    # Feed native-dtype tiles straight to the MXU; accumulate in f32.
    acc_ref[...] += jnp.dot(x_ref[...], w_ref[...],
                            preferred_element_type=jnp.float32)

    @pl.when(pl.program_id(2) == pl.num_programs(2) - 1)
    def _():
        y = acc_ref[...] + b_ref[...].astype(jnp.float32)
        if activation == "quick_gelu":      # x * sigmoid(1.702 * x)
            y = y * jax.nn.sigmoid(1.702 * y)
        elif activation == "relu":
            y = jnp.maximum(y, 0.0)
        if has_residual:
            y = y + r_ref[...].astype(jnp.float32)
        o_ref[...] = y.astype(o_ref.dtype)


def _pick_tm(m):
    if m < 256:
        return _round_up(m, 8)
    for tm in (256, 128, 64, 32, 16, 8):
        if m % tm == 0:
            return tm
    return 256


def _pick_tn(n):
    if n >= 256 and n % 256 == 0:
        return 256          # fills the 256-wide MXU on v6e/v7x
    return 128


def _pick_tk(k):
    if k <= 512:
        return _round_up(k, 128)
    for tk in (512, 448, 384, 320, 256, 192, 128):
        if k % tk == 0:
            return tk
    return 512


def matmul(x, w, b=None, activation=None, residual=None):
    """act(x @ w + b) [+ residual].  x:(M,K), w:(K,N), residual:(M,N)."""
    M, K = x.shape
    N = w.shape[1]
    tm, tn, tk = _pick_tm(M), _pick_tn(N), _pick_tk(K)
    Mp, Np, Kp = _round_up(M, tm), _round_up(N, tn), _round_up(K, tk)

    xp = _pad2d(x, Mp, Kp)
    wp = _pad2d(w, Kp, Np)
    if b is None:
        b = jnp.zeros((N,), x.dtype)
    bp = _pad2d(b.reshape(1, N).astype(x.dtype), 1, Np)

    in_specs = [
        pl.BlockSpec((tm, tk), lambda i, j, k: (i, k)),
        pl.BlockSpec((tk, tn), lambda i, j, k: (k, j)),
        pl.BlockSpec((1, tn), lambda i, j, k: (0, j)),
    ]
    operands = [xp, wp, bp]
    if residual is not None:
        in_specs.append(pl.BlockSpec((tm, tn), lambda i, j, k: (i, j)))
        operands.append(_pad2d(residual, Mp, Np))

    out = pl.pallas_call(
        functools.partial(_matmul_kernel, activation=activation,
                          has_residual=residual is not None),
        out_shape=jax.ShapeDtypeStruct((Mp, Np), x.dtype),
        grid=(Mp // tm, Np // tn, Kp // tk),
        in_specs=in_specs,
        out_specs=pl.BlockSpec((tm, tn), lambda i, j, k: (i, j)),
        scratch_shapes=[pltpu.VMEM((tm, tn), jnp.float32)],
        compiler_params=pltpu.CompilerParams(
            dimension_semantics=("parallel", "parallel", "arbitrary")),
    )(*operands)
    return out[:M, :N]


# --------------------------------- layernorm ---------------------------------

def _layernorm_kernel(x_ref, g_ref, b_ref, o_ref):
    x = x_ref[...].astype(jnp.float32)
    mean = jnp.mean(x, axis=-1, keepdims=True)
    var = jnp.mean(jnp.square(x - mean), axis=-1, keepdims=True)
    y = (x - mean) * jax.lax.rsqrt(var + 1e-5)
    y = y * g_ref[...].astype(jnp.float32) + b_ref[...].astype(jnp.float32)
    o_ref[...] = y.astype(o_ref.dtype)


def layer_norm_2d(x2d, gamma, beta):
    M, W = x2d.shape
    tm = 256 if M >= 256 else _round_up(M, 8)
    Mp = _round_up(M, tm)
    xp = _pad2d(x2d, Mp, W)
    out = pl.pallas_call(
        _layernorm_kernel,
        out_shape=jax.ShapeDtypeStruct((Mp, W), x2d.dtype),
        grid=(Mp // tm,),
        in_specs=[pl.BlockSpec((tm, W), lambda i: (i, 0)),
                  pl.BlockSpec((1, W), lambda i: (0, 0)),
                  pl.BlockSpec((1, W), lambda i: (0, 0))],
        out_specs=pl.BlockSpec((tm, W), lambda i: (i, 0)),
        compiler_params=pltpu.CompilerParams(dimension_semantics=("parallel",)),
    )(xp, gamma.reshape(1, W).astype(x2d.dtype),
      beta.reshape(1, W).astype(x2d.dtype))
    return out[:M]


def layer_norm_3d(x, gamma, beta):
    B, S, W = x.shape
    return layer_norm_2d(x.reshape(B * S, W), gamma, beta).reshape(B, S, W)


# ------------------------ positional / type embeddings -----------------------

def _add_embed_kernel(x_ref, pos_ref, typ_ref, o_ref):
    # x:(1,S,W)  pos:(S,W)  typ:(1,W)  -> broadcast add in-kernel (no HBM bcast)
    o_ref[...] = x_ref[...] + pos_ref[...] + typ_ref[...]


def add_embeddings(x, pos, typ):
    B, S, W = x.shape
    return pl.pallas_call(
        _add_embed_kernel,
        out_shape=jax.ShapeDtypeStruct((B, S, W), x.dtype),
        grid=(B,),
        in_specs=[pl.BlockSpec((1, S, W), lambda b: (b, 0, 0)),
                  pl.BlockSpec((S, W), lambda b: (0, 0)),
                  pl.BlockSpec((1, W), lambda b: (0, 0))],
        out_specs=pl.BlockSpec((1, S, W), lambda b: (b, 0, 0)),
        compiler_params=pltpu.CompilerParams(dimension_semantics=("parallel",)),
    )(x, pos.astype(x.dtype), typ.reshape(1, W).astype(x.dtype))


# ---------------------------------- attention ---------------------------------

def _attn_kernel(q_ref, k_ref, v_ref, o_ref, *, num_heads, scale):
    Gw = q_ref.shape[2]
    Dh = Gw // num_heads
    q = q_ref[0].astype(jnp.float32)
    k = k_ref[0].astype(jnp.float32)
    v = v_ref[0].astype(jnp.float32)
    outs = []
    for h in range(num_heads):            # static unroll over heads in group
        sl = slice(h * Dh, (h + 1) * Dh)
        qh = q[:, sl] * scale
        kh = k[:, sl]
        vh = v[:, sl]
        s = jnp.dot(qh, kh.T, preferred_element_type=jnp.float32)   # (S,S)
        s = s - jnp.max(s, axis=-1, keepdims=True)
        p = jnp.exp(s)
        p = p * pl.reciprocal(jnp.sum(p, axis=-1, keepdims=True), approx=True)
        outs.append(jnp.dot(p, vh, preferred_element_type=jnp.float32))
    o = outs[0] if num_heads == 1 else jnp.concatenate(outs, axis=-1)
    o_ref[0] = o.astype(o_ref.dtype)      # single lane-dense store


def multi_head_self_attention(qkv, heads):
    """qkv: (B, S, 3W) with [q|k|v] concatenated on the last dim -> (B, S, W)."""
    B, S, W3 = qkv.shape
    W = W3 // 3
    Dh = W // heads
    scale = Dh ** -0.5

    # Smallest head-group whose width is a multiple of 128 lanes.
    group_heads = None
    for hg in range(1, heads + 1):
        if heads % hg == 0 and (hg * Dh) % 128 == 0:
            group_heads = hg
            break

    if group_heads is not None:
        Gw = group_heads * Dh
        ng = W // Gw
        q_spec = pl.BlockSpec((1, S, Gw), lambda b, g: (b, 0, g))
        k_spec = pl.BlockSpec((1, S, Gw), lambda b, g: (b, 0, ng + g))
        v_spec = pl.BlockSpec((1, S, Gw), lambda b, g: (b, 0, 2 * ng + g))
        return pl.pallas_call(
            functools.partial(_attn_kernel, num_heads=group_heads, scale=scale),
            out_shape=jax.ShapeDtypeStruct((B, S, W), qkv.dtype),
            grid=(B, ng),
            in_specs=[q_spec, k_spec, v_spec],
            out_specs=pl.BlockSpec((1, S, Gw), lambda b, g: (b, 0, g)),
            compiler_params=pltpu.CompilerParams(
                dimension_semantics=("parallel", "parallel")),
        )(qkv, qkv, qkv)

    # Small-width fallback (head-group can't reach 128 lanes, e.g. the toy
    # config): split q/k/v once in XLA and run all heads in one program/batch.
    q = qkv[:, :, :W]
    k = qkv[:, :, W:2 * W]
    v = qkv[:, :, 2 * W:]
    spec = pl.BlockSpec((1, S, W), lambda b: (b, 0, 0))
    return pl.pallas_call(
        functools.partial(_attn_kernel, num_heads=heads, scale=scale),
        out_shape=jax.ShapeDtypeStruct((B, S, W), qkv.dtype),
        grid=(B,),
        in_specs=[spec, spec, spec],
        out_specs=spec,
        compiler_params=pltpu.CompilerParams(dimension_semantics=("parallel",)),
    )(q, k, v)


# --------------------------- model forward (img) -----------------------------

def img_patch_embed(x, p, patch_size):
    # Conv2d(3, width, k=patch, stride=patch, bias=False) == patchify + matmul.
    B, C, H, Wd = x.shape
    hp, wp = H // patch_size, Wd // patch_size
    width = p["conv_w"].shape[0]
    patches = (
        x.reshape(B, C, hp, patch_size, wp, patch_size)
        .transpose(0, 2, 4, 1, 3, 5)
        .reshape(B * hp * wp, C * patch_size * patch_size)
    )
    w_flat = p["conv_w"].reshape(width, C * patch_size * patch_size).T
    tok = matmul(patches, w_flat).reshape(B, hp * wp, width)
    cls = jnp.broadcast_to(p["cls"].reshape(1, 1, width), (B, 1, width)).astype(tok.dtype)
    x = jnp.concatenate([cls, tok], axis=1)                 # (B, N+1, width)
    return add_embeddings(x, p["pos"], p["typ"])


def residual_block_img(x, p, heads):
    B, S, W = x.shape
    x2d = x.reshape(B * S, W)

    ln1 = layer_norm_3d(x, p["ln1_g"], p["ln1_b"])
    ln1_2d = ln1.reshape(B * S, W)

    # img_adapter_att: down_proj -> ReLU -> up_proj, residual (x) fused into
    # the up-projection epilogue.  (drop_path is Identity.)
    h = matmul(ln1_2d, p["ad_down_w"], p["ad_down_b"], activation="relu")
    x_plus_ad = matmul(h, p["ad_up_w"], p["ad_up_b"], residual=x2d)

    # Self-attention; residual (x + adapter) fused into the output projection.
    qkv = matmul(ln1_2d, p["attn"]["in_w"], p["attn"]["in_b"]).reshape(B, S, 3 * W)
    ctx = multi_head_self_attention(qkv, heads)             # (B, S, W)
    x = matmul(ctx.reshape(B * S, W), p["attn"]["out_w"], p["attn"]["out_b"],
               residual=x_plus_ad).reshape(B, S, W)

    # img_mlp: c_fc -> QuickGELU -> c_proj, residual fused into c_proj.
    ln2 = layer_norm_3d(x, p["ln2_g"], p["ln2_b"])
    h = matmul(ln2.reshape(B * S, W), p["fc_w"], p["fc_b"], activation="quick_gelu")
    x = matmul(h, p["proj_w"], p["proj_b"],
               residual=x.reshape(B * S, W)).reshape(B, S, W)
    return x


def encode_img(x, params, *, patch_size, heads):
    x = img_patch_embed(x, params["patch_emb"], patch_size)
    x = layer_norm_3d(x, params["ln_pre_g"], params["ln_pre_b"])
    for blk in params["blocks"]:
        x = residual_block_img(x, blk, heads)
    cls = x[:, 0, :]                                        # (B, width)
    cls = layer_norm_2d(cls, params["ln_post_g"], params["ln_post_b"])
    return matmul(cls, params["img_proj"])                  # (B, output_dim)


def multiway_transformer_forward(x, params, *, patch_size, heads, modality_type="img"):
    if modality_type == "img":
        return encode_img(x, params, patch_size=patch_size, heads=heads)
    raise Exception("Wrong modality type")  # TODO(synk): 'pcd' path not implemented.


# ------------------------------- init params ---------------------------------

def init_params(key, *, width, patch_size, resolution, heads, layers, output_dim,
                img_adapter_att_dim):
    keys = iter(jax.random.split(key, 64 + 32 * layers))

    def nrm(shape, std):
        return (std * jax.random.normal(next(keys), shape)).astype(jnp.float32)

    scale = width ** (-0.5)
    n_patches = (resolution // patch_size) ** 2
    ones = lambda n: jnp.ones((n,), jnp.float32)
    zeros = lambda n: jnp.zeros((n,), jnp.float32)

    params = {
        "patch_emb": {
            "conv_w": nrm((width, 3, patch_size, patch_size), 0.02),
            "cls": nrm((width,), scale),
            "pos": nrm((n_patches + 1, width), scale),
            "typ": nrm((width,), scale),
        },
        "ln_pre_g": ones(width), "ln_pre_b": zeros(width),
        "ln_post_g": ones(width), "ln_post_b": zeros(width),
        "img_proj": nrm((width, output_dim), scale),
        "blocks": [],
    }
    for _ in range(layers):
        params["blocks"].append({
            "ln1_g": ones(width), "ln1_b": zeros(width),
            "attn": {
                "in_w": nrm((width, 3 * width), 0.02), "in_b": zeros(3 * width),
                "out_w": nrm((width, width), 0.02), "out_b": zeros(width),
            },
            "ad_down_w": nrm((width, img_adapter_att_dim), 0.02),
            "ad_down_b": zeros(img_adapter_att_dim),
            "ad_up_w": nrm((img_adapter_att_dim, width), 0.02),
            "ad_up_b": zeros(width),
            "ln2_g": ones(width), "ln2_b": zeros(width),
            "fc_w": nrm((width, 4 * width), 0.02), "fc_b": zeros(4 * width),
            "proj_w": nrm((4 * width, width), 0.02), "proj_b": zeros(width),
        })
    return params


# ----------------------------------- main -------------------------------------

if __name__ == "__main__":
    B = 2
    RESOLUTION = 16
    PATCH = 8
    WIDTH = 32
    HEADS = 4
    LAYERS = 2
    OUTPUT_DIM = 16
    IMG_ADAPTER_ATT_DIM = 8

    key = jax.random.PRNGKey(0)
    k_x, k_p = jax.random.split(key)
    x = jax.random.normal(k_x, (B, 3, RESOLUTION, RESOLUTION), dtype=jnp.float32)
    params = init_params(
        k_p, width=WIDTH, patch_size=PATCH, resolution=RESOLUTION, heads=HEADS,
        layers=LAYERS, output_dim=OUTPUT_DIM, img_adapter_att_dim=IMG_ADAPTER_ATT_DIM,
    )

    fwd = jax.jit(functools.partial(
        multiway_transformer_forward, patch_size=PATCH, heads=HEADS, modality_type="img"))
    out = fwd(x, params)
    jax.block_until_ready(out)
    assert out.shape == (B, OUTPUT_DIM), out.shape
    print("KERNEL_OK")
</pallas_src>

<mosaic_0001>
module attributes {stable_mosaic.version = 11 : i64} {
  func.func @_add_embed_kernel(%arg0: i32, %arg1: memref<1x5x32xf32, #tpu.memory_space<vmem>>, %arg2: memref<5x32xf32, #tpu.memory_space<vmem>>, %arg3: memref<1x32xf32, #tpu.memory_space<vmem>>, %arg4: memref<1x5x32xf32, #tpu.memory_space<vmem>>) attributes {dimension_semantics = [#tpu.dimension_semantics<parallel>], iteration_bounds = array<i64: 2>, scalar_prefetch = 0 : i64, scratch_operands = 0 : i64, tpu.core_type = #tpu.core_type<tc>, window_params = [{transform_indices = @transform_0, window_bounds = array<i64: 1, 5, 32>}, {pipeline_mode = #tpu.pipeline_mode<synchronous>, transform_indices = @transform_1, window_bounds = array<i64: 5, 32>}, {pipeline_mode = #tpu.pipeline_mode<synchronous>, transform_indices = @transform_2, window_bounds = array<i64: 1, 32>}, {transform_indices = @transform_3, window_bounds = array<i64: 1, 5, 32>}]} {
    %c0 = arith.constant 0 : index
    %c0_0 = arith.constant 0 : index
    %c0_1 = arith.constant 0 : index
    %0 = vector.load %arg1[%c0, %c0_0, %c0_1] : memref<1x5x32xf32, #tpu.memory_space<vmem>>, vector<1x5x32xf32>
    %c0_2 = arith.constant 0 : index
    %c0_3 = arith.constant 0 : index
    %1 = vector.load %arg2[%c0_2, %c0_3] : memref<5x32xf32, #tpu.memory_space<vmem>>, vector<5x32xf32>
    %2 = vector.shape_cast %1 : vector<5x32xf32> to vector<1x5x32xf32>
    %3 = arith.addf %0, %2 : vector<1x5x32xf32>
    %c0_4 = arith.constant 0 : index
    %c0_5 = arith.constant 0 : index
    %4 = vector.load %arg3[%c0_4, %c0_5] : memref<1x32xf32, #tpu.memory_space<vmem>>, vector<1x32xf32>
    %5 = vector.shape_cast %4 : vector<1x32xf32> to vector<1x1x32xf32>
    %6 = vector.broadcast %5 : vector<1x1x32xf32> to vector<1x5x32xf32>
    %7 = arith.addf %3, %6 : vector<1x5x32xf32>
    %c0_6 = arith.constant 0 : index
    %c0_7 = arith.constant 0 : index
    %c0_8 = arith.constant 0 : index
    %8 = vector.load %arg4[%c0_6, %c0_7, %c0_8] : memref<1x5x32xf32, #tpu.memory_space<vmem>>, vector<1x5x32xf32>
    tpu.vector_store %arg4[%c0_6, %c0_7, %c0_8], %7 {strides = array<i32>} : memref<1x5x32xf32, #tpu.memory_space<vmem>>, vector<1x5x32xf32>,
    return
  }
  func.func @transform_0(%arg0: i32) -> (i32, i32, i32) {
    %c0_i32 = arith.constant 0 : i32
    %c0_i32_0 = arith.constant 0 : i32
    %c0_i32_1 = arith.constant 0 : i32
    return %arg0, %c0_i32, %c0_i32_0 : i32, i32, i32
  }
  func.func @transform_1(%arg0: i32) -> (i32, i32) {
    %c0_i32 = arith.constant 0 : i32
    %c0_i32_0 = arith.constant 0 : i32
    %c0_i32_1 = arith.constant 0 : i32
    return %c0_i32, %c0_i32_0 : i32, i32
  }
  func.func @transform_2(%arg0: i32) -> (i32, i32) {
    %c0_i32 = arith.constant 0 : i32
    %c0_i32_0 = arith.constant 0 : i32
    %c0_i32_1 = arith.constant 0 : i32
    return %c0_i32, %c0_i32_0 : i32, i32
  }
  func.func @transform_3(%arg0: i32) -> (i32, i32, i32) {
    %c0_i32 = arith.constant 0 : i32
    %c0_i32_0 = arith.constant 0 : i32
    %c0_i32_1 = arith.constant 0 : i32
    return %arg0, %c0_i32, %c0_i32_0 : i32, i32, i32
  }
}

module attributes {stable_mosaic.version = 11 : i64} {
  func.func @_matmul_kernel(%arg0: i32, %arg1: i32, %arg2: i32, %arg3: memref<8x256xf32, #tpu.memory_space<vmem>>, %arg4: memref<256x128xf32, #tpu.memory_space<vmem>>, %arg5: memref<1x128xf32, #tpu.memory_space<vmem>>, %arg6: memref<8x128xf32, #tpu.memory_space<vmem>>, %arg7: memref<8x128xf32, #tpu.memory_space<vmem>>) attributes {dimension_semantics = [#tpu.dimension_semantics<parallel>, #tpu.dimension_semantics<parallel>, #tpu.dimension_semantics<arbitrary>], iteration_bounds = array<i64: 1, 1, 1>, scalar_prefetch = 0 : i64, scratch_operands = 1 : i64, tpu.core_type = #tpu.core_type<tc>, window_params = [{transform_indices = @transform_0, window_bounds = array<i64: 8, 256>}, {transform_indices = @transform_1, window_bounds = array<i64: 256, 128>}, {transform_indices = @transform_2, window_bounds = array<i64: 1, 128>}, {transform_indices = @transform_3, window_bounds = array<i64: 8, 128>}]} {
    %c0_i32 = arith.constant 0 : i32
    %0 = arith.cmpi eq, %arg2, %c0_i32 : i32
    %1 = arith.extui %0 : i1 to i32
    %c0_i32_0 = arith.constant 0 : i32
    %2 = arith.cmpi ne, %1, %c0_i32_0 : i32
    scf.if %2 {
      %cst_10 = arith.constant 0.000000e+00 : f32
      %12 = vector.broadcast %cst_10 : f32 to vector<8x128xf32>
      %c0_11 = arith.constant 0 : index
      %c0_12 = arith.constant 0 : index
      %13 = vector.load %arg7[%c0_11, %c0_12] : memref<8x128xf32, #tpu.memory_space<vmem>>, vector<8x128xf32>
      tpu.vector_store %arg7[%c0_11, %c0_12], %12 {strides = array<i32>} : memref<8x128xf32, #tpu.memory_space<vmem>>, vector<8x128xf32>,
    } else {
    }
    %c0 = arith.constant 0 : index
    %c0_1 = arith.constant 0 : index
    %3 = vector.load %arg7[%c0, %c0_1] : memref<8x128xf32, #tpu.memory_space<vmem>>, vector<8x128xf32>
    %c0_2 = arith.constant 0 : index
    %c0_3 = arith.constant 0 : index
    %4 = vector.load %arg3[%c0_2, %c0_3] : memref<8x256xf32, #tpu.memory_space<vmem>>, vector<8x256xf32>
    %c0_4 = arith.constant 0 : index
    %c0_5 = arith.constant 0 : index
    %5 = vector.load %arg4[%c0_4, %c0_5] : memref<256x128xf32, #tpu.memory_space<vmem>>, vector<256x128xf32>
    %cst = arith.constant dense<0.000000e+00> : vector<8x128xf32>
    %6 = tpu.matmul %4, %5, %cst {dimension_numbers = #tpu.dot_dimension_numbers<[1], [0], [0], [1], [0, 0, 1, 1], [], []>} : vector<8x256xf32>, vector<256x128xf32>, vector<8x128xf32> -> vector<8x128xf32>
    %7 = arith.addf %3, %6 : vector<8x128xf32>
    %c0_6 = arith.constant 0 : index
    %c0_7 = arith.constant 0 : index
    %8 = vector.load %arg7[%c0_6, %c0_7] : memref<8x128xf32, #tpu.memory_space<vmem>>, vector<8x128xf32>
    tpu.vector_store %arg7[%c0_6, %c0_7], %7 {strides = array<i32>} : memref<8x128xf32, #tpu.memory_space<vmem>>, vector<8x128xf32>,
    %c0_i32_8 = arith.constant 0 : i32
    %9 = arith.cmpi eq, %arg2, %c0_i32_8 : i32
    %10 = arith.extui %9 : i1 to i32
    %c0_i32_9 = arith.constant 0 : i32
    %11 = arith.cmpi ne, %10, %c0_i32_9 : i32
    scf.if %11 {
      %c0_10 = arith.constant 0 : index
      %c0_11 = arith.constant 0 : index
      %12 = vector.load %arg7[%c0_10, %c0_11] : memref<8x128xf32, #tpu.memory_space<vmem>>, vector<8x128xf32>
      %c0_12 = arith.constant 0 : index
      %c0_13 = arith.constant 0 : index
      %13 = vector.load %arg5[%c0_12, %c0_13] : memref<1x128xf32, #tpu.memory_space<vmem>>, vector<1x128xf32>
      %14 = vector.broadcast %13 : vector<1x128xf32> to vector<8x128xf32>
      %15 = arith.addf %12, %14 : vector<8x128xf32>
      %c0_14 = arith.constant 0 : index
      %c0_15 = arith.constant 0 : index
      %16 = vector.load %arg6[%c0_14, %c0_15] : memref<8x128xf32, #tpu.memory_space<vmem>>, vector<8x128xf32>
      tpu.vector_store %arg6[%c0_14, %c0_15], %15 {strides = array<i32>} : memref<8x128xf32, #tpu.memory_space<vmem>>, vector<8x128xf32>,
    } else {
    }
    return
  }
  func.func @transform_0(%arg0: i32, %arg1: i32, %arg2: i32) -> (i32, i32) {
    %c0_i32 = arith.constant 0 : i32
    return %arg0, %arg2 : i32, i32
  }
  func.func @transform_1(%arg0: i32, %arg1: i32, %arg2: i32) -> (i32, i32) {
    %c0_i32 = arith.constant 0 : i32
    return %arg2, %arg1 : i32, i32
  }
  func.func @transform_2(%arg0: i32, %arg1: i32, %arg2: i32) -> (i32, i32) {
    %c0_i32 = arith.constant 0 : i32
    %c0_i32_0 = arith.constant 0 : i32
    return %c0_i32, %arg1 : i32, i32
  }
  func.func @transform_3(%arg0: i32, %arg1: i32, %arg2: i32) -> (i32, i32) {
    %c0_i32 = arith.constant 0 : i32
    return %arg0, %arg1 : i32, i32
  }
}

module attributes {stable_mosaic.version = 11 : i64} {
  func.func @_layernorm_kernel(%arg0: i32, %arg1: memref<16x32xf32, #tpu.memory_space<vmem>>, %arg2: memref<1x32xf32, #tpu.memory_space<vmem>>, %arg3: memref<1x32xf32, #tpu.memory_space<vmem>>, %arg4: memref<16x32xf32, #tpu.memory_space<vmem>>) attributes {dimension_semantics = [#tpu.dimension_semantics<parallel>], iteration_bounds = array<i64: 1>, scalar_prefetch = 0 : i64, scratch_operands = 0 : i64, tpu.core_type = #tpu.core_type<tc>, window_params = [{transform_indices = @transform_0, window_bounds = array<i64: 16, 32>}, {pipeline_mode = #tpu.pipeline_mode<synchronous>, transform_indices = @transform_1, window_bounds = array<i64: 1, 32>}, {pipeline_mode = #tpu.pipeline_mode<synchronous>, transform_indices = @transform_2, window_bounds = array<i64: 1, 32>}, {transform_indices = @transform_3, window_bounds = array<i64: 16, 32>}]} {
    %c0 = arith.constant 0 : index
    %c0_0 = arith.constant 0 : index
    %0 = vector.load %arg1[%c0, %c0_0] : memref<16x32xf32, #tpu.memory_space<vmem>>, vector<16x32xf32>
    %cst = arith.constant dense<0.000000e+00> : vector<16xf32>
    %1 = vector.multi_reduction <add>, %0, %cst [1] : vector<16x32xf32> to vector<16xf32>
    %2 = vector.shape_cast %1 : vector<16xf32> to vector<16x1xf32>
    %cst_1 = arith.constant 3.200000e+01 : f32
    %3 = vector.broadcast %cst_1 : f32 to vector<16x1xf32>
    %4 = arith.divf %2, %3 : vector<16x1xf32>
    %5 = vector.broadcast %4 : vector<16x1xf32> to vector<16x32xf32>
    %6 = arith.subf %0, %5 : vector<16x32xf32>
    %7 = arith.mulf %6, %6 : vector<16x32xf32>
    %cst_2 = arith.constant dense<0.000000e+00> : vector<16xf32>
    %8 = vector.multi_reduction <add>, %7, %cst_2 [1] : vector<16x32xf32> to vector<16xf32>
    %9 = vector.shape_cast %8 : vector<16xf32> to vector<16x1xf32>
    %cst_3 = arith.constant 3.200000e+01 : f32
    %10 = vector.broadcast %cst_3 : f32 to vector<16x1xf32>
    %11 = arith.divf %9, %10 : vector<16x1xf32>
    %12 = vector.broadcast %4 : vector<16x1xf32> to vector<16x32xf32>
    %13 = arith.subf %0, %12 : vector<16x32xf32>
    %cst_4 = arith.constant 9.99999974E-6 : f32
    %14 = vector.broadcast %cst_4 : f32 to vector<16x1xf32>
    %15 = arith.addf %11, %14 : vector<16x1xf32>
    %16 = math.rsqrt %15 : vector<16x1xf32>
    %17 = vector.broadcast %16 : vector<16x1xf32> to vector<16x32xf32>
    %18 = arith.mulf %13, %17 : vector<16x32xf32>
    %c0_5 = arith.constant 0 : index
    %c0_6 = arith.constant 0 : index
    %19 = vector.load %arg2[%c0_5, %c0_6] : memref<1x32xf32, #tpu.memory_space<vmem>>, vector<1x32xf32>
    %20 = vector.broadcast %19 : vector<1x32xf32> to vector<16x32xf32>
    %21 = arith.mulf %18, %20 : vector<16x32xf32>
    %c0_7 = arith.constant 0 : index
    %c0_8 = arith.constant 0 : index
    %22 = vector.load %arg3[%c0_7, %c0_8] : memref<1x32xf32, #tpu.memory_space<vmem>>, vector<1x32xf32>
    %23 = vector.broadcast %22 : vector<1x32xf32> to vector<16x32xf32>
    %24 = arith.addf %21, %23 : vector<16x32xf32>
    %c0_9 = arith.constant 0 : index
    %c0_10 = arith.constant 0 : index
    %25 = vector.load %arg4[%c0_9, %c0_10] : memref<16x32xf32, #tpu.memory_space<vmem>>, vector<16x32xf32>
    tpu.vector_store %arg4[%c0_9, %c0_10], %24 {strides = array<i32>} : memref<16x32xf32, #tpu.memory_space<vmem>>, vector<16x32xf32>,
    return
  }
  func.func @transform_0(%arg0: i32) -> (i32, i32) {
    %c0_i32 = arith.constant 0 : i32
    %c0_i32_0 = arith.constant 0 : i32
    return %arg0, %c0_i32 : i32, i32
  }
  func.func @transform_1(%arg0: i32) -> (i32, i32) {
    %c0_i32 = arith.constant 0 : i32
    %c0_i32_0 = arith.constant 0 : i32
    %c0_i32_1 = arith.constant 0 : i32
    return %c0_i32, %c0_i32_0 : i32, i32
  }
  func.func @transform_2(%arg0: i32) -> (i32, i32) {
    %c0_i32 = arith.constant 0 : i32
    %c0_i32_0 = arith.constant 0 : i32
    %c0_i32_1 = arith.constant 0 : i32
    return %c0_i32, %c0_i32_0 : i32, i32
  }
  func.func @transform_3(%arg0: i32) -> (i32, i32) {
    %c0_i32 = arith.constant 0 : i32
    %c0_i32_0 = arith.constant 0 : i32
    return %arg0, %c0_i32 : i32, i32
  }
}

module attributes {stable_mosaic.version = 11 : i64} {
  func.func @_matmul_kernel(%arg0: i32, %arg1: i32, %arg2: i32, %arg3: memref<16x128xf32, #tpu.memory_space<vmem>>, %arg4: memref<128x128xf32, #tpu.memory_space<vmem>>, %arg5: memref<1x128xf32, #tpu.memory_space<vmem>>, %arg6: memref<16x128xf32, #tpu.memory_space<vmem>>, %arg7: memref<16x128xf32, #tpu.memory_space<vmem>>) attributes {dimension_semantics = [#tpu.dimension_semantics<parallel>, #tpu.dimension_semantics<parallel>, #tpu.dimension_semantics<arbitrary>], iteration_bounds = array<i64: 1, 1, 1>, scalar_prefetch = 0 : i64, scratch_operands = 1 : i64, tpu.core_type = #tpu.core_type<tc>, window_params = [{transform_indices = @transform_0, window_bounds = array<i64: 16, 128>}, {transform_indices = @transform_1, window_bounds = array<i64: 128, 128>}, {transform_indices = @transform_2, window_bounds = array<i64: 1, 128>}, {transform_indices = @transform_3, window_bounds = array<i64: 16, 128>}]} {
    %c0_i32 = arith.constant 0 : i32
    %0 = arith.cmpi eq, %arg2, %c0_i32 : i32
    %1 = arith.extui %0 : i1 to i32
    %c0_i32_0 = arith.constant 0 : i32
    %2 = arith.cmpi ne, %1, %c0_i32_0 : i32
    scf.if %2 {
      %cst_10 = arith.constant 0.000000e+00 : f32
      %12 = vector.broadcast %cst_10 : f32 to vector<16x128xf32>
      %c0_11 = arith.constant 0 : index
      %c0_12 = arith.constant 0 : index
      %13 = vector.load %arg7[%c0_11, %c0_12] : memref<16x128xf32, #tpu.memory_space<vmem>>, vector<16x128xf32>
      tpu.vector_store %arg7[%c0_11, %c0_12], %12 {strides = array<i32>} : memref<16x128xf32, #tpu.memory_space<vmem>>, vector<16x128xf32>,
    } else {
    }
    %c0 = arith.constant 0 : index
    %c0_1 = arith.constant 0 : index
    %3 = vector.load %arg7[%c0, %c0_1] : memref<16x128xf32, #tpu.memory_space<vmem>>, vector<16x128xf32>
    %c0_2 = arith.constant 0 : index
    %c0_3 = arith.constant 0 : index
    %4 = vector.load %arg3[%c0_2, %c0_3] : memref<16x128xf32, #tpu.memory_space<vmem>>, vector<16x128xf32>
    %c0_4 = arith.constant 0 : index
    %c0_5 = arith.constant 0 : index
    %5 = vector.load %arg4[%c0_4, %c0_5] : memref<128x128xf32, #tpu.memory_space<vmem>>, vector<128x128xf32>
    %cst = arith.constant dense<0.000000e+00> : vector<16x128xf32>
    %6 = tpu.matmul %4, %5, %cst {dimension_numbers = #tpu.dot_dimension_numbers<[1], [0], [0], [1], [0, 0, 1, 1], [], []>} : vector<16x128xf32>, vector<128x128xf32>, vector<16x128xf32> -> vector<16x128xf32>
    %7 = arith.addf %3, %6 : vector<16x128xf32>
    %c0_6 = arith.constant 0 : index
    %c0_7 = arith.constant 0 : index
    %8 = vector.load %arg7[%c0_6, %c0_7] : memref<16x128xf32, #tpu.memory_space<vmem>>, vector<16x128xf32>
    tpu.vector_store %arg7[%c0_6, %c0_7], %7 {strides = array<i32>} : memref<16x128xf32, #tpu.memory_space<vmem>>, vector<16x128xf32>,
    %c0_i32_8 = arith.constant 0 : i32
    %9 = arith.cmpi eq, %arg2, %c0_i32_8 : i32
    %10 = arith.extui %9 : i1 to i32
    %c0_i32_9 = arith.constant 0 : i32
    %11 = arith.cmpi ne, %10, %c0_i32_9 : i32
    scf.if %11 {
      %c0_10 = arith.constant 0 : index
      %c0_11 = arith.constant 0 : index
      %12 = vector.load %arg7[%c0_10, %c0_11] : memref<16x128xf32, #tpu.memory_space<vmem>>, vector<16x128xf32>
      %c0_12 = arith.constant 0 : index
      %c0_13 = arith.constant 0 : index
      %13 = vector.load %arg5[%c0_12, %c0_13] : memref<1x128xf32, #tpu.memory_space<vmem>>, vector<1x128xf32>
      %14 = vector.broadcast %13 : vector<1x128xf32> to vector<16x128xf32>
      %15 = arith.addf %12, %14 : vector<16x128xf32>
      %c0_14 = arith.constant 0 : index
      %c0_15 = arith.constant 0 : index
      %16 = vector.load %arg6[%c0_14, %c0_15] : memref<16x128xf32, #tpu.memory_space<vmem>>, vector<16x128xf32>
      tpu.vector_store %arg6[%c0_14, %c0_15], %15 {strides = array<i32>} : memref<16x128xf32, #tpu.memory_space<vmem>>, vector<16x128xf32>,
    } else {
    }
    return
  }
  func.func @transform_0(%arg0: i32, %arg1: i32, %arg2: i32) -> (i32, i32) {
    %c0_i32 = arith.constant 0 : i32
    return %arg0, %arg2 : i32, i32
  }
  func.func @transform_1(%arg0: i32, %arg1: i32, %arg2: i32) -> (i32, i32) {
    %c0_i32 = arith.constant 0 : i32
    return %arg2, %arg1 : i32, i32
  }
  func.func @transform_2(%arg0: i32, %arg1: i32, %arg2: i32) -> (i32, i32) {
    %c0_i32 = arith.constant 0 : i32
    %c0_i32_0 = arith.constant 0 : i32
    return %c0_i32, %arg1 : i32, i32
  }
  func.func @transform_3(%arg0: i32, %arg1: i32, %arg2: i32) -> (i32, i32) {
    %c0_i32 = arith.constant 0 : i32
    return %arg0, %arg1 : i32, i32
  }
}

module attributes {stable_mosaic.version = 11 : i64} {
  func.func @_attn_kernel(%arg0: i32, %arg1: memref<1x5x32xf32, #tpu.memory_space<vmem>>, %arg2: memref<1x5x32xf32, #tpu.memory_space<vmem>>, %arg3: memref<1x5x32xf32, #tpu.memory_space<vmem>>, %arg4: memref<1x5x32xf32, #tpu.memory_space<vmem>>) attributes {dimension_semantics = [#tpu.dimension_semantics<parallel>], iteration_bounds = array<i64: 2>, scalar_prefetch = 0 : i64, scratch_operands = 0 : i64, tpu.core_type = #tpu.core_type<tc>, window_params = [{transform_indices = @transform_0, window_bounds = array<i64: 1, 5, 32>}, {transform_indices = @transform_1, window_bounds = array<i64: 1, 5, 32>}, {transform_indices = @transform_2, window_bounds = array<i64: 1, 5, 32>}, {transform_indices = @transform_3, window_bounds = array<i64: 1, 5, 32>}]} {
    %c0 = arith.constant 0 : index
    %c0_0 = arith.constant 0 : index
    %c0_1 = arith.constant 0 : index
    %0 = vector.load %arg1[%c0, %c0_0, %c0_1] : memref<1x5x32xf32, #tpu.memory_space<vmem>>, vector<1x5x32xf32>
    %1 = vector.shape_cast %0 : vector<1x5x32xf32> to vector<5x32xf32>
    %c0_2 = arith.constant 0 : index
    %c0_3 = arith.constant 0 : index
    %c0_4 = arith.constant 0 : index
    %2 = vector.load %arg2[%c0_2, %c0_3, %c0_4] : memref<1x5x32xf32, #tpu.memory_space<vmem>>, vector<1x5x32xf32>
    %3 = vector.shape_cast %2 : vector<1x5x32xf32> to vector<5x32xf32>
    %c0_5 = arith.constant 0 : index
    %c0_6 = arith.constant 0 : index
    %c0_7 = arith.constant 0 : index
    %4 = vector.load %arg3[%c0_5, %c0_6, %c0_7] : memref<1x5x32xf32, #tpu.memory_space<vmem>>, vector<1x5x32xf32>
    %5 = vector.shape_cast %4 : vector<1x5x32xf32> to vector<5x32xf32>
    %6 = vector.extract_strided_slice %1 {offsets = [0, 0], sizes = [5, 8], strides = [1, 1]} : vector<5x32xf32> to vector<5x8xf32>
    %cst = arith.constant 0.353553385 : f32
    %7 = vector.broadcast %cst : f32 to vector<5x8xf32>
    %8 = arith.mulf %6, %7 : vector<5x8xf32>
    %9 = vector.extract_strided_slice %3 {offsets = [0, 0], sizes = [5, 8], strides = [1, 1]} : vector<5x32xf32> to vector<5x8xf32>
    %10 = vector.extract_strided_slice %5 {offsets = [0, 0], sizes = [5, 8], strides = [1, 1]} : vector<5x32xf32> to vector<5x8xf32>
    %11 = tpu.transpose %9, [1, 0] : vector<5x8xf32> -> vector<8x5xf32>
    %cst_8 = arith.constant dense<0.000000e+00> : vector<5x5xf32>
    %12 = tpu.matmul %8, %11, %cst_8 {dimension_numbers = #tpu.dot_dimension_numbers<[1], [0], [0], [1], [0, 0, 1, 1], [], []>} : vector<5x8xf32>, vector<8x5xf32>, vector<5x5xf32> -> vector<5x5xf32>
    %cst_9 = arith.constant dense<0xFF800000> : vector<5xf32>
    %13 = vector.multi_reduction <maximumf>, %12, %cst_9 [1] : vector<5x5xf32> to vector<5xf32>
    %14 = vector.shape_cast %13 : vector<5xf32> to vector<5x1xf32>
    %15 = vector.broadcast %14 : vector<5x1xf32> to vector<5x5xf32>
    %16 = arith.subf %12, %15 : vector<5x5xf32>
    %17 = math.exp %16 : vector<5x5xf32>
    %cst_10 = arith.constant dense<0.000000e+00> : vector<5xf32>
    %18 = vector.multi_reduction <add>, %17, %cst_10 [1] : vector<5x5xf32> to vector<5xf32>
    %19 = vector.shape_cast %18 : vector<5xf32> to vector<5x1xf32>
    %20 = tpu.reciprocal %19 {approx = true} : vector<5x1xf32> -> vector<5x1xf32>
    %21 = vector.broadcast %20 : vector<5x1xf32> to vector<5x5xf32>
    %22 = arith.mulf %17, %21 : vector<5x5xf32>
    %cst_11 = arith.constant dense<0.000000e+00> : vector<5x8xf32>
    %23 = tpu.matmul %22, %10, %cst_11 {dimension_numbers = #tpu.dot_dimension_numbers<[1], [0], [0], [1], [0, 0, 1, 1], [], []>} : vector<5x5xf32>, vector<5x8xf32>, vector<5x8xf32> -> vector<5x8xf32>
    %24 = vector.extract_strided_slice %1 {offsets = [0, 8], sizes = [5, 8], strides = [1, 1]} : vector<5x32xf32> to vector<5x8xf32>
    %cst_12 = arith.constant 0.353553385 : f32
    %25 = vector.broadcast %cst_12 : f32 to vector<5x8xf32>
    %26 = arith.mulf %24, %25 : vector<5x8xf32>
    %27 = vector.extract_strided_slice %3 {offsets = [0, 8], sizes = [5, 8], strides = [1, 1]} : vector<5x32xf32> to vector<5x8xf32>
    %28 = vector.extract_strided_slice %5 {offsets = [0, 8], sizes = [5, 8], strides = [1, 1]} : vector<5x32xf32> to vector<5x8xf32>
    %29 = tpu.transpose %27, [1, 0] : vector<5x8xf32> -> vector<8x5xf32>
    %cst_13 = arith.constant dense<0.000000e+00> : vector<5x5xf32>
    %30 = tpu.matmul %26, %29, %cst_13 {dimension_numbers = #tpu.dot_dimension_numbers<[1], [0], [0], [1], [0, 0, 1, 1], [], []>} : vector<5x8xf32>, vector<8x5xf32>, vector<5x5xf32> -> vector<5x5xf32>
    %cst_14 = arith.constant dense<0xFF800000> : vector<5xf32>
    %31 = vector.multi_reduction <maximumf>, %30, %cst_14 [1] : vector<5x5xf32> to vector<5xf32>
    %32 = vector.shape_cast %31 : vector<5xf32> to vector<5x1xf32>
    %33 = vector.broadcast %32 : vector<5x1xf32> to vector<5x5xf32>
    %34 = arith.subf %30, %33 : vector<5x5xf32>
    %35 = math.exp %34 : vector<5x5xf32>
    %cst_15 = arith.constant dense<0.000000e+00> : vector<5xf32>
    %36 = vector.multi_reduction <add>, %35, %cst_15 [1] : vector<5x5xf32> to vector<5xf32>
    %37 = vector.shape_cast %36 : vector<5xf32> to vector<5x1xf32>
    %38 = tpu.reciprocal %37 {approx = true} : vector<5x1xf32> -> vector<5x1xf32>
    %39 = vector.broadcast %38 : vector<5x1xf32> to vector<5x5xf32>
    %40 = arith.mulf %35, %39 : vector<5x5xf32>
    %cst_16 = arith.constant dense<0.000000e+00> : vector<5x8xf32>
    %41 = tpu.matmul %40, %28, %cst_16 {dimension_numbers = #tpu.dot_dimension_numbers<[1], [0], [0], [1], [0, 0, 1, 1], [], []>} : vector<5x5xf32>, vector<5x8xf32>, vector<5x8xf32> -> vector<5x8xf32>
    %42 = vector.extract_strided_slice %1 {offsets = [0, 16], sizes = [5, 8], strides = [1, 1]} : vector<5x32xf32> to vector<5x8xf32>
    %cst_17 = arith.constant 0.353553385 : f32
    %43 = vector.broadcast %cst_17 : f32 to vector<5x8xf32>
    %44 = arith.mulf %42, %43 : vector<5x8xf32>
    %45 = vector.extract_strided_slice %3 {offsets = [0, 16], sizes = [5, 8], strides = [1, 1]} : vector<5x32xf32> to vector<5x8xf32>
    %46 = vector.extract_strided_slice %5 {offsets = [0, 16], sizes = [5, 8], strides = [1, 1]} : vector<5x32xf32> to vector<5x8xf32>
    %47 = tpu.transpose %45, [1, 0] : vector<5x8xf32> -> vector<8x5xf32>
    %cst_18 = arith.constant dense<0.000000e+00> : vector<5x5xf32>
    %48 = tpu.matmul %44, %47, %cst_18 {dimension_numbers = #tpu.dot_dimension_numbers<[1], [0], [0], [1], [0, 0, 1, 1], [], []>} : vector<5x8xf32>, vector<8x5xf32>, vector<5x5xf32> -> vector<5x5xf32>
    %cst_19 = arith.constant dense<0xFF800000> : vector<5xf32>
    %49 = vector.multi_reduction <maximumf>, %48, %cst_19 [1] : vector<5x5xf32> to vector<5xf32>
    %50 = vector.shape_cast %49 : vector<5xf32> to vector<5x1xf32>
    %51 = vector.broadcast %50 : vector<5x1xf32> to vector<5x5xf32>
    %52 = arith.subf %48, %51 : vector<5x5xf32>
    %53 = math.exp %52 : vector<5x5xf32>
    %cst_20 = arith.constant dense<0.000000e+00> : vector<5xf32>
    %54 = vector.multi_reduction <add>, %53, %cst_20 [1] : vector<5x5xf32> to vector<5xf32>
    %55 = vector.shape_cast %54 : vector<5xf32> to vector<5x1xf32>
    %56 = tpu.reciprocal %55 {approx = true} : vector<5x1xf32> -> vector<5x1xf32>
    %57 = vector.broadcast %56 : vector<5x1xf32> to vector<5x5xf32>
    %58 = arith.mulf %53, %57 : vector<5x5xf32>
    %cst_21 = arith.constant dense<0.000000e+00> : vector<5x8xf32>
    %59 = tpu.matmul %58, %46, %cst_21 {dimension_numbers = #tpu.dot_dimension_numbers<[1], [0], [0], [1], [0, 0, 1, 1], [], []>} : vector<5x5xf32>, vector<5x8xf32>, vector<5x8xf32> -> vector<5x8xf32>
    %60 = vector.extract_strided_slice %1 {offsets = [0, 24], sizes = [5, 8], strides = [1, 1]} : vector<5x32xf32> to vector<5x8xf32>
    %cst_22 = arith.constant 0.353553385 : f32
    %61 = vector.broadcast %cst_22 : f32 to vector<5x8xf32>
    %62 = arith.mulf %60, %61 : vector<5x8xf32>
    %63 = vector.extract_strided_slice %3 {offsets = [0, 24], sizes = [5, 8], strides = [1, 1]} : vector<5x32xf32> to vector<5x8xf32>
    %64 = vector.extract_strided_slice %5 {offsets = [0, 24], sizes = [5, 8], strides = [1, 1]} : vector<5x32xf32> to vector<5x8xf32>
    %65 = tpu.transpose %63, [1, 0] : vector<5x8xf32> -> vector<8x5xf32>
    %cst_23 = arith.constant dense<0.000000e+00> : vector<5x5xf32>
    %66 = tpu.matmul %62, %65, %cst_23 {dimension_numbers = #tpu.dot_dimension_numbers<[1], [0], [0], [1], [0, 0, 1, 1], [], []>} : vector<5x8xf32>, vector<8x5xf32>, vector<5x5xf32> -> vector<5x5xf32>
    %cst_24 = arith.constant dense<0xFF800000> : vector<5xf32>
    %67 = vector.multi_reduction <maximumf>, %66, %cst_24 [1] : vector<5x5xf32> to vector<5xf32>
    %68 = vector.shape_cast %67 : vector<5xf32> to vector<5x1xf32>
    %69 = vector.broadcast %68 : vector<5x1xf32> to vector<5x5xf32>
    %70 = arith.subf %66, %69 : vector<5x5xf32>
    %71 = math.exp %70 : vector<5x5xf32>
    %cst_25 = arith.constant dense<0.000000e+00> : vector<5xf32>
    %72 = vector.multi_reduction <add>, %71, %cst_25 [1] : vector<5x5xf32> to vector<5xf32>
    %73 = vector.shape_cast %72 : vector<5xf32> to vector<5x1xf32>
    %74 = tpu.reciprocal %73 {approx = true} : vector<5x1xf32> -> vector<5x1xf32>
    %75 = vector.broadcast %74 : vector<5x1xf32> to vector<5x5xf32>
    %76 = arith.mulf %71, %75 : vector<5x5xf32>
    %cst_26 = arith.constant dense<0.000000e+00> : vector<5x8xf32>
    %77 = tpu.matmul %76, %64, %cst_26 {dimension_numbers = #tpu.dot_dimension_numbers<[1], [0], [0], [1], [0, 0, 1, 1], [], []>} : vector<5x5xf32>, vector<5x8xf32>, vector<5x8xf32> -> vector<5x8xf32>
    %78 = tpu.concatenate %23, %41, %59, %77 in 1 : vector<5x8xf32>, vector<5x8xf32>, vector<5x8xf32>, vector<5x8xf32> -> vector<5x32xf32>
    %c0_27 = arith.constant 0 : index
    %c0_28 = arith.constant 0 : index
    %c0_29 = arith.constant 0 : index
    %79 = vector.load %arg4[%c0_27, %c0_28, %c0_29] : memref<1x5x32xf32, #tpu.memory_space<vmem>>, vector<1x5x32xf32>
    %80 = vector.shape_cast %79 : vector<1x5x32xf32> to vector<5x32xf32>
    %81 = vector.shape_cast %78 : vector<5x32xf32> to vector<1x5x32xf32>
    tpu.vector_store %arg4[%c0_27, %c0_28, %c0_29], %81 {strides = array<i32>} : memref<1x5x32xf32, #tpu.memory_space<vmem>>, vector<1x5x32xf32>,
    return
  }
  func.func @transform_0(%arg0: i32) -> (i32, i32, i32) {
    %c0_i32 = arith.constant 0 : i32
    %c0_i32_0 = arith.constant 0 : i32
    %c0_i32_1 = arith.constant 0 : i32
    return %arg0, %c0_i32, %c0_i32_0 : i32, i32, i32
  }
  func.func @transform_1(%arg0: i32) -> (i32, i32, i32) {
    %c0_i32 = arith.constant 0 : i32
    %c0_i32_0 = arith.constant 0 : i32
    %c0_i32_1 = arith.constant 0 : i32
    return %arg0, %c0_i32, %c0_i32_0 : i32, i32, i32
  }
  func.func @transform_2(%arg0: i32) -> (i32, i32, i32) {
    %c0_i32 = arith.constant 0 : i32
    %c0_i32_0 = arith.constant 0 : i32
    %c0_i32_1 = arith.constant 0 : i32
    return %arg0, %c0_i32, %c0_i32_0 : i32, i32, i32
  }
  func.func @transform_3(%arg0: i32) -> (i32, i32, i32) {
    %c0_i32 = arith.constant 0 : i32
    %c0_i32_0 = arith.constant 0 : i32
    %c0_i32_1 = arith.constant 0 : i32
    return %arg0, %c0_i32, %c0_i32_0 : i32, i32, i32
  }
}

module attributes {stable_mosaic.version = 11 : i64} {
  func.func @_matmul_kernel(%arg0: i32, %arg1: i32, %arg2: i32, %arg3: memref<16x128xf32, #tpu.memory_space<vmem>>, %arg4: memref<128x128xf32, #tpu.memory_space<vmem>>, %arg5: memref<1x128xf32, #tpu.memory_space<vmem>>, %arg6: memref<16x128xf32, #tpu.memory_space<vmem>>, %arg7: memref<16x128xf32, #tpu.memory_space<vmem>>) attributes {dimension_semantics = [#tpu.dimension_semantics<parallel>, #tpu.dimension_semantics<parallel>, #tpu.dimension_semantics<arbitrary>], iteration_bounds = array<i64: 1, 1, 1>, scalar_prefetch = 0 : i64, scratch_operands = 1 : i64, tpu.core_type = #tpu.core_type<tc>, window_params = [{transform_indices = @transform_0, window_bounds = array<i64: 16, 128>}, {transform_indices = @transform_1, window_bounds = array<i64: 128, 128>}, {transform_indices = @transform_2, window_bounds = array<i64: 1, 128>}, {transform_indices = @transform_3, window_bounds = array<i64: 16, 128>}]} {
    %c0_i32 = arith.constant 0 : i32
    %0 = arith.cmpi eq, %arg2, %c0_i32 : i32
    %1 = arith.extui %0 : i1 to i32
    %c0_i32_0 = arith.constant 0 : i32
    %2 = arith.cmpi ne, %1, %c0_i32_0 : i32
    scf.if %2 {
      %cst_10 = arith.constant 0.000000e+00 : f32
      %12 = vector.broadcast %cst_10 : f32 to vector<16x128xf32>
      %c0_11 = arith.constant 0 : index
      %c0_12 = arith.constant 0 : index
      %13 = vector.load %arg7[%c0_11, %c0_12] : memref<16x128xf32, #tpu.memory_space<vmem>>, vector<16x128xf32>
      tpu.vector_store %arg7[%c0_11, %c0_12], %12 {strides = array<i32>} : memref<16x128xf32, #tpu.memory_space<vmem>>, vector<16x128xf32>,
    } else {
    }
    %c0 = arith.constant 0 : index
    %c0_1 = arith.constant 0 : index
    %3 = vector.load %arg7[%c0, %c0_1] : memref<16x128xf32, #tpu.memory_space<vmem>>, vector<16x128xf32>
    %c0_2 = arith.constant 0 : index
    %c0_3 = arith.constant 0 : index
    %4 = vector.load %arg3[%c0_2, %c0_3] : memref<16x128xf32, #tpu.memory_space<vmem>>, vector<16x128xf32>
    %c0_4 = arith.constant 0 : index
    %c0_5 = arith.constant 0 : index
    %5 = vector.load %arg4[%c0_4, %c0_5] : memref<128x128xf32, #tpu.memory_space<vmem>>, vector<128x128xf32>
    %cst = arith.constant dense<0.000000e+00> : vector<16x128xf32>
    %6 = tpu.matmul %4, %5, %cst {dimension_numbers = #tpu.dot_dimension_numbers<[1], [0], [0], [1], [0, 0, 1, 1], [], []>} : vector<16x128xf32>, vector<128x128xf32>, vector<16x128xf32> -> vector<16x128xf32>
    %7 = arith.addf %3, %6 : vector<16x128xf32>
    %c0_6 = arith.constant 0 : index
    %c0_7 = arith.constant 0 : index
    %8 = vector.load %arg7[%c0_6, %c0_7] : memref<16x128xf32, #tpu.memory_space<vmem>>, vector<16x128xf32>
    tpu.vector_store %arg7[%c0_6, %c0_7], %7 {strides = array<i32>} : memref<16x128xf32, #tpu.memory_space<vmem>>, vector<16x128xf32>,
    %c0_i32_8 = arith.constant 0 : i32
    %9 = arith.cmpi eq, %arg2, %c0_i32_8 : i32
    %10 = arith.extui %9 : i1 to i32
    %c0_i32_9 = arith.constant 0 : i32
    %11 = arith.cmpi ne, %10, %c0_i32_9 : i32
    scf.if %11 {
      %c0_10 = arith.constant 0 : index
      %c0_11 = arith.constant 0 : index
      %12 = vector.load %arg7[%c0_10, %c0_11] : memref<16x128xf32, #tpu.memory_space<vmem>>, vector<16x128xf32>
      %c0_12 = arith.constant 0 : index
      %c0_13 = arith.constant 0 : index
      %13 = vector.load %arg5[%c0_12, %c0_13] : memref<1x128xf32, #tpu.memory_space<vmem>>, vector<1x128xf32>
      %14 = vector.broadcast %13 : vector<1x128xf32> to vector<16x128xf32>
      %15 = arith.addf %12, %14 : vector<16x128xf32>
      %cst_14 = arith.constant 0.000000e+00 : f32
      %16 = vector.broadcast %cst_14 : f32 to vector<16x128xf32>
      %17 = arith.maximumf %15, %16 : vector<16x128xf32>
      %c0_15 = arith.constant 0 : index
      %c0_16 = arith.constant 0 : index
      %18 = vector.load %arg6[%c0_15, %c0_16] : memref<16x128xf32, #tpu.memory_space<vmem>>, vector<16x128xf32>
      tpu.vector_store %arg6[%c0_15, %c0_16], %17 {strides = array<i32>} : memref<16x128xf32, #tpu.memory_space<vmem>>, vector<16x128xf32>,
    } else {
    }
    return
  }
  func.func @transform_0(%arg0: i32, %arg1: i32, %arg2: i32) -> (i32, i32) {
    %c0_i32 = arith.constant 0 : i32
    return %arg0, %arg2 : i32, i32
  }
  func.func @transform_1(%arg0: i32, %arg1: i32, %arg2: i32) -> (i32, i32) {
    %c0_i32 = arith.constant 0 : i32
    return %arg2, %arg1 : i32, i32
  }
  func.func @transform_2(%arg0: i32, %arg1: i32, %arg2: i32) -> (i32, i32) {
    %c0_i32 = arith.constant 0 : i32
    %c0_i32_0 = arith.constant 0 : i32
    return %c0_i32, %arg1 : i32, i32
  }
  func.func @transform_3(%arg0: i32, %arg1: i32, %arg2: i32) -> (i32, i32) {
    %c0_i32 = arith.constant 0 : i32
    return %arg0, %arg1 : i32, i32
  }
}

module attributes {stable_mosaic.version = 11 : i64} {
  func.func @_matmul_kernel(%arg0: i32, %arg1: i32, %arg2: i32, %arg3: memref<16x128xf32, #tpu.memory_space<vmem>>, %arg4: memref<128x128xf32, #tpu.memory_space<vmem>>, %arg5: memref<1x128xf32, #tpu.memory_space<vmem>>, %arg6: memref<16x128xf32, #tpu.memory_space<vmem>>, %arg7: memref<16x128xf32, #tpu.memory_space<vmem>>, %arg8: memref<16x128xf32, #tpu.memory_space<vmem>>) attributes {dimension_semantics = [#tpu.dimension_semantics<parallel>, #tpu.dimension_semantics<parallel>, #tpu.dimension_semantics<arbitrary>], iteration_bounds = array<i64: 1, 1, 1>, scalar_prefetch = 0 : i64, scratch_operands = 1 : i64, tpu.core_type = #tpu.core_type<tc>, window_params = [{transform_indices = @transform_0, window_bounds = array<i64: 16, 128>}, {transform_indices = @transform_1, window_bounds = array<i64: 128, 128>}, {transform_indices = @transform_2, window_bounds = array<i64: 1, 128>}, {transform_indices = @transform_3, window_bounds = array<i64: 16, 128>}, {transform_indices = @transform_4, window_bounds = array<i64: 16, 128>}]} {
    %c0_i32 = arith.constant 0 : i32
    %0 = arith.cmpi eq, %arg2, %c0_i32 : i32
    %1 = arith.extui %0 : i1 to i32
    %c0_i32_0 = arith.constant 0 : i32
    %2 = arith.cmpi ne, %1, %c0_i32_0 : i32
    scf.if %2 {
      %cst_10 = arith.constant 0.000000e+00 : f32
      %12 = vector.broadcast %cst_10 : f32 to vector<16x128xf32>
      %c0_11 = arith.constant 0 : index
      %c0_12 = arith.constant 0 : index
      %13 = vector.load %arg8[%c0_11, %c0_12] : memref<16x128xf32, #tpu.memory_space<vmem>>, vector<16x128xf32>
      tpu.vector_store %arg8[%c0_11, %c0_12], %12 {strides = array<i32>} : memref<16x128xf32, #tpu.memory_space<vmem>>, vector<16x128xf32>,
    } else {
    }
    %c0 = arith.constant 0 : index
    %c0_1 = arith.constant 0 : index
    %3 = vector.load %arg8[%c0, %c0_1] : memref<16x128xf32, #tpu.memory_space<vmem>>, vector<16x128xf32>
    %c0_2 = arith.constant 0 : index
    %c0_3 = arith.constant 0 : index
    %4 = vector.load %arg3[%c0_2, %c0_3] : memref<16x128xf32, #tpu.memory_space<vmem>>, vector<16x128xf32>
    %c0_4 = arith.constant 0 : index
    %c0_5 = arith.constant 0 : index
    %5 = vector.load %arg4[%c0_4, %c0_5] : memref<128x128xf32, #tpu.memory_space<vmem>>, vector<128x128xf32>
    %cst = arith.constant dense<0.000000e+00> : vector<16x128xf32>
    %6 = tpu.matmul %4, %5, %cst {dimension_numbers = #tpu.dot_dimension_numbers<[1], [0], [0], [1], [0, 0, 1, 1], [], []>} : vector<16x128xf32>, vector<128x128xf32>, vector<16x128xf32> -> vector<16x128xf32>
    %7 = arith.addf %3, %6 : vector<16x128xf32>
    %c0_6 = arith.constant 0 : index
    %c0_7 = arith.constant 0 : index
    %8 = vector.load %arg8[%c0_6, %c0_7] : memref<16x128xf32, #tpu.memory_space<vmem>>, vector<16x128xf32>
    tpu.vector_store %arg8[%c0_6, %c0_7], %7 {strides = array<i32>} : memref<16x128xf32, #tpu.memory_space<vmem>>, vector<16x128xf32>,
    %c0_i32_8 = arith.constant 0 : i32
    %9 = arith.cmpi eq, %arg2, %c0_i32_8 : i32
    %10 = arith.extui %9 : i1 to i32
    %c0_i32_9 = arith.constant 0 : i32
    %11 = arith.cmpi ne, %10, %c0_i32_9 : i32
    scf.if %11 {
      %c0_10 = arith.constant 0 : index
      %c0_11 = arith.constant 0 : index
      %12 = vector.load %arg8[%c0_10, %c0_11] : memref<16x128xf32, #tpu.memory_space<vmem>>, vector<16x128xf32>
      %c0_12 = arith.constant 0 : index
      %c0_13 = arith.constant 0 : index
      %13 = vector.load %arg5[%c0_12, %c0_13] : memref<1x128xf32, #tpu.memory_space<vmem>>, vector<1x128xf32>
      %14 = vector.broadcast %13 : vector<1x128xf32> to vector<16x128xf32>
      %15 = arith.addf %12, %14 : vector<16x128xf32>
      %c0_14 = arith.constant 0 : index
      %c0_15 = arith.constant 0 : index
      %16 = vector.load %arg6[%c0_14, %c0_15] : memref<16x128xf32, #tpu.memory_space<vmem>>, vector<16x128xf32>
      %17 = arith.addf %15, %16 : vector<16x128xf32>
      %c0_16 = arith.constant 0 : index
      %c0_17 = arith.constant 0 : index
      %18 = vector.load %arg7[%c0_16, %c0_17] : memref<16x128xf32, #tpu.memory_space<vmem>>, vector<16x128xf32>
      tpu.vector_store %arg7[%c0_16, %c0_17], %17 {strides = array<i32>} : memref<16x128xf32, #tpu.memory_space<vmem>>, vector<16x128xf32>,
    } else {
    }
    return
  }
  func.func @transform_0(%arg0: i32, %arg1: i32, %arg2: i32) -> (i32, i32) {
    %c0_i32 = arith.constant 0 : i32
    return %arg0, %arg2 : i32, i32
  }
  func.func @transform_1(%arg0: i32, %arg1: i32, %arg2: i32) -> (i32, i32) {
    %c0_i32 = arith.constant 0 : i32
    return %arg2, %arg1 : i32, i32
  }
  func.func @transform_2(%arg0: i32, %arg1: i32, %arg2: i32) -> (i32, i32) {
    %c0_i32 = arith.constant 0 : i32
    %c0_i32_0 = arith.constant 0 : i32
    return %c0_i32, %arg1 : i32, i32
  }
  func.func @transform_3(%arg0: i32, %arg1: i32, %arg2: i32) -> (i32, i32) {
    %c0_i32 = arith.constant 0 : i32
    return %arg0, %arg1 : i32, i32
  }
  func.func @transform_4(%arg0: i32, %arg1: i32, %arg2: i32) -> (i32, i32) {
    %c0_i32 = arith.constant 0 : i32
    return %arg0, %arg1 : i32, i32
  }
}

module attributes {stable_mosaic.version = 11 : i64} {
  func.func @_matmul_kernel(%arg0: i32, %arg1: i32, %arg2: i32, %arg3: memref<16x128xf32, #tpu.memory_space<vmem>>, %arg4: memref<128x128xf32, #tpu.memory_space<vmem>>, %arg5: memref<1x128xf32, #tpu.memory_space<vmem>>, %arg6: memref<16x128xf32, #tpu.memory_space<vmem>>, %arg7: memref<16x128xf32, #tpu.memory_space<vmem>>) attributes {dimension_semantics = [#tpu.dimension_semantics<parallel>, #tpu.dimension_semantics<parallel>, #tpu.dimension_semantics<arbitrary>], iteration_bounds = array<i64: 1, 1, 1>, scalar_prefetch = 0 : i64, scratch_operands = 1 : i64, tpu.core_type = #tpu.core_type<tc>, window_params = [{transform_indices = @transform_0, window_bounds = array<i64: 16, 128>}, {transform_indices = @transform_1, window_bounds = array<i64: 128, 128>}, {transform_indices = @transform_2, window_bounds = array<i64: 1, 128>}, {transform_indices = @transform_3, window_bounds = array<i64: 16, 128>}]} {
    %c0_i32 = arith.constant 0 : i32
    %0 = arith.cmpi eq, %arg2, %c0_i32 : i32
    %1 = arith.extui %0 : i1 to i32
    %c0_i32_0 = arith.constant 0 : i32
    %2 = arith.cmpi ne, %1, %c0_i32_0 : i32
    scf.if %2 {
      %cst_10 = arith.constant 0.000000e+00 : f32
      %12 = vector.broadcast %cst_10 : f32 to vector<16x128xf32>
      %c0_11 = arith.constant 0 : index
      %c0_12 = arith.constant 0 : index
      %13 = vector.load %arg7[%c0_11, %c0_12] : memref<16x128xf32, #tpu.memory_space<vmem>>, vector<16x128xf32>
      tpu.vector_store %arg7[%c0_11, %c0_12], %12 {strides = array<i32>} : memref<16x128xf32, #tpu.memory_space<vmem>>, vector<16x128xf32>,
    } else {
    }
    %c0 = arith.constant 0 : index
    %c0_1 = arith.constant 0 : index
    %3 = vector.load %arg7[%c0, %c0_1] : memref<16x128xf32, #tpu.memory_space<vmem>>, vector<16x128xf32>
    %c0_2 = arith.constant 0 : index
    %c0_3 = arith.constant 0 : index
    %4 = vector.load %arg3[%c0_2, %c0_3] : memref<16x128xf32, #tpu.memory_space<vmem>>, vector<16x128xf32>
    %c0_4 = arith.constant 0 : index
    %c0_5 = arith.constant 0 : index
    %5 = vector.load %arg4[%c0_4, %c0_5] : memref<128x128xf32, #tpu.memory_space<vmem>>, vector<128x128xf32>
    %cst = arith.constant dense<0.000000e+00> : vector<16x128xf32>
    %6 = tpu.matmul %4, %5, %cst {dimension_numbers = #tpu.dot_dimension_numbers<[1], [0], [0], [1], [0, 0, 1, 1], [], []>} : vector<16x128xf32>, vector<128x128xf32>, vector<16x128xf32> -> vector<16x128xf32>
    %7 = arith.addf %3, %6 : vector<16x128xf32>
    %c0_6 = arith.constant 0 : index
    %c0_7 = arith.constant 0 : index
    %8 = vector.load %arg7[%c0_6, %c0_7] : memref<16x128xf32, #tpu.memory_space<vmem>>, vector<16x128xf32>
    tpu.vector_store %arg7[%c0_6, %c0_7], %7 {strides = array<i32>} : memref<16x128xf32, #tpu.memory_space<vmem>>, vector<16x128xf32>,
    %c0_i32_8 = arith.constant 0 : i32
    %9 = arith.cmpi eq, %arg2, %c0_i32_8 : i32
    %10 = arith.extui %9 : i1 to i32
    %c0_i32_9 = arith.constant 0 : i32
    %11 = arith.cmpi ne, %10, %c0_i32_9 : i32
    scf.if %11 {
      %c0_10 = arith.constant 0 : index
      %c0_11 = arith.constant 0 : index
      %12 = vector.load %arg7[%c0_10, %c0_11] : memref<16x128xf32, #tpu.memory_space<vmem>>, vector<16x128xf32>
      %c0_12 = arith.constant 0 : index
      %c0_13 = arith.constant 0 : index
      %13 = vector.load %arg5[%c0_12, %c0_13] : memref<1x128xf32, #tpu.memory_space<vmem>>, vector<1x128xf32>
      %14 = vector.broadcast %13 : vector<1x128xf32> to vector<16x128xf32>
      %15 = arith.addf %12, %14 : vector<16x128xf32>
      %cst_14 = arith.constant 1.702000e+00 : f32
      %16 = vector.broadcast %cst_14 : f32 to vector<16x128xf32>
      %17 = arith.mulf %16, %15 : vector<16x128xf32>
      %18 = arith.negf %17 : vector<16x128xf32>
      %19 = math.exp %18 : vector<16x128xf32>
      %cst_15 = arith.constant 1.000000e+00 : f32
      %20 = vector.broadcast %cst_15 : f32 to vector<16x128xf32>
      %21 = arith.addf %20, %19 : vector<16x128xf32>
      %22 = arith.divf %20, %21 : vector<16x128xf32>
      %23 = arith.mulf %15, %22 : vector<16x128xf32>
      %c0_16 = arith.constant 0 : index
      %c0_17 = arith.constant 0 : index
      %24 = vector.load %arg6[%c0_16, %c0_17] : memref<16x128xf32, #tpu.memory_space<vmem>>, vector<16x128xf32>
      tpu.vector_store %arg6[%c0_16, %c0_17], %23 {strides = array<i32>} : memref<16x128xf32, #tpu.memory_space<vmem>>, vector<16x128xf32>,
    } else {
    }
    return
  }
  func.func @transform_0(%arg0: i32, %arg1: i32, %arg2: i32) -> (i32, i32) {
    %c0_i32 = arith.constant 0 : i32
    return %arg0, %arg2 : i32, i32
  }
  func.func @transform_1(%arg0: i32, %arg1: i32, %arg2: i32) -> (i32, i32) {
    %c0_i32 = arith.constant 0 : i32
    return %arg2, %arg1 : i32, i32
  }
  func.func @transform_2(%arg0: i32, %arg1: i32, %arg2: i32) -> (i32, i32) {
    %c0_i32 = arith.constant 0 : i32
    %c0_i32_0 = arith.constant 0 : i32
    return %c0_i32, %arg1 : i32, i32
  }
  func.func @transform_3(%arg0: i32, %arg1: i32, %arg2: i32) -> (i32, i32) {
    %c0_i32 = arith.constant 0 : i32
    return %arg0, %arg1 : i32, i32
  }
}

module attributes {stable_mosaic.version = 11 : i64} {
  func.func @_matmul_kernel(%arg0: i32, %arg1: i32, %arg2: i32, %arg3: memref<8x128xf32, #tpu.memory_space<vmem>>, %arg4: memref<128x128xf32, #tpu.memory_space<vmem>>, %arg5: memref<1x128xf32, #tpu.memory_space<vmem>>, %arg6: memref<8x128xf32, #tpu.memory_space<vmem>>, %arg7: memref<8x128xf32, #tpu.memory_space<vmem>>) attributes {dimension_semantics = [#tpu.dimension_semantics<parallel>, #tpu.dimension_semantics<parallel>, #tpu.dimension_semantics<arbitrary>], iteration_bounds = array<i64: 1, 1, 1>, scalar_prefetch = 0 : i64, scratch_operands = 1 : i64, tpu.core_type = #tpu.core_type<tc>, window_params = [{transform_indices = @transform_0, window_bounds = array<i64: 8, 128>}, {transform_indices = @transform_1, window_bounds = array<i64: 128, 128>}, {transform_indices = @transform_2, window_bounds = array<i64: 1, 128>}, {transform_indices = @transform_3, window_bounds = array<i64: 8, 128>}]} {
    %c0_i32 = arith.constant 0 : i32
    %0 = arith.cmpi eq, %arg2, %c0_i32 : i32
    %1 = arith.extui %0 : i1 to i32
    %c0_i32_0 = arith.constant 0 : i32
    %2 = arith.cmpi ne, %1, %c0_i32_0 : i32
    scf.if %2 {
      %cst_10 = arith.constant 0.000000e+00 : f32
      %12 = vector.broadcast %cst_10 : f32 to vector<8x128xf32>
      %c0_11 = arith.constant 0 : index
      %c0_12 = arith.constant 0 : index
      %13 = vector.load %arg7[%c0_11, %c0_12] : memref<8x128xf32, #tpu.memory_space<vmem>>, vector<8x128xf32>
      tpu.vector_store %arg7[%c0_11, %c0_12], %12 {strides = array<i32>} : memref<8x128xf32, #tpu.memory_space<vmem>>, vector<8x128xf32>,
    } else {
    }
    %c0 = arith.constant 0 : index
    %c0_1 = arith.constant 0 : index
    %3 = vector.load %arg7[%c0, %c0_1] : memref<8x128xf32, #tpu.memory_space<vmem>>, vector<8x128xf32>
    %c0_2 = arith.constant 0 : index
    %c0_3 = arith.constant 0 : index
    %4 = vector.load %arg3[%c0_2, %c0_3] : memref<8x128xf32, #tpu.memory_space<vmem>>, vector<8x128xf32>
    %c0_4 = arith.constant 0 : index
    %c0_5 = arith.constant 0 : index
    %5 = vector.load %arg4[%c0_4, %c0_5] : memref<128x128xf32, #tpu.memory_space<vmem>>, vector<128x128xf32>
    %cst = arith.constant dense<0.000000e+00> : vector<8x128xf32>
    %6 = tpu.matmul %4, %5, %cst {dimension_numbers = #tpu.dot_dimension_numbers<[1], [0], [0], [1], [0, 0, 1, 1], [], []>} : vector<8x128xf32>, vector<128x128xf32>, vector<8x128xf32> -> vector<8x128xf32>
    %7 = arith.addf %3, %6 : vector<8x128xf32>
    %c0_6 = arith.constant 0 : index
    %c0_7 = arith.constant 0 : index
    %8 = vector.load %arg7[%c0_6, %c0_7] : memref<8x128xf32, #tpu.memory_space<vmem>>, vector<8x128xf32>
    tpu.vector_store %arg7[%c0_6, %c0_7], %7 {strides = array<i32>} : memref<8x128xf32, #tpu.memory_space<vmem>>, vector<8x128xf32>,
    %c0_i32_8 = arith.constant 0 : i32
    %9 = arith.cmpi eq, %arg2, %c0_i32_8 : i32
    %10 = arith.extui %9 : i1 to i32
    %c0_i32_9 = arith.constant 0 : i32
    %11 = arith.cmpi ne, %10, %c0_i32_9 : i32
    scf.if %11 {
      %c0_10 = arith.constant 0 : index
      %c0_11 = arith.constant 0 : index
      %12 = vector.load %arg7[%c0_10, %c0_11] : memref<8x128xf32, #tpu.memory_space<vmem>>, vector<8x128xf32>
      %c0_12 = arith.constant 0 : index
      %c0_13 = arith.constant 0 : index
      %13 = vector.load %arg5[%c0_12, %c0_13] : memref<1x128xf32, #tpu.memory_space<vmem>>, vector<1x128xf32>
      %14 = vector.broadcast %13 : vector<1x128xf32> to vector<8x128xf32>
      %15 = arith.addf %12, %14 : vector<8x128xf32>
      %c0_14 = arith.constant 0 : index
      %c0_15 = arith.constant 0 : index
      %16 = vector.load %arg6[%c0_14, %c0_15] : memref<8x128xf32, #tpu.memory_space<vmem>>, vector<8x128xf32>
      tpu.vector_store %arg6[%c0_14, %c0_15], %15 {strides = array<i32>} : memref<8x128xf32, #tpu.memory_space<vmem>>, vector<8x128xf32>,
    } else {
    }
    return
  }
  func.func @transform_0(%arg0: i32, %arg1: i32, %arg2: i32) -> (i32, i32) {
    %c0_i32 = arith.constant 0 : i32
    return %arg0, %arg2 : i32, i32
  }
  func.func @transform_1(%arg0: i32, %arg1: i32, %arg2: i32) -> (i32, i32) {
    %c0_i32 = arith.constant 0 : i32
    return %arg2, %arg1 : i32, i32
  }
  func.func @transform_2(%arg0: i32, %arg1: i32, %arg2: i32) -> (i32, i32) {
    %c0_i32 = arith.constant 0 : i32
    %c0_i32_0 = arith.constant 0 : i32
    return %c0_i32, %arg1 : i32, i32
  }
  func.func @transform_3(%arg0: i32, %arg1: i32, %arg2: i32) -> (i32, i32) {
    %c0_i32 = arith.constant 0 : i32
    return %arg0, %arg1 : i32, i32
  }
}

module attributes {stable_mosaic.version = 11 : i64} {
  func.func @_layernorm_kernel(%arg0: i32, %arg1: memref<8x32xf32, #tpu.memory_space<vmem>>, %arg2: memref<1x32xf32, #tpu.memory_space<vmem>>, %arg3: memref<1x32xf32, #tpu.memory_space<vmem>>, %arg4: memref<8x32xf32, #tpu.memory_space<vmem>>) attributes {dimension_semantics = [#tpu.dimension_semantics<parallel>], iteration_bounds = array<i64: 1>, scalar_prefetch = 0 : i64, scratch_operands = 0 : i64, tpu.core_type = #tpu.core_type<tc>, window_params = [{transform_indices = @transform_0, window_bounds = array<i64: 8, 32>}, {pipeline_mode = #tpu.pipeline_mode<synchronous>, transform_indices = @transform_1, window_bounds = array<i64: 1, 32>}, {pipeline_mode = #tpu.pipeline_mode<synchronous>, transform_indices = @transform_2, window_bounds = array<i64: 1, 32>}, {transform_indices = @transform_3, window_bounds = array<i64: 8, 32>}]} {
    %c0 = arith.constant 0 : index
    %c0_0 = arith.constant 0 : index
    %0 = vector.load %arg1[%c0, %c0_0] : memref<8x32xf32, #tpu.memory_space<vmem>>, vector<8x32xf32>
    %cst = arith.constant dense<0.000000e+00> : vector<8xf32>
    %1 = vector.multi_reduction <add>, %0, %cst [1] : vector<8x32xf32> to vector<8xf32>
    %2 = vector.shape_cast %1 : vector<8xf32> to vector<8x1xf32>
    %cst_1 = arith.constant 3.200000e+01 : f32
    %3 = vector.broadcast %cst_1 : f32 to vector<8x1xf32>
    %4 = arith.divf %2, %3 : vector<8x1xf32>
    %5 = vector.broadcast %4 : vector<8x1xf32> to vector<8x32xf32>
    %6 = arith.subf %0, %5 : vector<8x32xf32>
    %7 = arith.mulf %6, %6 : vector<8x32xf32>
    %cst_2 = arith.constant dense<0.000000e+00> : vector<8xf32>
    %8 = vector.multi_reduction <add>, %7, %cst_2 [1] : vector<8x32xf32> to vector<8xf32>
    %9 = vector.shape_cast %8 : vector<8xf32> to vector<8x1xf32>
    %cst_3 = arith.constant 3.200000e+01 : f32
    %10 = vector.broadcast %cst_3 : f32 to vector<8x1xf32>
    %11 = arith.divf %9, %10 : vector<8x1xf32>
    %12 = vector.broadcast %4 : vector<8x1xf32> to vector<8x32xf32>
    %13 = arith.subf %0, %12 : vector<8x32xf32>
    %cst_4 = arith.constant 9.99999974E-6 : f32
    %14 = vector.broadcast %cst_4 : f32 to vector<8x1xf32>
    %15 = arith.addf %11, %14 : vector<8x1xf32>
    %16 = math.rsqrt %15 : vector<8x1xf32>
    %17 = vector.broadcast %16 : vector<8x1xf32> to vector<8x32xf32>
    %18 = arith.mulf %13, %17 : vector<8x32xf32>
    %c0_5 = arith.constant 0 : index
    %c0_6 = arith.constant 0 : index
    %19 = vector.load %arg2[%c0_5, %c0_6] : memref<1x32xf32, #tpu.memory_space<vmem>>, vector<1x32xf32>
    %20 = vector.broadcast %19 : vector<1x32xf32> to vector<8x32xf32>
    %21 = arith.mulf %18, %20 : vector<8x32xf32>
    %c0_7 = arith.constant 0 : index
    %c0_8 = arith.constant 0 : index
    %22 = vector.load %arg3[%c0_7, %c0_8] : memref<1x32xf32, #tpu.memory_space<vmem>>, vector<1x32xf32>
    %23 = vector.broadcast %22 : vector<1x32xf32> to vector<8x32xf32>
    %24 = arith.addf %21, %23 : vector<8x32xf32>
    %c0_9 = arith.constant 0 : index
    %c0_10 = arith.constant 0 : index
    %25 = vector.load %arg4[%c0_9, %c0_10] : memref<8x32xf32, #tpu.memory_space<vmem>>, vector<8x32xf32>
    tpu.vector_store %arg4[%c0_9, %c0_10], %24 {strides = array<i32>} : memref<8x32xf32, #tpu.memory_space<vmem>>, vector<8x32xf32>,
    return
  }
  func.func @transform_0(%arg0: i32) -> (i32, i32) {
    %c0_i32 = arith.constant 0 : i32
    %c0_i32_0 = arith.constant 0 : i32
    return %arg0, %c0_i32 : i32, i32
  }
  func.func @transform_1(%arg0: i32) -> (i32, i32) {
    %c0_i32 = arith.constant 0 : i32
    %c0_i32_0 = arith.constant 0 : i32
    %c0_i32_1 = arith.constant 0 : i32
    return %c0_i32, %c0_i32_0 : i32, i32
  }
  func.func @transform_2(%arg0: i32) -> (i32, i32) {
    %c0_i32 = arith.constant 0 : i32
    %c0_i32_0 = arith.constant 0 : i32
    %c0_i32_1 = arith.constant 0 : i32
    return %c0_i32, %c0_i32_0 : i32, i32
  }
  func.func @transform_3(%arg0: i32) -> (i32, i32) {
    %c0_i32 = arith.constant 0 : i32
    %c0_i32_0 = arith.constant 0 : i32
    return %arg0, %c0_i32 : i32, i32
  }
}

</mosaic_0001>

<llo_original>
// kernel: multiway_transformer_forward.24
$region0: #{multiway_transformer_forward.24}
  #allocation0 [shape = 'u32[]', space=smem, size = 0x4, offset = 0x4, fixed_abs, tag = 'smem constant byte address 0x4 - core index']
  #allocation1 [shape = 'u32[144,128]{1,0:T(1,128)}', space=vmem, size = 0x12000, scoped, tag = 'internal scratch']
  %s0 = inlined_call_operand.vmem [shape: f32[2,5,32], index: 0, kind: input, shape index: {}]
  %s1 = inlined_call_operand.vmem [shape: f32[5,32], index: 1, kind: input, shape index: {}]
  %s2 = inlined_call_operand.vmem [shape: f32[1,32], index: 2, kind: input, shape index: {}]
  %s3 = inlined_call_operand.vmem [shape: f32[2,5,32], index: 3, kind: output, shape index: {}]
  %s4 = sld [smem:[#allocation0]]
  $region45: #{multiway_transformer_forward.24} parent=0
    _
  %s6 = ssub.s32 1, %s4
  %s7 = scalar_select 0, %s6, %s4
  loop: start=0, step=1, limit=4
  $region2: #{multiway_transformer_forward.24} parent=0 // loop_pre_header
    _
  $region3: #{multiway_transformer_forward.24} parent=0 // loop_header
    %s9 = sphi 0, %s13
    %p10 = scmp.ge.s32.totalorder %s9, 4
    %s19 = sphi 0, %s21
    %s22 = sphi 0, %s19
    %s23 = sphi 0, %s22
    %s39 = sphi 0, %s23
    %s43 = sphi 0, %s43
    %s45 = sphi 0, %s43
    %s46 = sphi 0, %s45
    %s60 = sphi 0, %s46
    %s64 = sphi 0, %s64
    %s66 = sphi 0, %s64
    %s67 = sphi 0, %s66
    %s81 = sphi 0, %s67
    %s87 = sphi 0, %s89
    %s90 = sphi 0, %s87
    %s91 = sphi 0, %s90
    %s107 = sphi 0, %s91
  $region4: #{multiway_transformer_forward.24} parent=0 // loop_header_branch
    %12 = sbr.rel (%p10) target = $region8
  $region5: #{multiway_transformer_forward.24} parent=0 // loop_body
    %s14 = ssub.s32 %s9, 1
    %s15 = ssub.s32 %s9, 2
    %s16 = sadd.s32 %s9, 1
    %s17 = ssub.s32 %s9, %s16
    %p18 = scmp.eq.s32.totalorder %s17, 0
    %s20 = sadd.s32 %s19, 1
    %s21 = scalar_select %p18, %s19, %s20
    %p24 = pneg %p18
    %p25 = scmp.eq.s32.totalorder %s9, 1
    %p26 = por %p24, %p25
    %p27 = scmp.ne.s32.totalorder %s19, %s22
    %p28 = scmp.eq.s32.totalorder %s9, 0
    %p29 = por %p27, %p28
    %p30 = scmp.ne.s32.totalorder %s19, %s22
    %p31 = scmp.eq.s32.totalorder %s14, 1
    %p32 = por %p30, %p31
    %p33 = scmp.ne.s32.totalorder %s22, %s23
    %p34 = scmp.eq.s32.totalorder %s14, 0
    %p35 = por %p33, %p34
    %p36 = scmp.ne.s32.totalorder %s22, %s23
    %p37 = scmp.eq.s32.totalorder %s15, 1
    %p38 = por %p36, %p37
    %p40 = scmp.ne.s32.totalorder %s23, %s39
    %p41 = scmp.eq.s32.totalorder %s15, 0
    %p42 = por %p40, %p41
    %s44 = sadd.s32 %s43, 1
    %p47 = scmp.eq.s32.totalorder %s9, 1
    %p48 = scmp.ne.s32.totalorder %s43, %s45
    %p49 = scmp.eq.s32.totalorder %s9, 0
    %p50 = por %p48, %p49
    %p51 = scmp.ne.s32.totalorder %s43, %s45
    %p52 = scmp.eq.s32.totalorder %s14, 1
    %p53 = por %p51, %p52
    %p54 = scmp.ne.s32.totalorder %s45, %s46
    %p55 = scmp.eq.s32.totalorder %s14, 0
    %p56 = por %p54, %p55
    %p57 = scmp.ne.s32.totalorder %s45, %s46
    %p58 = scmp.eq.s32.totalorder %s15, 1
    %p59 = por %p57, %p58
    %p61 = scmp.ne.s32.totalorder %s46, %s60
    %p62 = scmp.eq.s32.totalorder %s15, 0
    %p63 = por %p61, %p62
    %s65 = sadd.s32 %s64, 1
    %p68 = scmp.eq.s32.totalorder %s9, 1
    %p69 = scmp.ne.s32.totalorder %s64, %s66
    %p70 = scmp.eq.s32.totalorder %s9, 0
    %p71 = por %p69, %p70
    %p72 = scmp.ne.s32.totalorder %s64, %s66
    %p73 = scmp.eq.s32.totalorder %s14, 1
    %p74 = por %p72, %p73
    %p75 = scmp.ne.s32.totalorder %s66, %s67
    %p76 = scmp.eq.s32.totalorder %s14, 0
    %p77 = por %p75, %p76
    %p78 = scmp.ne.s32.totalorder %s66, %s67
    %p79 = scmp.eq.s32.totalorder %s15, 1
    %p80 = por %p78, %p79
    %p82 = scmp.ne.s32.totalorder %s67, %s81
    %p83 = scmp.eq.s32.totalorder %s15, 0
    %p84 = por %p82, %p83
    %s85 = ssub.s32 %s9, %s16
    %p86 = scmp.eq.s32.totalorder %s85, 0
    %s88 = sadd.s32 %s87, 1
    %s89 = scalar_select %p86, %s87, %s88
    %p92 = pneg %p86
    %p93 = scmp.eq.s32.totalorder %s9, 1
    %p94 = por %p92, %p93
    %p95 = scmp.ne.s32.totalorder %s87, %s90
    %p96 = scmp.eq.s32.totalorder %s9, 0
    %p97 = por %p95, %p96
    %p98 = scmp.ne.s32.totalorder %s87, %s90
    %p99 = scmp.eq.s32.totalorder %s14, 1
    %p100 = por %p98, %p99
    %p101 = scmp.ne.s32.totalorder %s90, %s91
    %p102 = scmp.eq.s32.totalorder %s14, 0
    %p103 = por %p101, %p102
    %p104 = scmp.ne.s32.totalorder %s90, %s91
    %p105 = scmp.eq.s32.totalorder %s15, 1
    %p106 = por %p104, %p105
    %p108 = scmp.ne.s32.totalorder %s91, %s107
    %p109 = scmp.eq.s32.totalorder %s15, 0
    %p110 = por %p108, %p109
    %p111 = scmp.le.s32.totalorder 1, %s9
    %p112 = scmp.lt.s32.totalorder %s9, 3
    %p113 = pnand %p111, %p112
    %p114 = pneg %p113
    // Predicated region
    $region9: #{multiway_transformer_forward.24} parent=5 // pred_check
      _
    $region10: #{multiway_transformer_forward.24} parent=5 // pred_check_branch
      %116 = sbr.rel (%p113) target = $region12
    $region11: #{multiway_transformer_forward.24} parent=5 // pred_region
      %s117 = ssub.s32 %s9, 1
      // Predicated region
      $region13: #{multiway_transformer_forward.24} parent=11 // pred_check
        %p118 = pneg %p56
      $region14: #{multiway_transformer_forward.24} parent=11 // pred_check_branch
        %120 = sbr.rel (%p118) target = $region16
      $region15: #{multiway_transformer_forward.24} parent=11 // pred_region
        _
      $region16: #{multiway_transformer_forward.24} parent=11 // pred_fallthru
        _
      // Predicated region
      $region17: #{multiway_transformer_forward.24} parent=11 // pred_check
        %p121 = pneg %p77
      $region18: #{multiway_transformer_forward.24} parent=11 // pred_check_branch
        %123 = sbr.rel (%p121) target = $region20
      $region19: #{multiway_transformer_forward.24} parent=11 // pred_region
        _
      $region20: #{multiway_transformer_forward.24} parent=11 // pred_fallthru
        _
    $region12: #{multiway_transformer_forward.24} parent=5 // pred_fallthru
      _
    %p124 = scmp.lt.s32.totalorder %s9, 2
    // Predicated region
    $region21: #{multiway_transformer_forward.24} parent=5 // pred_check
      %p125 = pneg %p124
    $region22: #{multiway_transformer_forward.24} parent=5 // pred_check_branch
      %127 = sbr.rel (%p125) target = $region24
    $region23: #{multiway_transformer_forward.24} parent=5 // pred_region
      // Predicated region
      $region25: #{multiway_transformer_forward.24} parent=23 // pred_check
        %p128 = pneg %p29
      $region26: #{multiway_transformer_forward.24} parent=23 // pred_check_branch
        %130 = sbr.rel (%p128) target = $region28
      $region27: #{multiway_transformer_forward.24} parent=23 // pred_region
        %p131 = scmp.lt.s32.totalorder %s9, 1
        %s132 = scalar_select %p131, %s9, 1
        %s133 = smul.addr %s132, 8
        %s134 = scalar_lea.vmem %s0, %s133
      $region28: #{multiway_transformer_forward.24} parent=23 // pred_fallthru
        _
    $region24: #{multiway_transformer_forward.24} parent=5 // pred_fallthru
      _
    %p135 = scmp.le.s32.totalorder 1, %s9
    %p136 = scmp.lt.s32.totalorder %s9, 3
    %p137 = pnand %p135, %p136
    %p138 = pneg %p137
    // Predicated region
    $region29: #{multiway_transformer_forward.24} parent=5 // pred_check
      _
    $region30: #{multiway_transformer_forward.24} parent=5 // pred_check_branch
      %140 = sbr.rel (%p137) target = $region32
    $region31: #{multiway_transformer_forward.24} parent=5 // pred_region
      %s141 = ssub.s32 %s9, 1
      %p142 = scmp.lt.s32.totalorder %s14, 1
      %s143 = scalar_select %p142, %s14, 1
      %s144 = smul.addr %s143, 8
      %s145 = scalar_lea.vmem %s0, %s144
      %p146 = pneg %p35
      %p147 = pneg %p32
      %p148 = pneg %p56
      %p149 = pneg %p53
      %p150 = pneg %p77
      %p151 = pneg %p74
      %p152 = pneg %p103
      %p153 = pneg %p100
      %p154 = scmp.lt.s32.totalorder %s14, 1
      %s155 = scalar_select %p154, %s14, 1
      %s156 = smul.addr %s155, 8
      %s157 = scalar_lea.vmem %s3, %s156
      %p158 = scmp.lt.s32.totalorder %s14, 1
      %s159 = scalar_select %p158, %s14, 1
      %s160 = smul.addr %s159, 8
      %s161 = scalar_lea.vmem %s0, %s160
      %p162 = scmp.lt.s32.totalorder %s14, 1
      %s163 = scalar_select %p162, %s14, 1
      %s164 = smul.addr %s163, 8
      %s165 = scalar_lea.vmem %s3, %s164
      %v166 = vld [vmem:[%s161] sm:$0x1f]
      %v167 = vld [vmem:[%s1] sm:$0x1f]
      %v168 = vadd.f32 %v166, %v167
      %v169 = vld [vmem:[%s2] sm:$0x1]
      %v171 = vlaneseq
      %v172 = vshrl.u32 %v171, 7
      %v173 = vsub.s32 0, %v172
      %v174 = vrot.slane %v169, %v173
      %v176 = vadd.f32 %v168, %v174
      %vm177 = vcmask 258048
      %178 = vst.msk [vmem:[%s165] sm:$0x1f] %vm177, %v176
      %p179 = scmp.lt.s32.totalorder %s14, 1
      %s180 = scalar_select %p179, %s14, 1
      %s181 = smul.addr %s180, 8
      %s182 = scalar_lea.vmem %s3, %s181
      // Predicated region
      $region33: #{multiway_transformer_forward.24} parent=31 // pred_check
        %p183 = pneg %p100
      $region34: #{multiway_transformer_forward.24} parent=31 // pred_check_branch
        %185 = sbr.rel (%p183) target = $region36
      $region35: #{multiway_transformer_forward.24} parent=31 // pred_region
        _
      $region36: #{multiway_transformer_forward.24} parent=31 // pred_fallthru
        _
    $region32: #{multiway_transformer_forward.24} parent=5 // pred_fallthru
      _
    %p186 = scmp.le.s32.totalorder 2, %s9
    // Predicated region
    $region37: #{multiway_transformer_forward.24} parent=5 // pred_check
      %p187 = pneg %p186
    $region38: #{multiway_transformer_forward.24} parent=5 // pred_check_branch
      %189 = sbr.rel (%p187) target = $region40
    $region39: #{multiway_transformer_forward.24} parent=5 // pred_region
      %s190 = ssub.s32 %s9, 2
      // Predicated region
      $region41: #{multiway_transformer_forward.24} parent=39 // pred_check
        %p191 = pneg %p106
      $region42: #{multiway_transformer_forward.24} parent=39 // pred_check_branch
        %193 = sbr.rel (%p191) target = $region44
      $region43: #{multiway_transformer_forward.24} parent=39 // pred_region
        %p194 = scmp.lt.s32.totalorder %s15, 1
        %s195 = scalar_select %p194, %s15, 1
        %s196 = smul.addr %s195, 8
        %s197 = scalar_lea.vmem %s3, %s196
      $region44: #{multiway_transformer_forward.24} parent=39 // pred_fallthru
        _
    $region40: #{multiway_transformer_forward.24} parent=5 // pred_fallthru
      _
  $region6: #{multiway_transformer_forward.24} parent=0 // loop_footer
    %s13 = sadd.s32 1, %s9
  $region7: #{multiway_transformer_forward.24} parent=0 // loop_footer_branch
    %8 = sbr.rel target = $region3
  $region8: #{multiway_transformer_forward.24} parent=0 // loop_exit
    _

// kernel: multiway_transformer_forward.25
$region0: #{multiway_transformer_forward.25}
  #allocation0 [shape = 'u32[]', space=smem, size = 0x4, offset = 0x4, fixed_abs, tag = 'smem constant byte address 0x4 - core index']
  #allocation1 [shape = 'u32[144,128]{1,0:T(1,128)}', space=vmem, size = 0x12000, scoped, tag = 'internal scratch']
  %s0 = inlined_call_operand.vmem [shape: f32[16,32], index: 0, kind: input, shape index: {}]
  %s1 = inlined_call_operand.vmem [shape: f32[1,32], index: 1, kind: input, shape index: {}]
  %s2 = inlined_call_operand.vmem [shape: f32[1,32], index: 2, kind: input, shape index: {}]
  %s3 = inlined_call_operand.vmem [shape: f32[16,32], index: 3, kind: output, shape index: {}]
  %s4 = sld [smem:[#allocation0]]
  $region22: #{multiway_transformer_forward.25} parent=0
    _
  %s6 = ssub.s32 1, %s4
  %s7 = scalar_select 0, %s6, %s4
  // Predicated region
  $region2: #{multiway_transformer_forward.25} parent=0 // pred_check
    _
  $region3: #{multiway_transformer_forward.25} parent=0 // pred_check_branch
    %9 = sbr.rel (0) target = $region5
  $region4: #{multiway_transformer_forward.25} parent=0 // pred_region
    _
  $region5: #{multiway_transformer_forward.25} parent=0 // pred_fallthru
    _
  // Predicated region
  $region6: #{multiway_transformer_forward.25} parent=0 // pred_check
    _
  $region7: #{multiway_transformer_forward.25} parent=0 // pred_check_branch
    %11 = sbr.rel (0) target = $region9
  $region8: #{multiway_transformer_forward.25} parent=0 // pred_region
    _
  $region9: #{multiway_transformer_forward.25} parent=0 // pred_fallthru
    _
  // Predicated region
  $region10: #{multiway_transformer_forward.25} parent=0 // pred_check
    _
  $region11: #{multiway_transformer_forward.25} parent=0 // pred_check_branch
    %13 = sbr.rel (0) target = $region13
  $region12: #{multiway_transformer_forward.25} parent=0 // pred_region
    _
  $region13: #{multiway_transformer_forward.25} parent=0 // pred_fallthru
    _
  %v14 = vld [vmem:[%s0] sm:$0xff]
  %v15 = vld [vmem:[%s0 + $0x8] sm:$0xff]
  %vm16 = vcmask 261120
  %v17 = vsel %vm16, %v14, 0.0
  %18 = vadd.xlane.f32.xlu0 %v17
  %v19 = vpop.xlane.xlu0 %18
  %v20 = vsel %vm16, %v15, 0.0
  %21 = vadd.xlane.f32.xlu0 %v20
  %v22 = vpop.xlane.xlu0 %21
  %v23 = vrcp.pop 32.0
  %v24 = vmul.f32 %v19, %v23
  %v25 = vmul.f32 %v22, %v23
  %v26 = vsub.f32 %v14, %v24
  %v27 = vsub.f32 %v15, %v25
  %v28 = vmul.f32 %v26, %v26
  %v29 = vmul.f32 %v27, %v27
  %v30 = vsel %vm16, %v28, 0.0
  %31 = vadd.xlane.f32.xlu0 %v30
  %v32 = vpop.xlane.xlu0 %31
  %v33 = vsel %vm16, %v29, 0.0
  %34 = vadd.xlane.f32.xlu0 %v33
  %v35 = vpop.xlane.xlu0 %34
  %v36 = vmul.f32 %v32, %v23
  %v37 = vmul.f32 %v35, %v23
  %v38 = vadd.f32 %v36, 1e-05
  %v39 = vadd.f32 %v37, 1e-05
  %v40 = vrsqrt.pop %v38
  %v41 = vrsqrt.pop %v39
  %v42 = vmul.f32 %v26, %v40
  %v43 = vmul.f32 %v27, %v41
  %v44 = vld [vmem:[%s1] sm:$0x1]
  %v46 = vlaneseq
  %v47 = vshrl.u32 %v46, 7
  %v48 = vsub.s32 0, %v47
  %v49 = vrot.slane %v44, %v48
  %v51 = vmul.f32 %v42, %v49
  %v52 = vmul.f32 %v43, %v49
  %v53 = vld [vmem:[%s2] sm:$0x1]
  %v55 = vlaneseq
  %v56 = vshrl.u32 %v55, 7
  %v57 = vsub.s32 0, %v56
  %v58 = vrot.slane %v53, %v57
  %v60 = vadd.f32 %v51, %v58
  %v61 = vadd.f32 %v52, %v58
  %62 = vst.msk [vmem:[%s3] sm:$0xff] %vm16, %v60
  %63 = vst.msk [vmem:[%s3 + $0x8] sm:$0xff] %vm16, %v61
  // Predicated region
  $region14: #{multiway_transformer_forward.25} parent=0 // pred_check
    _
  $region15: #{multiway_transformer_forward.25} parent=0 // pred_check_branch
    %65 = sbr.rel (0) target = $region17
  $region16: #{multiway_transformer_forward.25} parent=0 // pred_region
    _
  $region17: #{multiway_transformer_forward.25} parent=0 // pred_fallthru
    _
  // Predicated region
  $region18: #{multiway_transformer_forward.25} parent=0 // pred_check
    _
  $region19: #{multiway_transformer_forward.25} parent=0 // pred_check_branch
    %67 = sbr.rel (0) target = $region21
  $region20: #{multiway_transformer_forward.25} parent=0 // pred_region
    _
  $region21: #{multiway_transformer_forward.25} parent=0 // pred_fallthru
    _

// kernel: multiway_transformer_forward.29
$region0: #{multiway_transformer_forward.29}
  #allocation0 [shape = 'u32[]', space=smem, size = 0x4, offset = 0x4, fixed_abs, tag = 'smem constant byte address 0x4 - core index']
  #allocation1 [shape = 'u32[144,128]{1,0:T(1,128)}', space=vmem, size = 0x12000, scoped, tag = 'internal scratch']
  #allocation2 [shape = 'f32[16,128]{1,0:T(8,128)}', space=vmem, size = 0x2000, scoped, tag = 'scratch operand']
  %s0 = inlined_call_operand.vmem [shape: f32[16,128], index: 0, kind: input, shape index: {}]
  %s1 = inlined_call_operand.vmem [shape: f32[128,128], index: 1, kind: input, shape index: {}]
  %s2 = inlined_call_operand.vmem [shape: f32[1,128], index: 2, kind: input, shape index: {}]
  %s3 = inlined_call_operand.vmem [shape: f32[16,128], index: 3, kind: output, shape index: {}]
  %s4 = sld [smem:[#allocation0]]
  $region30: #{multiway_transformer_forward.29} parent=0
    _
  %s6 = ssub.s32 1, %s4
  %s7 = scalar_select 0, %s6, %s4
  // Predicated region
  $region2: #{multiway_transformer_forward.29} parent=0 // pred_check
    _
  $region3: #{multiway_transformer_forward.29} parent=0 // pred_check_branch
    %9 = sbr.rel (0) target = $region5
  $region4: #{multiway_transformer_forward.29} parent=0 // pred_region
    _
  $region5: #{multiway_transformer_forward.29} parent=0 // pred_fallthru
    _
  // Predicated region
  $region6: #{multiway_transformer_forward.29} parent=0 // pred_check
    _
  $region7: #{multiway_transformer_forward.29} parent=0 // pred_check_branch
    %11 = sbr.rel (0) target = $region9
  $region8: #{multiway_transformer_forward.29} parent=0 // pred_region
    _
  $region9: #{multiway_transformer_forward.29} parent=0 // pred_fallthru
    _
  // Predicated region
  $region10: #{multiway_transformer_forward.29} parent=0 // pred_check
    _
  $region11: #{multiway_transformer_forward.29} parent=0 // pred_check_branch
    %13 = sbr.rel (0) target = $region13
  $region12: #{multiway_transformer_forward.29} parent=0 // pred_region
    _
  $region13: #{multiway_transformer_forward.29} parent=0 // pred_fallthru
    _
  %p14 = scmp.eq.s32.totalorder 0, 0
  // Predicated region
  $region14: #{multiway_transformer_forward.29} parent=0 // pred_check
    %p15 = pneg %p14
  $region15: #{multiway_transformer_forward.29} parent=0 // pred_check_branch
    %17 = sbr.rel (%p15) target = $region17
  $region16: #{multiway_transformer_forward.29} parent=0 // pred_region
    %18 = vst [vmem:[#allocation2] sm:$0xff] 0.0
    %19 = vst [vmem:[#allocation2 + $0x8] sm:$0xff] 0.0
  $region17: #{multiway_transformer_forward.29} parent=0 // pred_fallthru
    _
  %v20 = vld [vmem:[#allocation2] sm:$0xff]
  %v21 = vld [vmem:[#allocation2 + $0x8] sm:$0xff]
  %v22 = vld [vmem:[%s0] sm:$0xff]
  %v23 = vld [vmem:[%s0 + $0x8] sm:$0xff]
  %v24 = vld [vmem:[%s1] sm:$0xff]
  %v25 = vld [vmem:[%s1 + $0x8] sm:$0xff]
  %v26 = vld [vmem:[%s1 + $0x10] sm:$0xff]
  %v27 = vld [vmem:[%s1 + $0x18] sm:$0xff]
  %v28 = vld [vmem:[%s1 + $0x20] sm:$0xff]
  %v29 = vld [vmem:[%s1 + $0x28] sm:$0xff]
  %v30 = vld [vmem:[%s1 + $0x30] sm:$0xff]
  %v31 = vld [vmem:[%s1 + $0x38] sm:$0xff]
  %v32 = vld [vmem:[%s1 + $0x40] sm:$0xff]
  %v33 = vld [vmem:[%s1 + $0x48] sm:$0xff]
  %v34 = vld [vmem:[%s1 + $0x50] sm:$0xff]
  %v35 = vld [vmem:[%s1 + $0x58] sm:$0xff]
  %v36 = vld [vmem:[%s1 + $0x60] sm:$0xff]
  %v37 = vld [vmem:[%s1 + $0x68] sm:$0xff]
  %v38 = vld [vmem:[%s1 + $0x70] sm:$0xff]
  %v39 = vld [vmem:[%s1 + $0x78] sm:$0xff]
  %40 = vmatprep.subr.mxu0 0.0
  %41 = vmatpush1.msra.mxu0 %v24
  %42 = vmatprep.subr.mxu0 0.0
  %43 = vmatpush1.msra.mxu0 %v25
  %44 = vmatprep.subr.mxu0 0.0
  %45 = vmatpush1.msra.mxu0 %v26
  %46 = vmatprep.subr.mxu0 0.0
  %47 = vmatpush1.msra.mxu0 %v27
  %48 = vmatprep.subr.mxu0 0.0
  %49 = vmatpush1.msra.mxu0 %v28
  %50 = vmatprep.subr.mxu0 0.0
  %51 = vmatpush1.msra.mxu0 %v29
  %52 = vmatprep.subr.mxu0 0.0
  %53 = vmatpush1.msra.mxu0 %v30
  %54 = vmatprep.subr.mxu0 0.0
  %55 = vmatpush1.msra.mxu0 %v31
  %56 = vmatprep.subr.mxu0 0.0
  %57 = vmatpush1.msra.mxu0 %v32
  %58 = vmatprep.subr.mxu0 0.0
  %59 = vmatpush1.msra.mxu0 %v33
  %60 = vmatprep.subr.mxu0 0.0
  %61 = vmatpush1.msra.mxu0 %v34
  %62 = vmatprep.subr.mxu0 0.0
  %63 = vmatpush1.msra.mxu0 %v35
  %64 = vmatprep.subr.mxu0 0.0
  %65 = vmatpush1.msra.mxu0 %v36
  %66 = vmatprep.subr.mxu0 0.0
  %67 = vmatpush1.msra.mxu0 %v37
  %68 = vmatprep.subr.mxu0 0.0
  %69 = vmatpush1.msra.mxu0 %v38
  %70 = vmatprep.subr.mxu0 0.0
  %71 = vmatpush1.msra.mxu0 %v39
  %72 = vmatprep.subr.mxu0 0.0
  %73 = vmatpush1.msra.mxu0 0.0
  %74 = vmatprep.subr.mxu0 0.0
  %75 = vmatpush1.msra.mxu0 0.0
  %76 = vmatprep.subr.mxu0 0.0
  %77 = vmatpush1.msra.mxu0 0.0
  %78 = vmatprep.subr.mxu0 0.0
  %79 = vmatpush1.msra.mxu0 0.0
  %80 = vmatprep.subr.mxu0 0.0
  %81 = vmatpush1.msra.mxu0 0.0
  %82 = vmatprep.subr.mxu0 0.0
  %83 = vmatpush1.msra.mxu0 0.0
  %84 = vmatprep.subr.mxu0 0.0
  %85 = vmatpush1.msra.mxu0 0.0
  %86 = vmatprep.subr.mxu0 0.0
  %87 = vmatpush1.msra.mxu0 0.0
  %88 = vmatprep.subr.mxu0 0.0
  %89 = vmatpush1.msra.mxu0 0.0
  %90 = vmatprep.subr.mxu0 0.0
  %91 = vmatpush1.msra.mxu0 0.0
  %92 = vmatprep.subr.mxu0 0.0
  %93 = vmatpush1.msra.mxu0 0.0
  %94 = vmatprep.subr.mxu0 0.0
  %95 = vmatpush1.msra.mxu0 0.0
  %96 = vmatprep.subr.mxu0 0.0
  %97 = vmatpush1.msra.mxu0 0.0
  %98 = vmatprep.subr.mxu0 0.0
  %99 = vmatpush1.msra.mxu0 0.0
  %100 = vmatprep.subr.mxu0 0.0
  %101 = vmatpush1.msra.mxu0 0.0
  %102 = vmatprep.subr.mxu0 0.0
  %103 = vmatpush1.msra.mxu0 0.0
  %104 = vmatprep.mubr.f32.mxu0 0.0
  %105 = vmatmul.mubr.f32.gmra.mrb[0].mxu0 %v22
  %v106 = vpop.f32.mrb[0].mxu0
  %v107 = vadd.f32 0.0, %v106
  %v108 = vpop.f32.mrb[0].mxu0
  %109 = vmatprep.mubr.f32.mxu0 0.0
  %110 = vmatmul.mubr.f32.gmra.mrb[0].mxu0 %v23
  %v111 = vpop.f32.mrb[0].mxu0
  %v112 = vadd.f32 0.0, %v111
  %v113 = vpop.f32.mrb[0].mxu0
  %114 = vdwg.mxu0
  %v115 = vadd.f32 %v20, %v107
  %v116 = vadd.f32 %v21, %v112
  %117 = vst [vmem:[#allocation2] sm:$0xff] %v115
  %118 = vst [vmem:[#allocation2 + $0x8] sm:$0xff] %v116
  // Predicated region
  $region18: #{multiway_transformer_forward.29} parent=0 // pred_check
    %p119 = pneg %p14
  $region19: #{multiway_transformer_forward.29} parent=0 // pred_check_branch
    %121 = sbr.rel (%p119) target = $region21
  $region20: #{multiway_transformer_forward.29} parent=0 // pred_region
    %v122 = vld [vmem:[#allocation2] sm:$0xff]
    %v123 = vld [vmem:[#allocation2 + $0x8] sm:$0xff]
    %v124 = vld [vmem:[%s2] sm:$0x1]
    %v126 = vlaneseq
    %v127 = vshrl.u32 %v126, 7
    %v128 = vsub.s32 0, %v127
    %v129 = vrot.slane %v124, %v128
    %v131 = vadd.f32 %v122, %v129
    %v132 = vadd.f32 %v123, %v129
    %133 = vst [vmem:[%s3] sm:$0xff] %v131
    %134 = vst [vmem:[%s3 + $0x8] sm:$0xff] %v132
  $region21: #{multiway_transformer_forward.29} parent=0 // pred_fallthru
    _
  // Predicated region
  $region22: #{multiway_transformer_forward.29} parent=0 // pred_check
    _
  $region23: #{multiway_transformer_forward.29} parent=0 // pred_check_branch
    %136 = sbr.rel (0) target = $region25
  $region24: #{multiway_transformer_forward.29} parent=0 // pred_region
    _
  $region25: #{multiway_transformer_forward.29} parent=0 // pred_fallthru
    _
  // Predicated region
  $region26: #{multiway_transformer_forward.29} parent=0 // pred_check
    _
  $region27: #{multiway_transformer_forward.29} parent=0 // pred_check_branch
    %138 = sbr.rel (0) target = $region29
  $region28: #{multiway_transformer_forward.29} parent=0 // pred_region
    _
  $region29: #{multiway_transformer_forward.29} parent=0 // pred_fallthru
    _

// kernel: multiway_transformer_forward.23
$region0: #{multiway_transformer_forward.23}
  #allocation0 [shape = 'u32[]', space=smem, size = 0x4, offset = 0x4, fixed_abs, tag = 'smem constant byte address 0x4 - core index']
  #allocation1 [shape = 'u32[144,128]{1,0:T(1,128)}', space=vmem, size = 0x12000, scoped, tag = 'internal scratch']
  #allocation2 [shape = 'f32[8,128]{1,0:T(8,128)}', space=vmem, size = 0x1000, scoped, tag = 'scratch operand']
  %s0 = inlined_call_operand.vmem [shape: f32[8,256], index: 0, kind: input, shape index: {}]
  %s1 = inlined_call_operand.vmem [shape: f32[256,128], index: 1, kind: input, shape index: {}]
  %s2 = inlined_call_operand.vmem [shape: f32[1,128], index: 2, kind: input, shape index: {}]
  %s3 = inlined_call_operand.vmem [shape: f32[8,128], index: 3, kind: output, shape index: {}]
  %s4 = sld [smem:[#allocation0]]
  $region30: #{multiway_transformer_forward.23} parent=0
    _
  %s6 = ssub.s32 1, %s4
  %s7 = scalar_select 0, %s6, %s4
  // Predicated region
  $region2: #{multiway_transformer_forward.23} parent=0 // pred_check
    _
  $region3: #{multiway_transformer_forward.23} parent=0 // pred_check_branch
    %9 = sbr.rel (0) target = $region5
  $region4: #{multiway_transformer_forward.23} parent=0 // pred_region
    _
  $region5: #{multiway_transformer_forward.23} parent=0 // pred_fallthru
    _
  // Predicated region
  $region6: #{multiway_transformer_forward.23} parent=0 // pred_check
    _
  $region7: #{multiway_transformer_forward.23} parent=0 // pred_check_branch
    %11 = sbr.rel (0) target = $region9
  $region8: #{multiway_transformer_forward.23} parent=0 // pred_region
    _
  $region9: #{multiway_transformer_forward.23} parent=0 // pred_fallthru
    _
  // Predicated region
  $region10: #{multiway_transformer_forward.23} parent=0 // pred_check
    _
  $region11: #{multiway_transformer_forward.23} parent=0 // pred_check_branch
    %13 = sbr.rel (0) target = $region13
  $region12: #{multiway_transformer_forward.23} parent=0 // pred_region
    _
  $region13: #{multiway_transformer_forward.23} parent=0 // pred_fallthru
    _
  %p14 = scmp.eq.s32.totalorder 0, 0
  // Predicated region
  $region14: #{multiway_transformer_forward.23} parent=0 // pred_check
    %p15 = pneg %p14
  $region15: #{multiway_transformer_forward.23} parent=0 // pred_check_branch
    %17 = sbr.rel (%p15) target = $region17
  $region16: #{multiway_transformer_forward.23} parent=0 // pred_region
    %18 = vst [vmem:[#allocation2] sm:$0xff] 0.0
  $region17: #{multiway_transformer_forward.23} parent=0 // pred_fallthru
    _
  %v19 = vld [vmem:[#allocation2] sm:$0xff]
  %v20 = vld [vmem:[%s0] sm:$0xff]
  %v21 = vld [vmem:[%s0 + $0x8] sm:$0xff]
  %v22 = vld [vmem:[%s1] sm:$0xff]
  %v23 = vld [vmem:[%s1 + $0x8] sm:$0xff]
  %v24 = vld [vmem:[%s1 + $0x10] sm:$0xff]
  %v25 = vld [vmem:[%s1 + $0x18] sm:$0xff]
  %v26 = vld [vmem:[%s1 + $0x20] sm:$0xff]
  %v27 = vld [vmem:[%s1 + $0x28] sm:$0xff]
  %v28 = vld [vmem:[%s1 + $0x30] sm:$0xff]
  %v29 = vld [vmem:[%s1 + $0x38] sm:$0xff]
  %v30 = vld [vmem:[%s1 + $0x40] sm:$0xff]
  %v31 = vld [vmem:[%s1 + $0x48] sm:$0xff]
  %v32 = vld [vmem:[%s1 + $0x50] sm:$0xff]
  %v33 = vld [vmem:[%s1 + $0x58] sm:$0xff]
  %v34 = vld [vmem:[%s1 + $0x60] sm:$0xff]
  %v35 = vld [vmem:[%s1 + $0x68] sm:$0xff]
  %v36 = vld [vmem:[%s1 + $0x70] sm:$0xff]
  %v37 = vld [vmem:[%s1 + $0x78] sm:$0xff]
  %v38 = vld [vmem:[%s1 + $0x80] sm:$0xff]
  %v39 = vld [vmem:[%s1 + $0x88] sm:$0xff]
  %v40 = vld [vmem:[%s1 + $0x90] sm:$0xff]
  %v41 = vld [vmem:[%s1 + $0x98] sm:$0xff]
  %v42 = vld [vmem:[%s1 + $0xa0] sm:$0xff]
  %v43 = vld [vmem:[%s1 + $0xa8] sm:$0xff]
  %v44 = vld [vmem:[%s1 + $0xb0] sm:$0xff]
  %v45 = vld [vmem:[%s1 + $0xb8] sm:$0xff]
  %v46 = vld [vmem:[%s1 + $0xc0] sm:$0xff]
  %v47 = vld [vmem:[%s1 + $0xc8] sm:$0xff]
  %v48 = vld [vmem:[%s1 + $0xd0] sm:$0xff]
  %v49 = vld [vmem:[%s1 + $0xd8] sm:$0xff]
  %v50 = vld [vmem:[%s1 + $0xe0] sm:$0xff]
  %v51 = vld [vmem:[%s1 + $0xe8] sm:$0xff]
  %v52 = vld [vmem:[%s1 + $0xf0] sm:$0xff]
  %v53 = vld [vmem:[%s1 + $0xf8] sm:$0xff]
  %54 = vmatprep.subr.mxu0 0.0
  %55 = vmatpush1.msra.mxu0 %v22
  %56 = vmatprep.subr.mxu0 0.0
  %57 = vmatpush1.msra.mxu0 %v23
  %58 = vmatprep.subr.mxu0 0.0
  %59 = vmatpush1.msra.mxu0 %v24
  %60 = vmatprep.subr.mxu0 0.0
  %61 = vmatpush1.msra.mxu0 %v25
  %62 = vmatprep.subr.mxu0 0.0
  %63 = vmatpush1.msra.mxu0 %v26
  %64 = vmatprep.subr.mxu0 0.0
  %65 = vmatpush1.msra.mxu0 %v27
  %66 = vmatprep.subr.mxu0 0.0
  %67 = vmatpush1.msra.mxu0 %v28
  %68 = vmatprep.subr.mxu0 0.0
  %69 = vmatpush1.msra.mxu0 %v29
  %70 = vmatprep.subr.mxu0 0.0
  %71 = vmatpush1.msra.mxu0 %v30
  %72 = vmatprep.subr.mxu0 0.0
  %73 = vmatpush1.msra.mxu0 %v31
  %74 = vmatprep.subr.mxu0 0.0
  %75 = vmatpush1.msra.mxu0 %v32
  %76 = vmatprep.subr.mxu0 0.0
  %77 = vmatpush1.msra.mxu0 %v33
  %78 = vmatprep.subr.mxu0 0.0
  %79 = vmatpush1.msra.mxu0 %v34
  %80 = vmatprep.subr.mxu0 0.0
  %81 = vmatpush1.msra.mxu0 %v35
  %82 = vmatprep.subr.mxu0 0.0
  %83 = vmatpush1.msra.mxu0 %v36
  %84 = vmatprep.subr.mxu0 0.0
  %85 = vmatpush1.msra.mxu0 %v37
  %86 = vmatprep.subr.mxu0 0.0
  %87 = vmatpush1.msra.mxu0 %v38
  %88 = vmatprep.subr.mxu0 0.0
  %89 = vmatpush1.msra.mxu0 %v39
  %90 = vmatprep.subr.mxu0 0.0
  %91 = vmatpush1.msra.mxu0 %v40
  %92 = vmatprep.subr.mxu0 0.0
  %93 = vmatpush1.msra.mxu0 %v41
  %94 = vmatprep.subr.mxu0 0.0
  %95 = vmatpush1.msra.mxu0 %v42
  %96 = vmatprep.subr.mxu0 0.0
  %97 = vmatpush1.msra.mxu0 %v43
  %98 = vmatprep.subr.mxu0 0.0
  %99 = vmatpush1.msra.mxu0 %v44
  %100 = vmatprep.subr.mxu0 0.0
  %101 = vmatpush1.msra.mxu0 %v45
  %102 = vmatprep.subr.mxu0 0.0
  %103 = vmatpush1.msra.mxu0 %v46
  %104 = vmatprep.subr.mxu0 0.0
  %105 = vmatpush1.msra.mxu0 %v47
  %106 = vmatprep.subr.mxu0 0.0
  %107 = vmatpush1.msra.mxu0 %v48
  %108 = vmatprep.subr.mxu0 0.0
  %109 = vmatpush1.msra.mxu0 %v49
  %110 = vmatprep.subr.mxu0 0.0
  %111 = vmatpush1.msra.mxu0 %v50
  %112 = vmatprep.subr.mxu0 0.0
  %113 = vmatpush1.msra.mxu0 %v51
  %114 = vmatprep.subr.mxu0 0.0
  %115 = vmatpush1.msra.mxu0 %v52
  %116 = vmatprep.subr.mxu0 0.0
  %117 = vmatpush1.msra.mxu0 %v53
  %118 = vmatprep.mubr.f32.mxu0 %v21
  %119 = vmatmul.mubr.f32.gmra.mrb[0].mxu0 %v20
  %v120 = vpop.f32.mrb[0].mxu0
  %v121 = vadd.f32 0.0, %v120
  %v122 = vpop.f32.mrb[0].mxu0
  %123 = vdwg.mxu0
  %v124 = vadd.f32 %v19, %v121
  %125 = vst [vmem:[#allocation2] sm:$0xff] %v124
  // Predicated region
  $region18: #{multiway_transformer_forward.23} parent=0 // pred_check
    %p126 = pneg %p14
  $region19: #{multiway_transformer_forward.23} parent=0 // pred_check_branch
    %128 = sbr.rel (%p126) target = $region21
  $region20: #{multiway_transformer_forward.23} parent=0 // pred_region
    %v129 = vld [vmem:[#allocation2] sm:$0xff]
    %v130 = vld [vmem:[%s2] sm:$0x1]
    %v132 = vlaneseq
    %v133 = vshrl.u32 %v132, 7
    %v134 = vsub.s32 0, %v133
    %v135 = vrot.slane %v130, %v134
    %v137 = vadd.f32 %v129, %v135
    %138 = vst [vmem:[%s3] sm:$0xff] %v137
  $region21: #{multiway_transformer_forward.23} parent=0 // pred_fallthru
    _
  // Predicated region
  $region22: #{multiway_transformer_forward.23} parent=0 // pred_check
    _
  $region23: #{multiway_transformer_forward.23} parent=0 // pred_check_branch
    %140 = sbr.rel (0) target = $region25
  $region24: #{multiway_transformer_forward.23} parent=0 // pred_region
    _
  $region25: #{multiway_transformer_forward.23} parent=0 // pred_fallthru
    _
  // Predicated region
  $region26: #{multiway_transformer_forward.23} parent=0 // pred_check
    _
  $region27: #{multiway_transformer_forward.23} parent=0 // pred_check_branch
    %142 = sbr.rel (0) target = $region29
  $region28: #{multiway_transformer_forward.23} parent=0 // pred_region
    _
  $region29: #{multiway_transformer_forward.23} parent=0 // pred_fallthru
    _

// kernel: multiway_transformer_forward.27
$region0: #{multiway_transformer_forward.27}
  #allocation0 [shape = 'u32[]', space=smem, size = 0x4, offset = 0x4, fixed_abs, tag = 'smem constant byte address 0x4 - core index']
  #allocation1 [shape = 'u32[144,128]{1,0:T(1,128)}', space=vmem, size = 0x12000, scoped, tag = 'internal scratch']
  #allocation2 [shape = 'f32[16,128]{1,0:T(8,128)}', space=vmem, size = 0x2000, scoped, tag = 'scratch operand']
  %s0 = inlined_call_operand.vmem [shape: f32[16,128], index: 0, kind: input, shape index: {}]
  %s1 = inlined_call_operand.vmem [shape: f32[128,128], index: 1, kind: input, shape index: {}]
  %s2 = inlined_call_operand.vmem [shape: f32[1,128], index: 2, kind: input, shape index: {}]
  %s3 = inlined_call_operand.vmem [shape: f32[16,128], index: 3, kind: output, shape index: {}]
  %s4 = sld [smem:[#allocation0]]
  $region30: #{multiway_transformer_forward.27} parent=0
    _
  %s6 = ssub.s32 1, %s4
  %s7 = scalar_select 0, %s6, %s4
  // Predicated region
  $region2: #{multiway_transformer_forward.27} parent=0 // pred_check
    _
  $region3: #{multiway_transformer_forward.27} parent=0 // pred_check_branch
    %9 = sbr.rel (0) target = $region5
  $region4: #{multiway_transformer_forward.27} parent=0 // pred_region
    _
  $region5: #{multiway_transformer_forward.27} parent=0 // pred_fallthru
    _
  // Predicated region
  $region6: #{multiway_transformer_forward.27} parent=0 // pred_check
    _
  $region7: #{multiway_transformer_forward.27} parent=0 // pred_check_branch
    %11 = sbr.rel (0) target = $region9
  $region8: #{multiway_transformer_forward.27} parent=0 // pred_region
    _
  $region9: #{multiway_transformer_forward.27} parent=0 // pred_fallthru
    _
  // Predicated region
  $region10: #{multiway_transformer_forward.27} parent=0 // pred_check
    _
  $region11: #{multiway_transformer_forward.27} parent=0 // pred_check_branch
    %13 = sbr.rel (0) target = $region13
  $region12: #{multiway_transformer_forward.27} parent=0 // pred_region
    _
  $region13: #{multiway_transformer_forward.27} parent=0 // pred_fallthru
    _
  %p14 = scmp.eq.s32.totalorder 0, 0
  // Predicated region
  $region14: #{multiway_transformer_forward.27} parent=0 // pred_check
    %p15 = pneg %p14
  $region15: #{multiway_transformer_forward.27} parent=0 // pred_check_branch
    %17 = sbr.rel (%p15) target = $region17
  $region16: #{multiway_transformer_forward.27} parent=0 // pred_region
    %18 = vst [vmem:[#allocation2] sm:$0xff] 0.0
    %19 = vst [vmem:[#allocation2 + $0x8] sm:$0xff] 0.0
  $region17: #{multiway_transformer_forward.27} parent=0 // pred_fallthru
    _
  %v20 = vld [vmem:[#allocation2] sm:$0xff]
  %v21 = vld [vmem:[#allocation2 + $0x8] sm:$0xff]
  %v22 = vld [vmem:[%s0] sm:$0xff]
  %v23 = vld [vmem:[%s0 + $0x8] sm:$0xff]
  %v24 = vld [vmem:[%s1] sm:$0xff]
  %v25 = vld [vmem:[%s1 + $0x8] sm:$0xff]
  %v26 = vld [vmem:[%s1 + $0x10] sm:$0xff]
  %v27 = vld [vmem:[%s1 + $0x18] sm:$0xff]
  %v28 = vld [vmem:[%s1 + $0x20] sm:$0xff]
  %v29 = vld [vmem:[%s1 + $0x28] sm:$0xff]
  %v30 = vld [vmem:[%s1 + $0x30] sm:$0xff]
  %v31 = vld [vmem:[%s1 + $0x38] sm:$0xff]
  %v32 = vld [vmem:[%s1 + $0x40] sm:$0xff]
  %v33 = vld [vmem:[%s1 + $0x48] sm:$0xff]
  %v34 = vld [vmem:[%s1 + $0x50] sm:$0xff]
  %v35 = vld [vmem:[%s1 + $0x58] sm:$0xff]
  %v36 = vld [vmem:[%s1 + $0x60] sm:$0xff]
  %v37 = vld [vmem:[%s1 + $0x68] sm:$0xff]
  %v38 = vld [vmem:[%s1 + $0x70] sm:$0xff]
  %v39 = vld [vmem:[%s1 + $0x78] sm:$0xff]
  %40 = vmatprep.subr.mxu0 0.0
  %41 = vmatpush1.msra.mxu0 %v24
  %42 = vmatprep.subr.mxu0 0.0
  %43 = vmatpush1.msra.mxu0 %v25
  %44 = vmatprep.subr.mxu0 0.0
  %45 = vmatpush1.msra.mxu0 %v26
  %46 = vmatprep.subr.mxu0 0.0
  %47 = vmatpush1.msra.mxu0 %v27
  %48 = vmatprep.subr.mxu0 0.0
  %49 = vmatpush1.msra.mxu0 %v28
  %50 = vmatprep.subr.mxu0 0.0
  %51 = vmatpush1.msra.mxu0 %v29
  %52 = vmatprep.subr.mxu0 0.0
  %53 = vmatpush1.msra.mxu0 %v30
  %54 = vmatprep.subr.mxu0 0.0
  %55 = vmatpush1.msra.mxu0 %v31
  %56 = vmatprep.subr.mxu0 0.0
  %57 = vmatpush1.msra.mxu0 %v32
  %58 = vmatprep.subr.mxu0 0.0
  %59 = vmatpush1.msra.mxu0 %v33
  %60 = vmatprep.subr.mxu0 0.0
  %61 = vmatpush1.msra.mxu0 %v34
  %62 = vmatprep.subr.mxu0 0.0
  %63 = vmatpush1.msra.mxu0 %v35
  %64 = vmatprep.subr.mxu0 0.0
  %65 = vmatpush1.msra.mxu0 %v36
  %66 = vmatprep.subr.mxu0 0.0
  %67 = vmatpush1.msra.mxu0 %v37
  %68 = vmatprep.subr.mxu0 0.0
  %69 = vmatpush1.msra.mxu0 %v38
  %70 = vmatprep.subr.mxu0 0.0
  %71 = vmatpush1.msra.mxu0 %v39
  %72 = vmatprep.subr.mxu0 0.0
  %73 = vmatpush1.msra.mxu0 0.0
  %74 = vmatprep.subr.mxu0 0.0
  %75 = vmatpush1.msra.mxu0 0.0
  %76 = vmatprep.subr.mxu0 0.0
  %77 = vmatpush1.msra.mxu0 0.0
  %78 = vmatprep.subr.mxu0 0.0
  %79 = vmatpush1.msra.mxu0 0.0
  %80 = vmatprep.subr.mxu0 0.0
  %81 = vmatpush1.msra.mxu0 0.0
  %82 = vmatprep.subr.mxu0 0.0
  %83 = vmatpush1.msra.mxu0 0.0
  %84 = vmatprep.subr.mxu0 0.0
  %85 = vmatpush1.msra.mxu0 0.0
  %86 = vmatprep.subr.mxu0 0.0
  %87 = vmatpush1.msra.mxu0 0.0
  %88 = vmatprep.subr.mxu0 0.0
  %89 = vmatpush1.msra.mxu0 0.0
  %90 = vmatprep.subr.mxu0 0.0
  %91 = vmatpush1.msra.mxu0 0.0
  %92 = vmatprep.subr.mxu0 0.0
  %93 = vmatpush1.msra.mxu0 0.0
  %94 = vmatprep.subr.mxu0 0.0
  %95 = vmatpush1.msra.mxu0 0.0
  %96 = vmatprep.subr.mxu0 0.0
  %97 = vmatpush1.msra.mxu0 0.0
  %98 = vmatprep.subr.mxu0 0.0
  %99 = vmatpush1.msra.mxu0 0.0
  %100 = vmatprep.subr.mxu0 0.0
  %101 = vmatpush1.msra.mxu0 0.0
  %102 = vmatprep.subr.mxu0 0.0
  %103 = vmatpush1.msra.mxu0 0.0
  %104 = vmatprep.mubr.f32.mxu0 0.0
  %105 = vmatmul.mubr.f32.gmra.mrb[0].mxu0 %v22
  %v106 = vpop.f32.mrb[0].mxu0
  %v107 = vadd.f32 0.0, %v106
  %v108 = vpop.f32.mrb[0].mxu0
  %109 = vmatprep.mubr.f32.mxu0 0.0
  %110 = vmatmul.mubr.f32.gmra.mrb[0].mxu0 %v23
  %v111 = vpop.f32.mrb[0].mxu0
  %v112 = vadd.f32 0.0, %v111
  %v113 = vpop.f32.mrb[0].mxu0
  %114 = vdwg.mxu0
  %v115 = vadd.f32 %v20, %v107
  %v116 = vadd.f32 %v21, %v112
  %117 = vst [vmem:[#allocation2] sm:$0xff] %v115
  %118 = vst [vmem:[#allocation2 + $0x8] sm:$0xff] %v116
  // Predicated region
  $region18: #{multiway_transformer_forward.27} parent=0 // pred_check
    %p119 = pneg %p14
  $region19: #{multiway_transformer_forward.27} parent=0 // pred_check_branch
    %121 = sbr.rel (%p119) target = $region21
  $region20: #{multiway_transformer_forward.27} parent=0 // pred_region
    %v122 = vld [vmem:[#allocation2] sm:$0xff]
    %v123 = vld [vmem:[#allocation2 + $0x8] sm:$0xff]
    %v124 = vld [vmem:[%s2] sm:$0x1]
    %v126 = vlaneseq
    %v127 = vshrl.u32 %v126, 7
    %v128 = vsub.s32 0, %v127
    %v129 = vrot.slane %v124, %v128
    %v131 = vadd.f32 %v122, %v129
    %v132 = vadd.f32 %v123, %v129
    %v133 = vmax.f32 %v131, 0.0
    %v134 = vmax.f32 %v132, 0.0
    %135 = vst [vmem:[%s3] sm:$0xff] %v133
    %136 = vst [vmem:[%s3 + $0x8] sm:$0xff] %v134
  $region21: #{multiway_transformer_forward.27} parent=0 // pred_fallthru
    _
  // Predicated region
  $region22: #{multiway_transformer_forward.27} parent=0 // pred_check
    _
  $region23: #{multiway_transformer_forward.27} parent=0 // pred_check_branch
    %138 = sbr.rel (0) target = $region25
  $region24: #{multiway_transformer_forward.27} parent=0 // pred_region
    _
  $region25: #{multiway_transformer_forward.27} parent=0 // pred_fallthru
    _
  // Predicated region
  $region26: #{multiway_transformer_forward.27} parent=0 // pred_check
    _
  $region27: #{multiway_transformer_forward.27} parent=0 // pred_check_branch
    %140 = sbr.rel (0) target = $region29
  $region28: #{multiway_transformer_forward.27} parent=0 // pred_region
    _
  $region29: #{multiway_transformer_forward.27} parent=0 // pred_fallthru
    _

// kernel: multiway_transformer_forward.28
$region0: #{multiway_transformer_forward.28}
  #allocation0 [shape = 'u32[]', space=smem, size = 0x4, offset = 0x4, fixed_abs, tag = 'smem constant byte address 0x4 - core index']
  #allocation1 [shape = 'u32[144,128]{1,0:T(1,128)}', space=vmem, size = 0x12000, scoped, tag = 'internal scratch']
  #allocation2 [shape = 'f32[16,128]{1,0:T(8,128)}', space=vmem, size = 0x2000, scoped, tag = 'scratch operand']
  %s0 = inlined_call_operand.vmem [shape: f32[16,128], index: 0, kind: input, shape index: {}]
  %s1 = inlined_call_operand.vmem [shape: f32[128,128], index: 1, kind: input, shape index: {}]
  %s2 = inlined_call_operand.vmem [shape: f32[1,128], index: 2, kind: input, shape index: {}]
  %s3 = inlined_call_operand.vmem [shape: f32[16,128], index: 3, kind: input, shape index: {}]
  %s4 = inlined_call_operand.vmem [shape: f32[16,128], index: 4, kind: output, shape index: {}]
  %s5 = sld [smem:[#allocation0]]
  $region34: #{multiway_transformer_forward.28} parent=0
    _
  %s7 = ssub.s32 1, %s5
  %s8 = scalar_select 0, %s7, %s5
  // Predicated region
  $region2: #{multiway_transformer_forward.28} parent=0 // pred_check
    _
  $region3: #{multiway_transformer_forward.28} parent=0 // pred_check_branch
    %10 = sbr.rel (0) target = $region5
  $region4: #{multiway_transformer_forward.28} parent=0 // pred_region
    _
  $region5: #{multiway_transformer_forward.28} parent=0 // pred_fallthru
    _
  // Predicated region
  $region6: #{multiway_transformer_forward.28} parent=0 // pred_check
    _
  $region7: #{multiway_transformer_forward.28} parent=0 // pred_check_branch
    %12 = sbr.rel (0) target = $region9
  $region8: #{multiway_transformer_forward.28} parent=0 // pred_region
    _
  $region9: #{multiway_transformer_forward.28} parent=0 // pred_fallthru
    _
  // Predicated region
  $region10: #{multiway_transformer_forward.28} parent=0 // pred_check
    _
  $region11: #{multiway_transformer_forward.28} parent=0 // pred_check_branch
    %14 = sbr.rel (0) target = $region13
  $region12: #{multiway_transformer_forward.28} parent=0 // pred_region
    _
  $region13: #{multiway_transformer_forward.28} parent=0 // pred_fallthru
    _
  // Predicated region
  $region14: #{multiway_transformer_forward.28} parent=0 // pred_check
    _
  $region15: #{multiway_transformer_forward.28} parent=0 // pred_check_branch
    %16 = sbr.rel (0) target = $region17
  $region16: #{multiway_transformer_forward.28} parent=0 // pred_region
    _
  $region17: #{multiway_transformer_forward.28} parent=0 // pred_fallthru
    _
  %p17 = scmp.eq.s32.totalorder 0, 0
  // Predicated region
  $region18: #{multiway_transformer_forward.28} parent=0 // pred_check
    %p18 = pneg %p17
  $region19: #{multiway_transformer_forward.28} parent=0 // pred_check_branch
    %20 = sbr.rel (%p18) target = $region21
  $region20: #{multiway_transformer_forward.28} parent=0 // pred_region
    %21 = vst [vmem:[#allocation2] sm:$0xff] 0.0
    %22 = vst [vmem:[#allocation2 + $0x8] sm:$0xff] 0.0
  $region21: #{multiway_transformer_forward.28} parent=0 // pred_fallthru
    _
  %v23 = vld [vmem:[#allocation2] sm:$0xff]
  %v24 = vld [vmem:[#allocation2 + $0x8] sm:$0xff]
  %v25 = vld [vmem:[%s0] sm:$0xff]
  %v26 = vld [vmem:[%s0 + $0x8] sm:$0xff]
  %v27 = vld [vmem:[%s1] sm:$0xff]
  %v28 = vld [vmem:[%s1 + $0x8] sm:$0xff]
  %v29 = vld [vmem:[%s1 + $0x10] sm:$0xff]
  %v30 = vld [vmem:[%s1 + $0x18] sm:$0xff]
  %v31 = vld [vmem:[%s1 + $0x20] sm:$0xff]
  %v32 = vld [vmem:[%s1 + $0x28] sm:$0xff]
  %v33 = vld [vmem:[%s1 + $0x30] sm:$0xff]
  %v34 = vld [vmem:[%s1 + $0x38] sm:$0xff]
  %v35 = vld [vmem:[%s1 + $0x40] sm:$0xff]
  %v36 = vld [vmem:[%s1 + $0x48] sm:$0xff]
  %v37 = vld [vmem:[%s1 + $0x50] sm:$0xff]
  %v38 = vld [vmem:[%s1 + $0x58] sm:$0xff]
  %v39 = vld [vmem:[%s1 + $0x60] sm:$0xff]
  %v40 = vld [vmem:[%s1 + $0x68] sm:$0xff]
  %v41 = vld [vmem:[%s1 + $0x70] sm:$0xff]
  %v42 = vld [vmem:[%s1 + $0x78] sm:$0xff]
  %43 = vmatprep.subr.mxu0 0.0
  %44 = vmatpush1.msra.mxu0 %v27
  %45 = vmatprep.subr.mxu0 0.0
  %46 = vmatpush1.msra.mxu0 %v28
  %47 = vmatprep.subr.mxu0 0.0
  %48 = vmatpush1.msra.mxu0 %v29
  %49 = vmatprep.subr.mxu0 0.0
  %50 = vmatpush1.msra.mxu0 %v30
  %51 = vmatprep.subr.mxu0 0.0
  %52 = vmatpush1.msra.mxu0 %v31
  %53 = vmatprep.subr.mxu0 0.0
  %54 = vmatpush1.msra.mxu0 %v32
  %55 = vmatprep.subr.mxu0 0.0
  %56 = vmatpush1.msra.mxu0 %v33
  %57 = vmatprep.subr.mxu0 0.0
  %58 = vmatpush1.msra.mxu0 %v34
  %59 = vmatprep.subr.mxu0 0.0
  %60 = vmatpush1.msra.mxu0 %v35
  %61 = vmatprep.subr.mxu0 0.0
  %62 = vmatpush1.msra.mxu0 %v36
  %63 = vmatprep.subr.mxu0 0.0
  %64 = vmatpush1.msra.mxu0 %v37
  %65 = vmatprep.subr.mxu0 0.0
  %66 = vmatpush1.msra.mxu0 %v38
  %67 = vmatprep.subr.mxu0 0.0
  %68 = vmatpush1.msra.mxu0 %v39
  %69 = vmatprep.subr.mxu0 0.0
  %70 = vmatpush1.msra.mxu0 %v40
  %71 = vmatprep.subr.mxu0 0.0
  %72 = vmatpush1.msra.mxu0 %v41
  %73 = vmatprep.subr.mxu0 0.0
  %74 = vmatpush1.msra.mxu0 %v42
  %75 = vmatprep.subr.mxu0 0.0
  %76 = vmatpush1.msra.mxu0 0.0
  %77 = vmatprep.subr.mxu0 0.0
  %78 = vmatpush1.msra.mxu0 0.0
  %79 = vmatprep.subr.mxu0 0.0
  %80 = vmatpush1.msra.mxu0 0.0
  %81 = vmatprep.subr.mxu0 0.0
  %82 = vmatpush1.msra.mxu0 0.0
  %83 = vmatprep.subr.mxu0 0.0
  %84 = vmatpush1.msra.mxu0 0.0
  %85 = vmatprep.subr.mxu0 0.0
  %86 = vmatpush1.msra.mxu0 0.0
  %87 = vmatprep.subr.mxu0 0.0
  %88 = vmatpush1.msra.mxu0 0.0
  %89 = vmatprep.subr.mxu0 0.0
  %90 = vmatpush1.msra.mxu0 0.0
  %91 = vmatprep.subr.mxu0 0.0
  %92 = vmatpush1.msra.mxu0 0.0
  %93 = vmatprep.subr.mxu0 0.0
  %94 = vmatpush1.msra.mxu0 0.0
  %95 = vmatprep.subr.mxu0 0.0
  %96 = vmatpush1.msra.mxu0 0.0
  %97 = vmatprep.subr.mxu0 0.0
  %98 = vmatpush1.msra.mxu0 0.0
  %99 = vmatprep.subr.mxu0 0.0
  %100 = vmatpush1.msra.mxu0 0.0
  %101 = vmatprep.subr.mxu0 0.0
  %102 = vmatpush1.msra.mxu0 0.0
  %103 = vmatprep.subr.mxu0 0.0
  %104 = vmatpush1.msra.mxu0 0.0
  %105 = vmatprep.subr.mxu0 0.0
  %106 = vmatpush1.msra.mxu0 0.0
  %107 = vmatprep.mubr.f32.mxu0 0.0
  %108 = vmatmul.mubr.f32.gmra.mrb[0].mxu0 %v25
  %v109 = vpop.f32.mrb[0].mxu0
  %v110 = vadd.f32 0.0, %v109
  %v111 = vpop.f32.mrb[0].mxu0
  %112 = vmatprep.mubr.f32.mxu0 0.0
  %113 = vmatmul.mubr.f32.gmra.mrb[0].mxu0 %v26
  %v114 = vpop.f32.mrb[0].mxu0
  %v115 = vadd.f32 0.0, %v114
  %v116 = vpop.f32.mrb[0].mxu0
  %117 = vdwg.mxu0
  %v118 = vadd.f32 %v23, %v110
  %v119 = vadd.f32 %v24, %v115
  %120 = vst [vmem:[#allocation2] sm:$0xff] %v118
  %121 = vst [vmem:[#allocation2 + $0x8] sm:$0xff] %v119
  // Predicated region
  $region22: #{multiway_transformer_forward.28} parent=0 // pred_check
    %p122 = pneg %p17
  $region23: #{multiway_transformer_forward.28} parent=0 // pred_check_branch
    %124 = sbr.rel (%p122) target = $region25
  $region24: #{multiway_transformer_forward.28} parent=0 // pred_region
    %v125 = vld [vmem:[#allocation2] sm:$0xff]
    %v126 = vld [vmem:[#allocation2 + $0x8] sm:$0xff]
    %v127 = vld [vmem:[%s2] sm:$0x1]
    %v129 = vlaneseq
    %v130 = vshrl.u32 %v129, 7
    %v131 = vsub.s32 0, %v130
    %v132 = vrot.slane %v127, %v131
    %v134 = vadd.f32 %v125, %v132
    %v135 = vadd.f32 %v126, %v132
    %v136 = vld [vmem:[%s3] sm:$0xff]
    %v137 = vld [vmem:[%s3 + $0x8] sm:$0xff]
    %v138 = vadd.f32 %v134, %v136
    %v139 = vadd.f32 %v135, %v137
    %140 = vst [vmem:[%s4] sm:$0xff] %v138
    %141 = vst [vmem:[%s4 + $0x8] sm:$0xff] %v139
  $region25: #{multiway_transformer_forward.28} parent=0 // pred_fallthru
    _
  // Predicated region
  $region26: #{multiway_transformer_forward.28} parent=0 // pred_check
    _
  $region27: #{multiway_transformer_forward.28} parent=0 // pred_check_branch
    %143 = sbr.rel (0) target = $region29
  $region28: #{multiway_transformer_forward.28} parent=0 // pred_region
    _
  $region29: #{multiway_transformer_forward.28} parent=0 // pred_fallthru
    _
  // Predicated region
  $region30: #{multiway_transformer_forward.28} parent=0 // pred_check
    _
  $region31: #{multiway_transformer_forward.28} parent=0 // pred_check_branch
    %145 = sbr.rel (0) target = $region33
  $region32: #{multiway_transformer_forward.28} parent=0 // pred_region
    _
  $region33: #{multiway_transformer_forward.28} parent=0 // pred_fallthru
    _

// kernel: multiway_transformer_forward.33
$region0: #{multiway_transformer_forward.33}
  #allocation0 [shape = 'u32[]', space=smem, size = 0x4, offset = 0x4, fixed_abs, tag = 'smem constant byte address 0x4 - core index']
  #allocation1 [shape = 'u32[144,128]{1,0:T(1,128)}', space=vmem, size = 0x12000, scoped, tag = 'internal scratch']
  #allocation2 [shape = 'f32[16,128]{1,0:T(8,128)}', space=vmem, size = 0x2000, scoped, tag = 'scratch operand']
  %s0 = inlined_call_operand.vmem [shape: f32[16,128], index: 0, kind: input, shape index: {}]
  %s1 = inlined_call_operand.vmem [shape: f32[128,128], index: 1, kind: input, shape index: {}]
  %s2 = inlined_call_operand.vmem [shape: f32[1,128], index: 2, kind: input, shape index: {}]
  %s3 = inlined_call_operand.vmem [shape: f32[16,128], index: 3, kind: output, shape index: {}]
  %s4 = sld [smem:[#allocation0]]
  $region30: #{multiway_transformer_forward.33} parent=0
    _
  %s6 = ssub.s32 1, %s4
  %s7 = scalar_select 0, %s6, %s4
  // Predicated region
  $region2: #{multiway_transformer_forward.33} parent=0 // pred_check
    _
  $region3: #{multiway_transformer_forward.33} parent=0 // pred_check_branch
    %9 = sbr.rel (0) target = $region5
  $region4: #{multiway_transformer_forward.33} parent=0 // pred_region
    _
  $region5: #{multiway_transformer_forward.33} parent=0 // pred_fallthru
    _
  // Predicated region
  $region6: #{multiway_transformer_forward.33} parent=0 // pred_check
    _
  $region7: #{multiway_transformer_forward.33} parent=0 // pred_check_branch
    %11 = sbr.rel (0) target = $region9
  $region8: #{multiway_transformer_forward.33} parent=0 // pred_region
    _
  $region9: #{multiway_transformer_forward.33} parent=0 // pred_fallthru
    _
  // Predicated region
  $region10: #{multiway_transformer_forward.33} parent=0 // pred_check
    _
  $region11: #{multiway_transformer_forward.33} parent=0 // pred_check_branch
    %13 = sbr.rel (0) target = $region13
  $region12: #{multiway_transformer_forward.33} parent=0 // pred_region
    _
  $region13: #{multiway_transformer_forward.33} parent=0 // pred_fallthru
    _
  %p14 = scmp.eq.s32.totalorder 0, 0
  // Predicated region
  $region14: #{multiway_transformer_forward.33} parent=0 // pred_check
    %p15 = pneg %p14
  $region15: #{multiway_transformer_forward.33} parent=0 // pred_check_branch
    %17 = sbr.rel (%p15) target = $region17
  $region16: #{multiway_transformer_forward.33} parent=0 // pred_region
    %18 = vst [vmem:[#allocation2] sm:$0xff] 0.0
    %19 = vst [vmem:[#allocation2 + $0x8] sm:$0xff] 0.0
  $region17: #{multiway_transformer_forward.33} parent=0 // pred_fallthru
    _
  %v20 = vld [vmem:[#allocation2] sm:$0xff]
  %v21 = vld [vmem:[#allocation2 + $0x8] sm:$0xff]
  %v22 = vld [vmem:[%s0] sm:$0xff]
  %v23 = vld [vmem:[%s0 + $0x8] sm:$0xff]
  %v24 = vld [vmem:[%s1] sm:$0xff]
  %v25 = vld [vmem:[%s1 + $0x8] sm:$0xff]
  %v26 = vld [vmem:[%s1 + $0x10] sm:$0xff]
  %v27 = vld [vmem:[%s1 + $0x18] sm:$0xff]
  %v28 = vld [vmem:[%s1 + $0x20] sm:$0xff]
  %v29 = vld [vmem:[%s1 + $0x28] sm:$0xff]
  %v30 = vld [vmem:[%s1 + $0x30] sm:$0xff]
  %v31 = vld [vmem:[%s1 + $0x38] sm:$0xff]
  %v32 = vld [vmem:[%s1 + $0x40] sm:$0xff]
  %v33 = vld [vmem:[%s1 + $0x48] sm:$0xff]
  %v34 = vld [vmem:[%s1 + $0x50] sm:$0xff]
  %v35 = vld [vmem:[%s1 + $0x58] sm:$0xff]
  %v36 = vld [vmem:[%s1 + $0x60] sm:$0xff]
  %v37 = vld [vmem:[%s1 + $0x68] sm:$0xff]
  %v38 = vld [vmem:[%s1 + $0x70] sm:$0xff]
  %v39 = vld [vmem:[%s1 + $0x78] sm:$0xff]
  %40 = vmatprep.subr.mxu0 0.0
  %41 = vmatpush1.msra.mxu0 %v24
  %42 = vmatprep.subr.mxu0 0.0
  %43 = vmatpush1.msra.mxu0 %v25
  %44 = vmatprep.subr.mxu0 0.0
  %45 = vmatpush1.msra.mxu0 %v26
  %46 = vmatprep.subr.mxu0 0.0
  %47 = vmatpush1.msra.mxu0 %v27
  %48 = vmatprep.subr.mxu0 0.0
  %49 = vmatpush1.msra.mxu0 %v28
  %50 = vmatprep.subr.mxu0 0.0
  %51 = vmatpush1.msra.mxu0 %v29
  %52 = vmatprep.subr.mxu0 0.0
  %53 = vmatpush1.msra.mxu0 %v30
  %54 = vmatprep.subr.mxu0 0.0
  %55 = vmatpush1.msra.mxu0 %v31
  %56 = vmatprep.subr.mxu0 0.0
  %57 = vmatpush1.msra.mxu0 %v32
  %58 = vmatprep.subr.mxu0 0.0
  %59 = vmatpush1.msra.mxu0 %v33
  %60 = vmatprep.subr.mxu0 0.0
  %61 = vmatpush1.msra.mxu0 %v34
  %62 = vmatprep.subr.mxu0 0.0
  %63 = vmatpush1.msra.mxu0 %v35
  %64 = vmatprep.subr.mxu0 0.0
  %65 = vmatpush1.msra.mxu0 %v36
  %66 = vmatprep.subr.mxu0 0.0
  %67 = vmatpush1.msra.mxu0 %v37
  %68 = vmatprep.subr.mxu0 0.0
  %69 = vmatpush1.msra.mxu0 %v38
  %70 = vmatprep.subr.mxu0 0.0
  %71 = vmatpush1.msra.mxu0 %v39
  %72 = vmatprep.subr.mxu0 0.0
  %73 = vmatpush1.msra.mxu0 0.0
  %74 = vmatprep.subr.mxu0 0.0
  %75 = vmatpush1.msra.mxu0 0.0
  %76 = vmatprep.subr.mxu0 0.0
  %77 = vmatpush1.msra.mxu0 0.0
  %78 = vmatprep.subr.mxu0 0.0
  %79 = vmatpush1.msra.mxu0 0.0
  %80 = vmatprep.subr.mxu0 0.0
  %81 = vmatpush1.msra.mxu0 0.0
  %82 = vmatprep.subr.mxu0 0.0
  %83 = vmatpush1.msra.mxu0 0.0
  %84 = vmatprep.subr.mxu0 0.0
  %85 = vmatpush1.msra.mxu0 0.0
  %86 = vmatprep.subr.mxu0 0.0
  %87 = vmatpush1.msra.mxu0 0.0
  %88 = vmatprep.subr.mxu0 0.0
  %89 = vmatpush1.msra.mxu0 0.0
  %90 = vmatprep.subr.mxu0 0.0
  %91 = vmatpush1.msra.mxu0 0.0
  %92 = vmatprep.subr.mxu0 0.0
  %93 = vmatpush1.msra.mxu0 0.0
  %94 = vmatprep.subr.mxu0 0.0
  %95 = vmatpush1.msra.mxu0 0.0
  %96 = vmatprep.subr.mxu0 0.0
  %97 = vmatpush1.msra.mxu0 0.0
  %98 = vmatprep.subr.mxu0 0.0
  %99 = vmatpush1.msra.mxu0 0.0
  %100 = vmatprep.subr.mxu0 0.0
  %101 = vmatpush1.msra.mxu0 0.0
  %102 = vmatprep.subr.mxu0 0.0
  %103 = vmatpush1.msra.mxu0 0.0
  %104 = vmatprep.mubr.f32.mxu0 0.0
  %105 = vmatmul.mubr.f32.gmra.mrb[0].mxu0 %v22
  %v106 = vpop.f32.mrb[0].mxu0
  %v107 = vadd.f32 0.0, %v106
  %v108 = vpop.f32.mrb[0].mxu0
  %109 = vmatprep.mubr.f32.mxu0 0.0
  %110 = vmatmul.mubr.f32.gmra.mrb[0].mxu0 %v23
  %v111 = vpop.f32.mrb[0].mxu0
  %v112 = vadd.f32 0.0, %v111
  %v113 = vpop.f32.mrb[0].mxu0
  %114 = vdwg.mxu0
  %v115 = vadd.f32 %v20, %v107
  %v116 = vadd.f32 %v21, %v112
  %117 = vst [vmem:[#allocation2] sm:$0xff] %v115
  %118 = vst [vmem:[#allocation2 + $0x8] sm:$0xff] %v116
  // Predicated region
  $region18: #{multiway_transformer_forward.33} parent=0 // pred_check
    %p119 = pneg %p14
  $region19: #{multiway_transformer_forward.33} parent=0 // pred_check_branch
    %121 = sbr.rel (%p119) target = $region21
  $region20: #{multiway_transformer_forward.33} parent=0 // pred_region
    %v122 = vld [vmem:[#allocation2] sm:$0xff]
    %v123 = vld [vmem:[#allocation2 + $0x8] sm:$0xff]
    %v124 = vld [vmem:[%s2] sm:$0x1]
    %v126 = vlaneseq
    %v127 = vshrl.u32 %v126, 7
    %v128 = vsub.s32 0, %v127
    %v129 = vrot.slane %v124, %v128
    %v131 = vadd.f32 %v122, %v129
    %v132 = vadd.f32 %v123, %v129
    %v133 = vmul.f32 %v131, 1.702
    %v134 = vmul.f32 %v132, 1.702
    %v135 = vxor.u32 %v133, 2147483648
    %v136 = vxor.u32 %v134, 2147483648
    %v137 = vmul.f32 %v135, 1.442695
    %v138 = vpow.pop %v137
    %v139 = vmul.f32 %v136, 1.442695
    %v140 = vpow.pop %v139
    %v141 = vadd.f32 %v138, 1.0
    %v142 = vadd.f32 %v140, 1.0
    %v143 = vrcp.pop %v141
    %v144 = vmul.f32 1.0, %v143
    %v145 = vrcp.pop %v142
    %v146 = vmul.f32 1.0, %v145
    %v147 = vmul.f32 %v131, %v144
    %v148 = vmul.f32 %v132, %v146
    %149 = vst [vmem:[%s3] sm:$0xff] %v147
    %150 = vst [vmem:[%s3 + $0x8] sm:$0xff] %v148
  $region21: #{multiway_transformer_forward.33} parent=0 // pred_fallthru
    _
  // Predicated region
  $region22: #{multiway_transformer_forward.33} parent=0 // pred_check
    _
  $region23: #{multiway_transformer_forward.33} parent=0 // pred_check_branch
    %152 = sbr.rel (0) target = $region25
  $region24: #{multiway_transformer_forward.33} parent=0 // pred_region
    _
  $region25: #{multiway_transformer_forward.33} parent=0 // pred_fallthru
    _
  // Predicated region
  $region26: #{multiway_transformer_forward.33} parent=0 // pred_check
    _
  $region27: #{multiway_transformer_forward.33} parent=0 // pred_check_branch
    %154 = sbr.rel (0) target = $region29
  $region28: #{multiway_transformer_forward.33} parent=0 // pred_region
    _
  $region29: #{multiway_transformer_forward.33} parent=0 // pred_fallthru
    _

// kernel: multiway_transformer_forward.30
$region0: #{multiway_transformer_forward.30}
  #allocation0 [shape = 'u32[]', space=smem, size = 0x4, offset = 0x4, fixed_abs, tag = 'smem constant byte address 0x4 - core index']
  #allocation1 [shape = 'u32[144,128]{1,0:T(1,128)}', space=vmem, size = 0x12000, scoped, tag = 'internal scratch']
  %s0 = inlined_call_operand.vmem [shape: f32[2,5,32], index: 0, kind: input, shape index: {}]
  %s1 = inlined_call_operand.vmem [shape: f32[2,5,32], index: 1, kind: input, shape index: {}]
  %s2 = inlined_call_operand.vmem [shape: f32[2,5,32], index: 2, kind: input, shape index: {}]
  %s3 = inlined_call_operand.vmem [shape: f32[2,5,32], index: 3, kind: output, shape index: {}]
  %s4 = sld [smem:[#allocation0]]
  $region45: #{multiway_transformer_forward.30} parent=0
    _
  %s6 = ssub.s32 1, %s4
  %s7 = scalar_select 0, %s6, %s4
  loop: start=0, step=1, limit=4
  $region2: #{multiway_transformer_forward.30} parent=0 // loop_pre_header
    _
  $region3: #{multiway_transformer_forward.30} parent=0 // loop_header
    %s9 = sphi 0, %s13
    %p10 = scmp.ge.s32.totalorder %s9, 4
    %s19 = sphi 0, %s21
    %s22 = sphi 0, %s19
    %s23 = sphi 0, %s22
    %s39 = sphi 0, %s23
    %s45 = sphi 0, %s47
    %s48 = sphi 0, %s45
    %s49 = sphi 0, %s48
    %s65 = sphi 0, %s49
    %s71 = sphi 0, %s73
    %s74 = sphi 0, %s71
    %s75 = sphi 0, %s74
    %s91 = sphi 0, %s75
    %s97 = sphi 0, %s99
    %s100 = sphi 0, %s97
    %s101 = sphi 0, %s100
    %s117 = sphi 0, %s101
  $region4: #{multiway_transformer_forward.30} parent=0 // loop_header_branch
    %12 = sbr.rel (%p10) target = $region8
  $region5: #{multiway_transformer_forward.30} parent=0 // loop_body
    %s14 = ssub.s32 %s9, 1
    %s15 = ssub.s32 %s9, 2
    %s16 = sadd.s32 %s9, 1
    %s17 = ssub.s32 %s9, %s16
    %p18 = scmp.eq.s32.totalorder %s17, 0
    %s20 = sadd.s32 %s19, 1
    %s21 = scalar_select %p18, %s19, %s20
    %p24 = pneg %p18
    %p25 = scmp.eq.s32.totalorder %s9, 1
    %p26 = por %p24, %p25
    %p27 = scmp.ne.s32.totalorder %s19, %s22
    %p28 = scmp.eq.s32.totalorder %s9, 0
    %p29 = por %p27, %p28
    %p30 = scmp.ne.s32.totalorder %s19, %s22
    %p31 = scmp.eq.s32.totalorder %s14, 1
    %p32 = por %p30, %p31
    %p33 = scmp.ne.s32.totalorder %s22, %s23
    %p34 = scmp.eq.s32.totalorder %s14, 0
    %p35 = por %p33, %p34
    %p36 = scmp.ne.s32.totalorder %s22, %s23
    %p37 = scmp.eq.s32.totalorder %s15, 1
    %p38 = por %p36, %p37
    %p40 = scmp.ne.s32.totalorder %s23, %s39
    %p41 = scmp.eq.s32.totalorder %s15, 0
    %p42 = por %p40, %p41
    %s43 = ssub.s32 %s9, %s16
    %p44 = scmp.eq.s32.totalorder %s43, 0
    %s46 = sadd.s32 %s45, 1
    %s47 = scalar_select %p44, %s45, %s46
    %p50 = pneg %p44
    %p51 = scmp.eq.s32.totalorder %s9, 1
    %p52 = por %p50, %p51
    %p53 = scmp.ne.s32.totalorder %s45, %s48
    %p54 = scmp.eq.s32.totalorder %s9, 0
    %p55 = por %p53, %p54
    %p56 = scmp.ne.s32.totalorder %s45, %s48
    %p57 = scmp.eq.s32.totalorder %s14, 1
    %p58 = por %p56, %p57
    %p59 = scmp.ne.s32.totalorder %s48, %s49
    %p60 = scmp.eq.s32.totalorder %s14, 0
    %p61 = por %p59, %p60
    %p62 = scmp.ne.s32.totalorder %s48, %s49
    %p63 = scmp.eq.s32.totalorder %s15, 1
    %p64 = por %p62, %p63
    %p66 = scmp.ne.s32.totalorder %s49, %s65
    %p67 = scmp.eq.s32.totalorder %s15, 0
    %p68 = por %p66, %p67
    %s69 = ssub.s32 %s9, %s16
    %p70 = scmp.eq.s32.totalorder %s69, 0
    %s72 = sadd.s32 %s71, 1
    %s73 = scalar_select %p70, %s71, %s72
    %p76 = pneg %p70
    %p77 = scmp.eq.s32.totalorder %s9, 1
    %p78 = por %p76, %p77
    %p79 = scmp.ne.s32.totalorder %s71, %s74
    %p80 = scmp.eq.s32.totalorder %s9, 0
    %p81 = por %p79, %p80
    %p82 = scmp.ne.s32.totalorder %s71, %s74
    %p83 = scmp.eq.s32.totalorder %s14, 1
    %p84 = por %p82, %p83
    %p85 = scmp.ne.s32.totalorder %s74, %s75
    %p86 = scmp.eq.s32.totalorder %s14, 0
    %p87 = por %p85, %p86
    %p88 = scmp.ne.s32.totalorder %s74, %s75
    %p89 = scmp.eq.s32.totalorder %s15, 1
    %p90 = por %p88, %p89
    %p92 = scmp.ne.s32.totalorder %s75, %s91
    %p93 = scmp.eq.s32.totalorder %s15, 0
    %p94 = por %p92, %p93
    %s95 = ssub.s32 %s9, %s16
    %p96 = scmp.eq.s32.totalorder %s95, 0
    %s98 = sadd.s32 %s97, 1
    %s99 = scalar_select %p96, %s97, %s98
    %p102 = pneg %p96
    %p103 = scmp.eq.s32.totalorder %s9, 1
    %p104 = por %p102, %p103
    %p105 = scmp.ne.s32.totalorder %s97, %s100
    %p106 = scmp.eq.s32.totalorder %s9, 0
    %p107 = por %p105, %p106
    %p108 = scmp.ne.s32.totalorder %s97, %s100
    %p109 = scmp.eq.s32.totalorder %s14, 1
    %p110 = por %p108, %p109
    %p111 = scmp.ne.s32.totalorder %s100, %s101
    %p112 = scmp.eq.s32.totalorder %s14, 0
    %p113 = por %p111, %p112
    %p114 = scmp.ne.s32.totalorder %s100, %s101
    %p115 = scmp.eq.s32.totalorder %s15, 1
    %p116 = por %p114, %p115
    %p118 = scmp.ne.s32.totalorder %s101, %s117
    %p119 = scmp.eq.s32.totalorder %s15, 0
    %p120 = por %p118, %p119
    %p121 = scmp.le.s32.totalorder 1, %s9
    %p122 = scmp.lt.s32.totalorder %s9, 3
    %p123 = pnand %p121, %p122
    %p124 = pneg %p123
    // Predicated region
    $region9: #{multiway_transformer_forward.30} parent=5 // pred_check
      _
    $region10: #{multiway_transformer_forward.30} parent=5 // pred_check_branch
      %126 = sbr.rel (%p123) target = $region12
    $region11: #{multiway_transformer_forward.30} parent=5 // pred_region
      %s127 = ssub.s32 %s9, 1
    $region12: #{multiway_transformer_forward.30} parent=5 // pred_fallthru
      _
    %p128 = scmp.lt.s32.totalorder %s9, 2
    // Predicated region
    $region13: #{multiway_transformer_forward.30} parent=5 // pred_check
      %p129 = pneg %p128
    $region14: #{multiway_transformer_forward.30} parent=5 // pred_check_branch
      %131 = sbr.rel (%p129) target = $region16
    $region15: #{multiway_transformer_forward.30} parent=5 // pred_region
      // Predicated region
      $region17: #{multiway_transformer_forward.30} parent=15 // pred_check
        %p132 = pneg %p29
      $region18: #{multiway_transformer_forward.30} parent=15 // pred_check_branch
        %134 = sbr.rel (%p132) target = $region20
      $region19: #{multiway_transformer_forward.30} parent=15 // pred_region
        %p135 = scmp.lt.s32.totalorder %s9, 1
        %s136 = scalar_select %p135, %s9, 1
        %s137 = smul.addr %s136, 8
        %s138 = scalar_lea.vmem %s0, %s137
      $region20: #{multiway_transformer_forward.30} parent=15 // pred_fallthru
        _
      // Predicated region
      $region21: #{multiway_transformer_forward.30} parent=15 // pred_check
        %p139 = pneg %p55
      $region22: #{multiway_transformer_forward.30} parent=15 // pred_check_branch
        %141 = sbr.rel (%p139) target = $region24
      $region23: #{multiway_transformer_forward.30} parent=15 // pred_region
        %p142 = scmp.lt.s32.totalorder %s9, 1
        %s143 = scalar_select %p142, %s9, 1
        %s144 = smul.addr %s143, 8
        %s145 = scalar_lea.vmem %s1, %s144
      $region24: #{multiway_transformer_forward.30} parent=15 // pred_fallthru
        _
      // Predicated region
      $region25: #{multiway_transformer_forward.30} parent=15 // pred_check
        %p146 = pneg %p81
      $region26: #{multiway_transformer_forward.30} parent=15 // pred_check_branch
        %148 = sbr.rel (%p146) target = $region28
      $region27: #{multiway_transformer_forward.30} parent=15 // pred_region
        %p149 = scmp.lt.s32.totalorder %s9, 1
        %s150 = scalar_select %p149, %s9, 1
        %s151 = smul.addr %s150, 8
        %s152 = scalar_lea.vmem %s2, %s151
      $region28: #{multiway_transformer_forward.30} parent=15 // pred_fallthru
        _
    $region16: #{multiway_transformer_forward.30} parent=5 // pred_fallthru
      _
    %p153 = scmp.le.s32.totalorder 1, %s9
    %p154 = scmp.lt.s32.totalorder %s9, 3
    %p155 = pnand %p153, %p154
    %p156 = pneg %p155
    // Predicated region
    $region29: #{multiway_transformer_forward.30} parent=5 // pred_check
      _
    $region30: #{multiway_transformer_forward.30} parent=5 // pred_check_branch
      %158 = sbr.rel (%p155) target = $region32
    $region31: #{multiway_transformer_forward.30} parent=5 // pred_region
      %s159 = ssub.s32 %s9, 1
      %p160 = scmp.lt.s32.totalorder %s14, 1
      %s161 = scalar_select %p160, %s14, 1
      %s162 = smul.addr %s161, 8
      %s163 = scalar_lea.vmem %s0, %s162
      %p164 = pneg %p35
      %p165 = pneg %p32
      %p166 = scmp.lt.s32.totalorder %s14, 1
      %s167 = scalar_select %p166, %s14, 1
      %s168 = smul.addr %s167, 8
      %s169 = scalar_lea.vmem %s1, %s168
      %p170 = pneg %p61
      %p171 = pneg %p58
      %p172 = scmp.lt.s32.totalorder %s14, 1
      %s173 = scalar_select %p172, %s14, 1
      %s174 = smul.addr %s173, 8
      %s175 = scalar_lea.vmem %s2, %s174
      %p176 = pneg %p87
      %p177 = pneg %p84
      %p178 = pneg %p113
      %p179 = pneg %p110
      %p180 = scmp.lt.s32.totalorder %s14, 1
      %s181 = scalar_select %p180, %s14, 1
      %s182 = smul.addr %s181, 8
      %s183 = scalar_lea.vmem %s3, %s182
      %p184 = scmp.lt.s32.totalorder %s14, 1
      %s185 = scalar_select %p184, %s14, 1
      %s186 = smul.addr %s185, 8
      %s187 = scalar_lea.vmem %s0, %s186
      %p188 = scmp.lt.s32.totalorder %s14, 1
      %s189 = scalar_select %p188, %s14, 1
      %s190 = smul.addr %s189, 8
      %s191 = scalar_lea.vmem %s1, %s190
      %p192 = scmp.lt.s32.totalorder %s14, 1
      %s193 = scalar_select %p192, %s14, 1
      %s194 = smul.addr %s193, 8
      %s195 = scalar_lea.vmem %s2, %s194
      %p196 = scmp.lt.s32.totalorder %s14, 1
      %s197 = scalar_select %p196, %s14, 1
      %s198 = smul.addr %s197, 8
      %s199 = scalar_lea.vmem %s3, %s198
      %v200 = vld [vmem:[%s187] sm:$0x1f]
      %v201 = vld [vmem:[%s191] sm:$0x1f]
      %v202 = vld [vmem:[%s195] sm:$0x1f]
      %v203 = vmul.f32 %v200, 0.35355338
      %vm204 = vcmask 64512
      %v206 = vsel %vm204, %v203, 0
      %v209 = vsel %vm204, %v201, 0
      %211 = vmatprep.subr.mxu0 0.0
      %212 = vmatpush1.xpose.msra.mxu0 %v209
      %213 = vmatprep.subr.mxu0 0.0
      %214 = vmatpush1.xpose.msra.mxu0 0.0
      %215 = vmatprep.subr.mxu0 0.0
      %216 = vmatpush1.xpose.msra.mxu0 0.0
      %217 = vmatprep.subr.mxu0 0.0
      %218 = vmatpush1.xpose.msra.mxu0 0.0
      %219 = vmatprep.subr.mxu0 0.0
      %220 = vmatpush1.xpose.msra.mxu0 0.0
      %221 = vmatprep.subr.mxu0 0.0
      %222 = vmatpush1.xpose.msra.mxu0 0.0
      %223 = vmatprep.subr.mxu0 0.0
      %224 = vmatpush1.xpose.msra.mxu0 0.0
      %225 = vmatprep.subr.mxu0 0.0
      %226 = vmatpush1.xpose.msra.mxu0 0.0
      %227 = vmatprep.subr.mxu0 0.0
      %228 = vmatpush1.xpose.msra.mxu0 0.0
      %229 = vmatprep.subr.mxu0 0.0
      %230 = vmatpush1.xpose.msra.mxu0 0.0
      %231 = vmatprep.subr.mxu0 0.0
      %232 = vmatpush1.xpose.msra.mxu0 0.0
      %233 = vmatprep.subr.mxu0 0.0
      %234 = vmatpush1.xpose.msra.mxu0 0.0
      %235 = vmatprep.subr.mxu0 0.0
      %236 = vmatpush1.xpose.msra.mxu0 0.0
      %237 = vmatprep.subr.mxu0 0.0
      %238 = vmatpush1.xpose.msra.mxu0 0.0
      %239 = vmatprep.subr.mxu0 0.0
      %240 = vmatpush1.xpose.msra.mxu0 0.0
      %241 = vmatprep.subr.mxu0 0.0
      %242 = vmatpush1.xpose.msra.mxu0 0.0
      %243 = vmatprep.subr.mxu0 0.0
      %244 = vmatpush1.xpose.msra.mxu0 0.0
      %245 = vmatprep.subr.mxu0 0.0
      %246 = vmatpush1.xpose.msra.mxu0 0.0
      %247 = vmatprep.subr.mxu0 0.0
      %248 = vmatpush1.xpose.msra.mxu0 0.0
      %249 = vmatprep.subr.mxu0 0.0
      %250 = vmatpush1.xpose.msra.mxu0 0.0
      %251 = vmatprep.subr.mxu0 0.0
      %252 = vmatpush1.xpose.msra.mxu0 0.0
      %253 = vmatprep.subr.mxu0 0.0
      %254 = vmatpush1.xpose.msra.mxu0 0.0
      %255 = vmatprep.subr.mxu0 0.0
      %256 = vmatpush1.xpose.msra.mxu0 0.0
      %257 = vmatprep.subr.mxu0 0.0
      %258 = vmatpush1.xpose.msra.mxu0 0.0
      %259 = vmatprep.subr.mxu0 0.0
      %260 = vmatpush1.xpose.msra.mxu0 0.0
      %261 = vmatprep.subr.mxu0 0.0
      %262 = vmatpush1.xpose.msra.mxu0 0.0
      %263 = vmatprep.subr.mxu0 0.0
      %264 = vmatpush1.xpose.msra.mxu0 0.0
      %265 = vmatprep.subr.mxu0 0.0
      %266 = vmatpush1.xpose.msra.mxu0 0.0
      %267 = vmatprep.subr.mxu0 0.0
      %268 = vmatpush1.xpose.msra.mxu0 0.0
      %269 = vmatprep.subr.mxu0 0.0
      %270 = vmatpush1.xpose.msra.mxu0 0.0
      %271 = vmatprep.subr.mxu0 0.0
      %272 = vmatpush1.xpose.msra.mxu0 0.0
      %273 = vmatprep.subr.mxu0 0.0
      %274 = vmatpush1.xpose.msra.mxu0 0.0
      %275 = vmatprep.mubr.f32.mxu0 0.0
      %276 = vmatmul.mubr.f32.gmra.mrb[0].mxu0 %v206
      %v277 = vpop.f32.mrb[0].mxu0
      %v278 = vadd.f32 0.0, %v277
      %v279 = vpop.f32.mrb[0].mxu0
      %280 = vdwg.mxu0
      %vm281 = vcmask 36864
      %v282 = vsel %vm281, %v278, -inf
      %283 = vmax.xlane.f32.xlu0 %v282
      %v284 = vpop.xlane.xlu0 %283
      %v285 = vsub.f32 %v278, %v284
      %v286 = vmul.f32 %v285, 1.442695
      %v287 = vpow.pop %v286
      %v288 = vsel %vm281, %v287, 0.0
      %289 = vadd.xlane.f32.xlu0 %v288
      %v290 = vpop.xlane.xlu0 %289
      %v291 = vrcp.pop %v290
      %v292 = vmul.f32 %v287, %v291
      %vm293 = vcmask 39936
      %v295 = vsel %vm293, %v292, 0
      %vm297 = vcmask 1044480
      %v299 = vsel %vm297, %v202, 0
      %301 = vmatprep.subr.mxu0 0.0
      %302 = vmatpush1.msra.mxu0 %v299
      %303 = vmatprep.subr.mxu0 0.0
      %304 = vmatpush1.msra.mxu0 0.0
      %305 = vmatprep.subr.mxu0 0.0
      %306 = vmatpush1.msra.mxu0 0.0
      %307 = vmatprep.subr.mxu0 0.0
      %308 = vmatpush1.msra.mxu0 0.0
      %309 = vmatprep.subr.mxu0 0.0
      %310 = vmatpush1.msra.mxu0 0.0
      %311 = vmatprep.subr.mxu0 0.0
      %312 = vmatpush1.msra.mxu0 0.0
      %313 = vmatprep.subr.mxu0 0.0
      %314 = vmatpush1.msra.mxu0 0.0
      %315 = vmatprep.subr.mxu0 0.0
      %316 = vmatpush1.msra.mxu0 0.0
      %317 = vmatprep.subr.mxu0 0.0
      %318 = vmatpush1.msra.mxu0 0.0
      %319 = vmatprep.subr.mxu0 0.0
      %320 = vmatpush1.msra.mxu0 0.0
      %321 = vmatprep.subr.mxu0 0.0
      %322 = vmatpush1.msra.mxu0 0.0
      %323 = vmatprep.subr.mxu0 0.0
      %324 = vmatpush1.msra.mxu0 0.0
      %325 = vmatprep.subr.mxu0 0.0
      %326 = vmatpush1.msra.mxu0 0.0
      %327 = vmatprep.subr.mxu0 0.0
      %328 = vmatpush1.msra.mxu0 0.0
      %329 = vmatprep.subr.mxu0 0.0
      %330 = vmatpush1.msra.mxu0 0.0
      %331 = vmatprep.subr.mxu0 0.0
      %332 = vmatpush1.msra.mxu0 0.0
      %333 = vmatprep.subr.mxu0 0.0
      %334 = vmatpush1.msra.mxu0 0.0
      %335 = vmatprep.subr.mxu0 0.0
      %336 = vmatpush1.msra.mxu0 0.0
      %337 = vmatprep.subr.mxu0 0.0
      %338 = vmatpush1.msra.mxu0 0.0
      %339 = vmatprep.subr.mxu0 0.0
      %340 = vmatpush1.msra.mxu0 0.0
      %341 = vmatprep.subr.mxu0 0.0
      %342 = vmatpush1.msra.mxu0 0.0
      %343 = vmatprep.subr.mxu0 0.0
      %344 = vmatpush1.msra.mxu0 0.0
      %345 = vmatprep.subr.mxu0 0.0
      %346 = vmatpush1.msra.mxu0 0.0
      %347 = vmatprep.subr.mxu0 0.0
      %348 = vmatpush1.msra.mxu0 0.0
      %349 = vmatprep.subr.mxu0 0.0
      %350 = vmatpush1.msra.mxu0 0.0
      %351 = vmatprep.subr.mxu0 0.0
      %352 = vmatpush1.msra.mxu0 0.0
      %353 = vmatprep.subr.mxu0 0.0
      %354 = vmatpush1.msra.mxu0 0.0
      %355 = vmatprep.subr.mxu0 0.0
      %356 = vmatpush1.msra.mxu0 0.0
      %357 = vmatprep.subr.mxu0 0.0
      %358 = vmatpush1.msra.mxu0 0.0
      %359 = vmatprep.subr.mxu0 0.0
      %360 = vmatpush1.msra.mxu0 0.0
      %361 = vmatprep.subr.mxu0 0.0
      %362 = vmatpush1.msra.mxu0 0.0
      %363 = vmatprep.subr.mxu0 0.0
      %364 = vmatpush1.msra.mxu0 0.0
      %365 = vmatprep.mubr.f32.mxu0 0.0
      %366 = vmatmul.mubr.f32.gmra.mrb[0].mxu0 %v295
      %v367 = vpop.f32.mrb[0].mxu0
      %v368 = vadd.f32 0.0, %v367
      %v369 = vpop.f32.mrb[0].mxu0
      %370 = vdwg.mxu0
      %371 = vrot.lane.b32.xlu0 %v203, 120
      %v372 = vpop.permute.xlu0 %371
      %373 = vrot.lane.b32.xlu0 %v201, 120
      %v374 = vpop.permute.xlu0 %373
      %v375 = vsel %vm204, %v372, 0
      %v377 = vsel %vm204, %v374, 0
      %379 = vmatprep.subr.mxu0 0.0
      %380 = vmatpush1.xpose.msra.mxu0 %v377
      %381 = vmatprep.subr.mxu0 0.0
      %382 = vmatpush1.xpose.msra.mxu0 0.0
      %383 = vmatprep.subr.mxu0 0.0
      %384 = vmatpush1.xpose.msra.mxu0 0.0
      %385 = vmatprep.subr.mxu0 0.0
      %386 = vmatpush1.xpose.msra.mxu0 0.0
      %387 = vmatprep.subr.mxu0 0.0
      %388 = vmatpush1.xpose.msra.mxu0 0.0
      %389 = vmatprep.subr.mxu0 0.0
      %390 = vmatpush1.xpose.msra.mxu0 0.0
      %391 = vmatprep.subr.mxu0 0.0
      %392 = vmatpush1.xpose.msra.mxu0 0.0
      %393 = vmatprep.subr.mxu0 0.0
      %394 = vmatpush1.xpose.msra.mxu0 0.0
      %395 = vmatprep.subr.mxu0 0.0
      %396 = vmatpush1.xpose.msra.mxu0 0.0
      %397 = vmatprep.subr.mxu0 0.0
      %398 = vmatpush1.xpose.msra.mxu0 0.0
      %399 = vmatprep.subr.mxu0 0.0
      %400 = vmatpush1.xpose.msra.mxu0 0.0
      %401 = vmatprep.subr.mxu0 0.0
      %402 = vmatpush1.xpose.msra.mxu0 0.0
      %403 = vmatprep.subr.mxu0 0.0
      %404 = vmatpush1.xpose.msra.mxu0 0.0
      %405 = vmatprep.subr.mxu0 0.0
      %406 = vmatpush1.xpose.msra.mxu0 0.0
      %407 = vmatprep.subr.mxu0 0.0
      %408 = vmatpush1.xpose.msra.mxu0 0.0
      %409 = vmatprep.subr.mxu0 0.0
      %410 = vmatpush1.xpose.msra.mxu0 0.0
      %411 = vmatprep.subr.mxu0 0.0
      %412 = vmatpush1.xpose.msra.mxu0 0.0
      %413 = vmatprep.subr.mxu0 0.0
      %414 = vmatpush1.xpose.msra.mxu0 0.0
      %415 = vmatprep.subr.mxu0 0.0
      %416 = vmatpush1.xpose.msra.mxu0 0.0
      %417 = vmatprep.subr.mxu0 0.0
      %418 = vmatpush1.xpose.msra.mxu0 0.0
      %419 = vmatprep.subr.mxu0 0.0
      %420 = vmatpush1.xpose.msra.mxu0 0.0
      %421 = vmatprep.subr.mxu0 0.0
      %422 = vmatpush1.xpose.msra.mxu0 0.0
      %423 = vmatprep.subr.mxu0 0.0
      %424 = vmatpush1.xpose.msra.mxu0 0.0
      %425 = vmatprep.subr.mxu0 0.0
      %426 = vmatpush1.xpose.msra.mxu0 0.0
      %427 = vmatprep.subr.mxu0 0.0
      %428 = vmatpush1.xpose.msra.mxu0 0.0
      %429 = vmatprep.subr.mxu0 0.0
      %430 = vmatpush1.xpose.msra.mxu0 0.0
      %431 = vmatprep.subr.mxu0 0.0
      %432 = vmatpush1.xpose.msra.mxu0 0.0
      %433 = vmatprep.subr.mxu0 0.0
      %434 = vmatpush1.xpose.msra.mxu0 0.0
      %435 = vmatprep.subr.mxu0 0.0
      %436 = vmatpush1.xpose.msra.mxu0 0.0
      %437 = vmatprep.subr.mxu0 0.0
      %438 = vmatpush1.xpose.msra.mxu0 0.0
      %439 = vmatprep.subr.mxu0 0.0
      %440 = vmatpush1.xpose.msra.mxu0 0.0
      %441 = vmatprep.subr.mxu0 0.0
      %442 = vmatpush1.xpose.msra.mxu0 0.0
      %443 = vmatprep.mubr.f32.mxu0 0.0
      %444 = vmatmul.mubr.f32.gmra.mrb[0].mxu0 %v375
      %v445 = vpop.f32.mrb[0].mxu0
      %v446 = vadd.f32 0.0, %v445
      %v447 = vpop.f32.mrb[0].mxu0
      %448 = vdwg.mxu0
      %v449 = vsel %vm281, %v446, -inf
      %450 = vmax.xlane.f32.xlu0 %v449
      %v451 = vpop.xlane.xlu0 %450
      %v452 = vsub.f32 %v446, %v451
      %v453 = vmul.f32 %v452, 1.442695
      %v454 = vpow.pop %v453
      %v455 = vsel %vm281, %v454, 0.0
      %456 = vadd.xlane.f32.xlu0 %v455
      %v457 = vpop.xlane.xlu0 %456
      %v458 = vrcp.pop %v457
      %v459 = vmul.f32 %v454, %v458
      %460 = vrot.lane.b32.xlu0 %v202, 120
      %v461 = vpop.permute.xlu0 %460
      %v463 = vsel %vm293, %v459, 0
      %v465 = vsel %vm297, %v461, 0
      %467 = vmatprep.subr.mxu0 0.0
      %468 = vmatpush1.msra.mxu0 %v465
      %469 = vmatprep.subr.mxu0 0.0
      %470 = vmatpush1.msra.mxu0 0.0
      %471 = vmatprep.subr.mxu0 0.0
      %472 = vmatpush1.msra.mxu0 0.0
      %473 = vmatprep.subr.mxu0 0.0
      %474 = vmatpush1.msra.mxu0 0.0
      %475 = vmatprep.subr.mxu0 0.0
      %476 = vmatpush1.msra.mxu0 0.0
      %477 = vmatprep.subr.mxu0 0.0
      %478 = vmatpush1.msra.mxu0 0.0
      %479 = vmatprep.subr.mxu0 0.0
      %480 = vmatpush1.msra.mxu0 0.0
      %481 = vmatprep.subr.mxu0 0.0
      %482 = vmatpush1.msra.mxu0 0.0
      %483 = vmatprep.subr.mxu0 0.0
      %484 = vmatpush1.msra.mxu0 0.0
      %485 = vmatprep.subr.mxu0 0.0
      %486 = vmatpush1.msra.mxu0 0.0
      %487 = vmatprep.subr.mxu0 0.0
      %488 = vmatpush1.msra.mxu0 0.0
      %489 = vmatprep.subr.mxu0 0.0
      %490 = vmatpush1.msra.mxu0 0.0
      %491 = vmatprep.subr.mxu0 0.0
      %492 = vmatpush1.msra.mxu0 0.0
      %493 = vmatprep.subr.mxu0 0.0
      %494 = vmatpush1.msra.mxu0 0.0
      %495 = vmatprep.subr.mxu0 0.0
      %496 = vmatpush1.msra.mxu0 0.0
      %497 = vmatprep.subr.mxu0 0.0
      %498 = vmatpush1.msra.mxu0 0.0
      %499 = vmatprep.subr.mxu0 0.0
      %500 = vmatpush1.msra.mxu0 0.0
      %501 = vmatprep.subr.mxu0 0.0
      %502 = vmatpush1.msra.mxu0 0.0
      %503 = vmatprep.subr.mxu0 0.0
      %504 = vmatpush1.msra.mxu0 0.0
      %505 = vmatprep.subr.mxu0 0.0
      %506 = vmatpush1.msra.mxu0 0.0
      %507 = vmatprep.subr.mxu0 0.0
      %508 = vmatpush1.msra.mxu0 0.0
      %509 = vmatprep.subr.mxu0 0.0
      %510 = vmatpush1.msra.mxu0 0.0
      %511 = vmatprep.subr.mxu0 0.0
      %512 = vmatpush1.msra.mxu0 0.0
      %513 = vmatprep.subr.mxu0 0.0
      %514 = vmatpush1.msra.mxu0 0.0
      %515 = vmatprep.subr.mxu0 0.0
      %516 = vmatpush1.msra.mxu0 0.0
      %517 = vmatprep.subr.mxu0 0.0
      %518 = vmatpush1.msra.mxu0 0.0
      %519 = vmatprep.subr.mxu0 0.0
      %520 = vmatpush1.msra.mxu0 0.0
      %521 = vmatprep.subr.mxu0 0.0
      %522 = vmatpush1.msra.mxu0 0.0
      %523 = vmatprep.subr.mxu0 0.0
      %524 = vmatpush1.msra.mxu0 0.0
      %525 = vmatprep.subr.mxu0 0.0
      %526 = vmatpush1.msra.mxu0 0.0
      %527 = vmatprep.subr.mxu0 0.0
      %528 = vmatpush1.msra.mxu0 0.0
      %529 = vmatprep.subr.mxu0 0.0
      %530 = vmatpush1.msra.mxu0 0.0
      %531 = vmatprep.mubr.f32.mxu0 0.0
      %532 = vmatmul.mubr.f32.gmra.mrb[0].mxu0 %v463
      %v533 = vpop.f32.mrb[0].mxu0
      %v534 = vadd.f32 0.0, %v533
      %v535 = vpop.f32.mrb[0].mxu0
      %536 = vdwg.mxu0
      %537 = vrot.lane.b32.xlu0 %v203, 112
      %v538 = vpop.permute.xlu0 %537
      %539 = vrot.lane.b32.xlu0 %v201, 112
      %v540 = vpop.permute.xlu0 %539
      %v541 = vsel %vm204, %v538, 0
      %v543 = vsel %vm204, %v540, 0
      %545 = vmatprep.subr.mxu0 0.0
      %546 = vmatpush1.xpose.msra.mxu0 %v543
      %547 = vmatprep.subr.mxu0 0.0
      %548 = vmatpush1.xpose.msra.mxu0 0.0
      %549 = vmatprep.subr.mxu0 0.0
      %550 = vmatpush1.xpose.msra.mxu0 0.0
      %551 = vmatprep.subr.mxu0 0.0
      %552 = vmatpush1.xpose.msra.mxu0 0.0
      %553 = vmatprep.subr.mxu0 0.0
      %554 = vmatpush1.xpose.msra.mxu0 0.0
      %555 = vmatprep.subr.mxu0 0.0
      %556 = vmatpush1.xpose.msra.mxu0 0.0
      %557 = vmatprep.subr.mxu0 0.0
      %558 = vmatpush1.xpose.msra.mxu0 0.0
      %559 = vmatprep.subr.mxu0 0.0
      %560 = vmatpush1.xpose.msra.mxu0 0.0
      %561 = vmatprep.subr.mxu0 0.0
      %562 = vmatpush1.xpose.msra.mxu0 0.0
      %563 = vmatprep.subr.mxu0 0.0
      %564 = vmatpush1.xpose.msra.mxu0 0.0
      %565 = vmatprep.subr.mxu0 0.0
      %566 = vmatpush1.xpose.msra.mxu0 0.0
      %567 = vmatprep.subr.mxu0 0.0
      %568 = vmatpush1.xpose.msra.mxu0 0.0
      %569 = vmatprep.subr.mxu0 0.0
      %570 = vmatpush1.xpose.msra.mxu0 0.0
      %571 = vmatprep.subr.mxu0 0.0
      %572 = vmatpush1.xpose.msra.mxu0 0.0
      %573 = vmatprep.subr.mxu0 0.0
      %574 = vmatpush1.xpose.msra.mxu0 0.0
      %575 = vmatprep.subr.mxu0 0.0
      %576 = vmatpush1.xpose.msra.mxu0 0.0
      %577 = vmatprep.subr.mxu0 0.0
      %578 = vmatpush1.xpose.msra.mxu0 0.0
      %579 = vmatprep.subr.mxu0 0.0
      %580 = vmatpush1.xpose.msra.mxu0 0.0
      %581 = vmatprep.subr.mxu0 0.0
      %582 = vmatpush1.xpose.msra.mxu0 0.0
      %583 = vmatprep.subr.mxu0 0.0
      %584 = vmatpush1.xpose.msra.mxu0 0.0
      %585 = vmatprep.subr.mxu0 0.0
      %586 = vmatpush1.xpose.msra.mxu0 0.0
      %587 = vmatprep.subr.mxu0 0.0
      %588 = vmatpush1.xpose.msra.mxu0 0.0
      %589 = vmatprep.subr.mxu0 0.0
      %590 = vmatpush1.xpose.msra.mxu0 0.0
      %591 = vmatprep.subr.mxu0 0.0
      %592 = vmatpush1.xpose.msra.mxu0 0.0
      %593 = vmatprep.subr.mxu0 0.0
      %594 = vmatpush1.xpose.msra.mxu0 0.0
      %595 = vmatprep.subr.mxu0 0.0
      %596 = vmatpush1.xpose.msra.mxu0 0.0
      %597 = vmatprep.subr.mxu0 0.0
      %598 = vmatpush1.xpose.msra.mxu0 0.0
      %599 = vmatprep.subr.mxu0 0.0
      %600 = vmatpush1.xpose.msra.mxu0 0.0
      %601 = vmatprep.subr.mxu0 0.0
      %602 = vmatpush1.xpose.msra.mxu0 0.0
      %603 = vmatprep.subr.mxu0 0.0
      %604 = vmatpush1.xpose.msra.mxu0 0.0
      %605 = vmatprep.subr.mxu0 0.0
      %606 = vmatpush1.xpose.msra.mxu0 0.0
      %607 = vmatprep.subr.mxu0 0.0
      %608 = vmatpush1.xpose.msra.mxu0 0.0
      %609 = vmatprep.mubr.f32.mxu0 0.0
      %610 = vmatmul.mubr.f32.gmra.mrb[0].mxu0 %v541
      %v611 = vpop.f32.mrb[0].mxu0
      %v612 = vadd.f32 0.0, %v611
      %v613 = vpop.f32.mrb[0].mxu0
      %614 = vdwg.mxu0
      %v615 = vsel %vm281, %v612, -inf
      %616 = vmax.xlane.f32.xlu0 %v615
      %v617 = vpop.xlane.xlu0 %616
      %v618 = vsub.f32 %v612, %v617
      %v619 = vmul.f32 %v618, 1.442695
      %v620 = vpow.pop %v619
      %v621 = vsel %vm281, %v620, 0.0
      %622 = vadd.xlane.f32.xlu0 %v621
      %v623 = vpop.xlane.xlu0 %622
      %v624 = vrcp.pop %v623
      %v625 = vmul.f32 %v620, %v624
      %626 = vrot.lane.b32.xlu0 %v202, 112
      %v627 = vpop.permute.xlu0 %626
      %v629 = vsel %vm293, %v625, 0
      %v631 = vsel %vm297, %v627, 0
      %633 = vmatprep.subr.mxu0 0.0
      %634 = vmatpush1.msra.mxu0 %v631
      %635 = vmatprep.subr.mxu0 0.0
      %636 = vmatpush1.msra.mxu0 0.0
      %637 = vmatprep.subr.mxu0 0.0
      %638 = vmatpush1.msra.mxu0 0.0
      %639 = vmatprep.subr.mxu0 0.0
      %640 = vmatpush1.msra.mxu0 0.0
      %641 = vmatprep.subr.mxu0 0.0
      %642 = vmatpush1.msra.mxu0 0.0
      %643 = vmatprep.subr.mxu0 0.0
      %644 = vmatpush1.msra.mxu0 0.0
      %645 = vmatprep.subr.mxu0 0.0
      %646 = vmatpush1.msra.mxu0 0.0
      %647 = vmatprep.subr.mxu0 0.0
      %648 = vmatpush1.msra.mxu0 0.0
      %649 = vmatprep.subr.mxu0 0.0
      %650 = vmatpush1.msra.mxu0 0.0
      %651 = vmatprep.subr.mxu0 0.0
      %652 = vmatpush1.msra.mxu0 0.0
      %653 = vmatprep.subr.mxu0 0.0
      %654 = vmatpush1.msra.mxu0 0.0
      %655 = vmatprep.subr.mxu0 0.0
      %656 = vmatpush1.msra.mxu0 0.0
      %657 = vmatprep.subr.mxu0 0.0
      %658 = vmatpush1.msra.mxu0 0.0
      %659 = vmatprep.subr.mxu0 0.0
      %660 = vmatpush1.msra.mxu0 0.0
      %661 = vmatprep.subr.mxu0 0.0
      %662 = vmatpush1.msra.mxu0 0.0
      %663 = vmatprep.subr.mxu0 0.0
      %664 = vmatpush1.msra.mxu0 0.0
      %665 = vmatprep.subr.mxu0 0.0
      %666 = vmatpush1.msra.mxu0 0.0
      %667 = vmatprep.subr.mxu0 0.0
      %668 = vmatpush1.msra.mxu0 0.0
      %669 = vmatprep.subr.mxu0 0.0
      %670 = vmatpush1.msra.mxu0 0.0
      %671 = vmatprep.subr.mxu0 0.0
      %672 = vmatpush1.msra.mxu0 0.0
      %673 = vmatprep.subr.mxu0 0.0
      %674 = vmatpush1.msra.mxu0 0.0
      %675 = vmatprep.subr.mxu0 0.0
      %676 = vmatpush1.msra.mxu0 0.0
      %677 = vmatprep.subr.mxu0 0.0
      %678 = vmatpush1.msra.mxu0 0.0
      %679 = vmatprep.subr.mxu0 0.0
      %680 = vmatpush1.msra.mxu0 0.0
      %681 = vmatprep.subr.mxu0 0.0
      %682 = vmatpush1.msra.mxu0 0.0
      %683 = vmatprep.subr.mxu0 0.0
      %684 = vmatpush1.msra.mxu0 0.0
      %685 = vmatprep.subr.mxu0 0.0
      %686 = vmatpush1.msra.mxu0 0.0
      %687 = vmatprep.subr.mxu0 0.0
      %688 = vmatpush1.msra.mxu0 0.0
      %689 = vmatprep.subr.mxu0 0.0
      %690 = vmatpush1.msra.mxu0 0.0
      %691 = vmatprep.subr.mxu0 0.0
      %692 = vmatpush1.msra.mxu0 0.0
      %693 = vmatprep.subr.mxu0 0.0
      %694 = vmatpush1.msra.mxu0 0.0
      %695 = vmatprep.subr.mxu0 0.0
      %696 = vmatpush1.msra.mxu0 0.0
      %697 = vmatprep.mubr.f32.mxu0 0.0
      %698 = vmatmul.mubr.f32.gmra.mrb[0].mxu0 %v629
      %v699 = vpop.f32.mrb[0].mxu0
      %v700 = vadd.f32 0.0, %v699
      %v701 = vpop.f32.mrb[0].mxu0
      %702 = vdwg.mxu0
      %703 = vrot.lane.b32.xlu0 %v203, 104
      %v704 = vpop.permute.xlu0 %703
      %705 = vrot.lane.b32.xlu0 %v201, 104
      %v706 = vpop.permute.xlu0 %705
      %v707 = vsel %vm204, %v704, 0
      %v709 = vsel %vm204, %v706, 0
      %711 = vmatprep.subr.mxu0 0.0
      %712 = vmatpush1.xpose.msra.mxu0 %v709
      %713 = vmatprep.subr.mxu0 0.0
      %714 = vmatpush1.xpose.msra.mxu0 0.0
      %715 = vmatprep.subr.mxu0 0.0
      %716 = vmatpush1.xpose.msra.mxu0 0.0
      %717 = vmatprep.subr.mxu0 0.0
      %718 = vmatpush1.xpose.msra.mxu0 0.0
      %719 = vmatprep.subr.mxu0 0.0
      %720 = vmatpush1.xpose.msra.mxu0 0.0
      %721 = vmatprep.subr.mxu0 0.0
      %722 = vmatpush1.xpose.msra.mxu0 0.0
      %723 = vmatprep.subr.mxu0 0.0
      %724 = vmatpush1.xpose.msra.mxu0 0.0
      %725 = vmatprep.subr.mxu0 0.0
      %726 = vmatpush1.xpose.msra.mxu0 0.0
      %727 = vmatprep.subr.mxu0 0.0
      %728 = vmatpush1.xpose.msra.mxu0 0.0
      %729 = vmatprep.subr.mxu0 0.0
      %730 = vmatpush1.xpose.msra.mxu0 0.0
      %731 = vmatprep.subr.mxu0 0.0
      %732 = vmatpush1.xpose.msra.mxu0 0.0
      %733 = vmatprep.subr.mxu0 0.0
      %734 = vmatpush1.xpose.msra.mxu0 0.0
      %735 = vmatprep.subr.mxu0 0.0
      %736 = vmatpush1.xpose.msra.mxu0 0.0
      %737 = vmatprep.subr.mxu0 0.0
      %738 = vmatpush1.xpose.msra.mxu0 0.0
      %739 = vmatprep.subr.mxu0 0.0
      %740 = vmatpush1.xpose.msra.mxu0 0.0
      %741 = vmatprep.subr.mxu0 0.0
      %742 = vmatpush1.xpose.msra.mxu0 0.0
      %743 = vmatprep.subr.mxu0 0.0
      %744 = vmatpush1.xpose.msra.mxu0 0.0
      %745 = vmatprep.subr.mxu0 0.0
      %746 = vmatpush1.xpose.msra.mxu0 0.0
      %747 = vmatprep.subr.mxu0 0.0
      %748 = vmatpush1.xpose.msra.mxu0 0.0
      %749 = vmatprep.subr.mxu0 0.0
      %750 = vmatpush1.xpose.msra.mxu0 0.0
      %751 = vmatprep.subr.mxu0 0.0
      %752 = vmatpush1.xpose.msra.mxu0 0.0
      %753 = vmatprep.subr.mxu0 0.0
      %754 = vmatpush1.xpose.msra.mxu0 0.0
      %755 = vmatprep.subr.mxu0 0.0
      %756 = vmatpush1.xpose.msra.mxu0 0.0
      %757 = vmatprep.subr.mxu0 0.0
      %758 = vmatpush1.xpose.msra.mxu0 0.0
      %759 = vmatprep.subr.mxu0 0.0
      %760 = vmatpush1.xpose.msra.mxu0 0.0
      %761 = vmatprep.subr.mxu0 0.0
      %762 = vmatpush1.xpose.msra.mxu0 0.0
      %763 = vmatprep.subr.mxu0 0.0
      %764 = vmatpush1.xpose.msra.mxu0 0.0
      %765 = vmatprep.subr.mxu0 0.0
      %766 = vmatpush1.xpose.msra.mxu0 0.0
      %767 = vmatprep.subr.mxu0 0.0
      %768 = vmatpush1.xpose.msra.mxu0 0.0
      %769 = vmatprep.subr.mxu0 0.0
      %770 = vmatpush1.xpose.msra.mxu0 0.0
      %771 = vmatprep.subr.mxu0 0.0
      %772 = vmatpush1.xpose.msra.mxu0 0.0
      %773 = vmatprep.subr.mxu0 0.0
      %774 = vmatpush1.xpose.msra.mxu0 0.0
      %775 = vmatprep.mubr.f32.mxu0 0.0
      %776 = vmatmul.mubr.f32.gmra.mrb[0].mxu0 %v707
      %v777 = vpop.f32.mrb[0].mxu0
      %v778 = vadd.f32 0.0, %v777
      %v779 = vpop.f32.mrb[0].mxu0
      %780 = vdwg.mxu0
      %v781 = vsel %vm281, %v778, -inf
      %782 = vmax.xlane.f32.xlu0 %v781
      %v783 = vpop.xlane.xlu0 %782
      %v784 = vsub.f32 %v778, %v783
      %v785 = vmul.f32 %v784, 1.442695
      %v786 = vpow.pop %v785
      %v787 = vsel %vm281, %v786, 0.0
      %788 = vadd.xlane.f32.xlu0 %v787
      %v789 = vpop.xlane.xlu0 %788
      %v790 = vrcp.pop %v789
      %v791 = vmul.f32 %v786, %v790
      %792 = vrot.lane.b32.xlu0 %v202, 104
      %v793 = vpop.permute.xlu0 %792
      %v795 = vsel %vm293, %v791, 0
      %v797 = vsel %vm297, %v793, 0
      %799 = vmatprep.subr.mxu0 0.0
      %800 = vmatpush1.msra.mxu0 %v797
      %801 = vmatprep.subr.mxu0 0.0
      %802 = vmatpush1.msra.mxu0 0.0
      %803 = vmatprep.subr.mxu0 0.0
      %804 = vmatpush1.msra.mxu0 0.0
      %805 = vmatprep.subr.mxu0 0.0
      %806 = vmatpush1.msra.mxu0 0.0
      %807 = vmatprep.subr.mxu0 0.0
      %808 = vmatpush1.msra.mxu0 0.0
      %809 = vmatprep.subr.mxu0 0.0
      %810 = vmatpush1.msra.mxu0 0.0
      %811 = vmatprep.subr.mxu0 0.0
      %812 = vmatpush1.msra.mxu0 0.0
      %813 = vmatprep.subr.mxu0 0.0
      %814 = vmatpush1.msra.mxu0 0.0
      %815 = vmatprep.subr.mxu0 0.0
      %816 = vmatpush1.msra.mxu0 0.0
      %817 = vmatprep.subr.mxu0 0.0
      %818 = vmatpush1.msra.mxu0 0.0
      %819 = vmatprep.subr.mxu0 0.0
      %820 = vmatpush1.msra.mxu0 0.0
      %821 = vmatprep.subr.mxu0 0.0
      %822 = vmatpush1.msra.mxu0 0.0
      %823 = vmatprep.subr.mxu0 0.0
      %824 = vmatpush1.msra.mxu0 0.0
      %825 = vmatprep.subr.mxu0 0.0
      %826 = vmatpush1.msra.mxu0 0.0
      %827 = vmatprep.subr.mxu0 0.0
      %828 = vmatpush1.msra.mxu0 0.0
      %829 = vmatprep.subr.mxu0 0.0
      %830 = vmatpush1.msra.mxu0 0.0
      %831 = vmatprep.subr.mxu0 0.0
      %832 = vmatpush1.msra.mxu0 0.0
      %833 = vmatprep.subr.mxu0 0.0
      %834 = vmatpush1.msra.mxu0 0.0
      %835 = vmatprep.subr.mxu0 0.0
      %836 = vmatpush1.msra.mxu0 0.0
      %837 = vmatprep.subr.mxu0 0.0
      %838 = vmatpush1.msra.mxu0 0.0
      %839 = vmatprep.subr.mxu0 0.0
      %840 = vmatpush1.msra.mxu0 0.0
      %841 = vmatprep.subr.mxu0 0.0
      %842 = vmatpush1.msra.mxu0 0.0
      %843 = vmatprep.subr.mxu0 0.0
      %844 = vmatpush1.msra.mxu0 0.0
      %845 = vmatprep.subr.mxu0 0.0
      %846 = vmatpush1.msra.mxu0 0.0
      %847 = vmatprep.subr.mxu0 0.0
      %848 = vmatpush1.msra.mxu0 0.0
      %849 = vmatprep.subr.mxu0 0.0
      %850 = vmatpush1.msra.mxu0 0.0
      %851 = vmatprep.subr.mxu0 0.0
      %852 = vmatpush1.msra.mxu0 0.0
      %853 = vmatprep.subr.mxu0 0.0
      %854 = vmatpush1.msra.mxu0 0.0
      %855 = vmatprep.subr.mxu0 0.0
      %856 = vmatpush1.msra.mxu0 0.0
      %857 = vmatprep.subr.mxu0 0.0
      %858 = vmatpush1.msra.mxu0 0.0
      %859 = vmatprep.subr.mxu0 0.0
      %860 = vmatpush1.msra.mxu0 0.0
      %861 = vmatprep.subr.mxu0 0.0
      %862 = vmatpush1.msra.mxu0 0.0
      %863 = vmatprep.mubr.f32.mxu0 0.0
      %864 = vmatmul.mubr.f32.gmra.mrb[0].mxu0 %v795
      %v865 = vpop.f32.mrb[0].mxu0
      %v866 = vadd.f32 0.0, %v865
      %v867 = vpop.f32.mrb[0].mxu0
      %868 = vdwg.mxu0
      %870 = vrot.lane.b32.xlu0 %v534, 8
      %v871 = vpop.permute.xlu0 %870
      %874 = vrot.lane.b32.xlu0 %v700, 16
      %v875 = vpop.permute.xlu0 %874
      %878 = vrot.lane.b32.xlu0 %v866, 24
      %v879 = vpop.permute.xlu0 %878
      %v881 = vsel %vm204, %v368, %v871
      %vm882 = vcmask 130048
      %v883 = vsel %vm882, %v881, %v875
      %vm884 = vcmask 195584
      %v885 = vsel %vm884, %v883, %v879
      %vm886 = vcmask 258048
      %887 = vst.msk [vmem:[%s199] sm:$0x1f] %vm886, %v885
      %p888 = scmp.lt.s32.totalorder %s14, 1
      %s889 = scalar_select %p888, %s14, 1
      %s890 = smul.addr %s889, 8
      %s891 = scalar_lea.vmem %s3, %s890
      // Predicated region
      $region33: #{multiway_transformer_forward.30} parent=31 // pred_check
        %p892 = pneg %p110
      $region34: #{multiway_transformer_forward.30} parent=31 // pred_check_branch
        %894 = sbr.rel (%p892) target = $region36
      $region35: #{multiway_transformer_forward.30} parent=31 // pred_region
        _
      $region36: #{multiway_transformer_forward.30} parent=31 // pred_fallthru
        _
    $region32: #{multiway_transformer_forward.30} parent=5 // pred_fallthru
      _
    %p895 = scmp.le.s32.totalorder 2, %s9
    // Predicated region
    $region37: #{multiway_transformer_forward.30} parent=5 // pred_check
      %p896 = pneg %p895
    $region38: #{multiway_transformer_forward.30} parent=5 // pred_check_branch
      %898 = sbr.rel (%p896) target = $region40
    $region39: #{multiway_transformer_forward.30} parent=5 // pred_region
      %s899 = ssub.s32 %s9, 2
      // Predicated region
      $region41: #{multiway_transformer_forward.30} parent=39 // pred_check
        %p900 = pneg %p116
      $region42: #{multiway_transformer_forward.30} parent=39 // pred_check_branch
        %902 = sbr.rel (%p900) target = $region44
      $region43: #{multiway_transformer_forward.30} parent=39 // pred_region
        %p903 = scmp.lt.s32.totalorder %s15, 1
        %s904 = scalar_select %p903, %s15, 1
        %s905 = smul.addr %s904, 8
        %s906 = scalar_lea.vmem %s3, %s905
      $region44: #{multiway_transformer_forward.30} parent=39 // pred_fallthru
        _
    $region40: #{multiway_transformer_forward.30} parent=5 // pred_fallthru
      _
  $region6: #{multiway_transformer_forward.30} parent=0 // loop_footer
    %s13 = sadd.s32 1, %s9
  $region7: #{multiway_transformer_forward.30} parent=0 // loop_footer_branch
    %8 = sbr.rel target = $region3
  $region8: #{multiway_transformer_forward.30} parent=0 // loop_exit
    _

// kernel: multiway_transformer_forward.45
$region0: #{multiway_transformer_forward.45}
  #allocation0 [shape = 'u32[]', space=smem, size = 0x4, offset = 0x4, fixed_abs, tag = 'smem constant byte address 0x4 - core index']
  #allocation1 [shape = 'u32[144,128]{1,0:T(1,128)}', space=vmem, size = 0x12000, scoped, tag = 'internal scratch']
  #allocation2 [shape = 'f32[8,128]{1,0:T(8,128)}', space=vmem, size = 0x1000, scoped, tag = 'scratch operand']
  %s0 = inlined_call_operand.vmem [shape: f32[8,128], index: 0, kind: input, shape index: {}]
  %s1 = inlined_call_operand.vmem [shape: f32[128,128], index: 1, kind: input, shape index: {}]
  %s2 = inlined_call_operand.vmem [shape: f32[1,128], index: 2, kind: input, shape index: {}]
  %s3 = inlined_call_operand.vmem [shape: f32[8,128], index: 3, kind: output, shape index: {}]
  %s4 = sld [smem:[#allocation0]]
  $region30: #{multiway_transformer_forward.45} parent=0
    _
  %s6 = ssub.s32 1, %s4
  %s7 = scalar_select 0, %s6, %s4
  // Predicated region
  $region2: #{multiway_transformer_forward.45} parent=0 // pred_check
    _
  $region3: #{multiway_transformer_forward.45} parent=0 // pred_check_branch
    %9 = sbr.rel (0) target = $region5
  $region4: #{multiway_transformer_forward.45} parent=0 // pred_region
    _
  $region5: #{multiway_transformer_forward.45} parent=0 // pred_fallthru
    _
  // Predicated region
  $region6: #{multiway_transformer_forward.45} parent=0 // pred_check
    _
  $region7: #{multiway_transformer_forward.45} parent=0 // pred_check_branch
    %11 = sbr.rel (0) target = $region9
  $region8: #{multiway_transformer_forward.45} parent=0 // pred_region
    _
  $region9: #{multiway_transformer_forward.45} parent=0 // pred_fallthru
    _
  // Predicated region
  $region10: #{multiway_transformer_forward.45} parent=0 // pred_check
    _
  $region11: #{multiway_transformer_forward.45} parent=0 // pred_check_branch
    %13 = sbr.rel (0) target = $region13
  $region12: #{multiway_transformer_forward.45} parent=0 // pred_region
    _
  $region13: #{multiway_transformer_forward.45} parent=0 // pred_fallthru
    _
  %p14 = scmp.eq.s32.totalorder 0, 0
  // Predicated region
  $region14: #{multiway_transformer_forward.45} parent=0 // pred_check
    %p15 = pneg %p14
  $region15: #{multiway_transformer_forward.45} parent=0 // pred_check_branch
    %17 = sbr.rel (%p15) target = $region17
  $region16: #{multiway_transformer_forward.45} parent=0 // pred_region
    %18 = vst [vmem:[#allocation2] sm:$0xff] 0.0
  $region17: #{multiway_transformer_forward.45} parent=0 // pred_fallthru
    _
  %v19 = vld [vmem:[#allocation2] sm:$0xff]
  %v20 = vld [vmem:[%s0] sm:$0xff]
  %v21 = vld [vmem:[%s1] sm:$0xff]
  %v22 = vld [vmem:[%s1 + $0x8] sm:$0xff]
  %v23 = vld [vmem:[%s1 + $0x10] sm:$0xff]
  %v24 = vld [vmem:[%s1 + $0x18] sm:$0xff]
  %v25 = vld [vmem:[%s1 + $0x20] sm:$0xff]
  %v26 = vld [vmem:[%s1 + $0x28] sm:$0xff]
  %v27 = vld [vmem:[%s1 + $0x30] sm:$0xff]
  %v28 = vld [vmem:[%s1 + $0x38] sm:$0xff]
  %v29 = vld [vmem:[%s1 + $0x40] sm:$0xff]
  %v30 = vld [vmem:[%s1 + $0x48] sm:$0xff]
  %v31 = vld [vmem:[%s1 + $0x50] sm:$0xff]
  %v32 = vld [vmem:[%s1 + $0x58] sm:$0xff]
  %v33 = vld [vmem:[%s1 + $0x60] sm:$0xff]
  %v34 = vld [vmem:[%s1 + $0x68] sm:$0xff]
  %v35 = vld [vmem:[%s1 + $0x70] sm:$0xff]
  %v36 = vld [vmem:[%s1 + $0x78] sm:$0xff]
  %37 = vmatprep.subr.mxu0 0.0
  %38 = vmatpush1.msra.mxu0 %v21
  %39 = vmatprep.subr.mxu0 0.0
  %40 = vmatpush1.msra.mxu0 %v22
  %41 = vmatprep.subr.mxu0 0.0
  %42 = vmatpush1.msra.mxu0 %v23
  %43 = vmatprep.subr.mxu0 0.0
  %44 = vmatpush1.msra.mxu0 %v24
  %45 = vmatprep.subr.mxu0 0.0
  %46 = vmatpush1.msra.mxu0 %v25
  %47 = vmatprep.subr.mxu0 0.0
  %48 = vmatpush1.msra.mxu0 %v26
  %49 = vmatprep.subr.mxu0 0.0
  %50 = vmatpush1.msra.mxu0 %v27
  %51 = vmatprep.subr.mxu0 0.0
  %52 = vmatpush1.msra.mxu0 %v28
  %53 = vmatprep.subr.mxu0 0.0
  %54 = vmatpush1.msra.mxu0 %v29
  %55 = vmatprep.subr.mxu0 0.0
  %56 = vmatpush1.msra.mxu0 %v30
  %57 = vmatprep.subr.mxu0 0.0
  %58 = vmatpush1.msra.mxu0 %v31
  %59 = vmatprep.subr.mxu0 0.0
  %60 = vmatpush1.msra.mxu0 %v32
  %61 = vmatprep.subr.mxu0 0.0
  %62 = vmatpush1.msra.mxu0 %v33
  %63 = vmatprep.subr.mxu0 0.0
  %64 = vmatpush1.msra.mxu0 %v34
  %65 = vmatprep.subr.mxu0 0.0
  %66 = vmatpush1.msra.mxu0 %v35
  %67 = vmatprep.subr.mxu0 0.0
  %68 = vmatpush1.msra.mxu0 %v36
  %69 = vmatprep.subr.mxu0 0.0
  %70 = vmatpush1.msra.mxu0 0.0
  %71 = vmatprep.subr.mxu0 0.0
  %72 = vmatpush1.msra.mxu0 0.0
  %73 = vmatprep.subr.mxu0 0.0
  %74 = vmatpush1.msra.mxu0 0.0
  %75 = vmatprep.subr.mxu0 0.0
  %76 = vmatpush1.msra.mxu0 0.0
  %77 = vmatprep.subr.mxu0 0.0
  %78 = vmatpush1.msra.mxu0 0.0
  %79 = vmatprep.subr.mxu0 0.0
  %80 = vmatpush1.msra.mxu0 0.0
  %81 = vmatprep.subr.mxu0 0.0
  %82 = vmatpush1.msra.mxu0 0.0
  %83 = vmatprep.subr.mxu0 0.0
  %84 = vmatpush1.msra.mxu0 0.0
  %85 = vmatprep.subr.mxu0 0.0
  %86 = vmatpush1.msra.mxu0 0.0
  %87 = vmatprep.subr.mxu0 0.0
  %88 = vmatpush1.msra.mxu0 0.0
  %89 = vmatprep.subr.mxu0 0.0
  %90 = vmatpush1.msra.mxu0 0.0
  %91 = vmatprep.subr.mxu0 0.0
  %92 = vmatpush1.msra.mxu0 0.0
  %93 = vmatprep.subr.mxu0 0.0
  %94 = vmatpush1.msra.mxu0 0.0
  %95 = vmatprep.subr.mxu0 0.0
  %96 = vmatpush1.msra.mxu0 0.0
  %97 = vmatprep.subr.mxu0 0.0
  %98 = vmatpush1.msra.mxu0 0.0
  %99 = vmatprep.subr.mxu0 0.0
  %100 = vmatpush1.msra.mxu0 0.0
  %101 = vmatprep.mubr.f32.mxu0 0.0
  %102 = vmatmul.mubr.f32.gmra.mrb[0].mxu0 %v20
  %v103 = vpop.f32.mrb[0].mxu0
  %v104 = vadd.f32 0.0, %v103
  %v105 = vpop.f32.mrb[0].mxu0
  %106 = vdwg.mxu0
  %v107 = vadd.f32 %v19, %v104
  %108 = vst [vmem:[#allocation2] sm:$0xff] %v107
  // Predicated region
  $region18: #{multiway_transformer_forward.45} parent=0 // pred_check
    %p109 = pneg %p14
  $region19: #{multiway_transformer_forward.45} parent=0 // pred_check_branch
    %111 = sbr.rel (%p109) target = $region21
  $region20: #{multiway_transformer_forward.45} parent=0 // pred_region
    %v112 = vld [vmem:[#allocation2] sm:$0xff]
    %v113 = vld [vmem:[%s2] sm:$0x1]
    %v115 = vlaneseq
    %v116 = vshrl.u32 %v115, 7
    %v117 = vsub.s32 0, %v116
    %v118 = vrot.slane %v113, %v117
    %v120 = vadd.f32 %v112, %v118
    %121 = vst [vmem:[%s3] sm:$0xff] %v120
  $region21: #{multiway_transformer_forward.45} parent=0 // pred_fallthru
    _
  // Predicated region
  $region22: #{multiway_transformer_forward.45} parent=0 // pred_check
    _
  $region23: #{multiway_transformer_forward.45} parent=0 // pred_check_branch
    %123 = sbr.rel (0) target = $region25
  $region24: #{multiway_transformer_forward.45} parent=0 // pred_region
    _
  $region25: #{multiway_transformer_forward.45} parent=0 // pred_fallthru
    _
  // Predicated region
  $region26: #{multiway_transformer_forward.45} parent=0 // pred_check
    _
  $region27: #{multiway_transformer_forward.45} parent=0 // pred_check_branch
    %125 = sbr.rel (0) target = $region29
  $region28: #{multiway_transformer_forward.45} parent=0 // pred_region
    _
  $region29: #{multiway_transformer_forward.45} parent=0 // pred_fallthru
    _

// kernel: multiway_transformer_forward.44
$region0: #{multiway_transformer_forward.44}
  #allocation0 [shape = 'u32[]', space=smem, size = 0x4, offset = 0x4, fixed_abs, tag = 'smem constant byte address 0x4 - core index']
  #allocation1 [shape = 'u32[144,128]{1,0:T(1,128)}', space=vmem, size = 0x12000, scoped, tag = 'internal scratch']
  %s0 = inlined_call_operand.vmem [shape: f32[8,32], index: 0, kind: input, shape index: {}]
  %s1 = inlined_call_operand.vmem [shape: f32[1,32], index: 1, kind: input, shape index: {}]
  %s2 = inlined_call_operand.vmem [shape: f32[1,32], index: 2, kind: input, shape index: {}]
  %s3 = inlined_call_operand.vmem [shape: f32[8,32], index: 3, kind: output, shape index: {}]
  %s4 = sld [smem:[#allocation0]]
  $region22: #{multiway_transformer_forward.44} parent=0
    _
  %s6 = ssub.s32 1, %s4
  %s7 = scalar_select 0, %s6, %s4
  // Predicated region
  $region2: #{multiway_transformer_forward.44} parent=0 // pred_check
    _
  $region3: #{multiway_transformer_forward.44} parent=0 // pred_check_branch
    %9 = sbr.rel (0) target = $region5
  $region4: #{multiway_transformer_forward.44} parent=0 // pred_region
    _
  $region5: #{multiway_transformer_forward.44} parent=0 // pred_fallthru
    _
  // Predicated region
  $region6: #{multiway_transformer_forward.44} parent=0 // pred_check
    _
  $region7: #{multiway_transformer_forward.44} parent=0 // pred_check_branch
    %11 = sbr.rel (0) target = $region9
  $region8: #{multiway_transformer_forward.44} parent=0 // pred_region
    _
  $region9: #{multiway_transformer_forward.44} parent=0 // pred_fallthru
    _
  // Predicated region
  $region10: #{multiway_transformer_forward.44} parent=0 // pred_check
    _
  $region11: #{multiway_transformer_forward.44} parent=0 // pred_check_branch
    %13 = sbr.rel (0) target = $region13
  $region12: #{multiway_transformer_forward.44} parent=0 // pred_region
    _
  $region13: #{multiway_transformer_forward.44} parent=0 // pred_fallthru
    _
  %v14 = vld [vmem:[%s0] sm:$0xff]
  %vm15 = vcmask 261120
  %v16 = vsel %vm15, %v14, 0.0
  %17 = vadd.xlane.f32.xlu0 %v16
  %v18 = vpop.xlane.xlu0 %17
  %v19 = vrcp.pop 32.0
  %v20 = vmul.f32 %v18, %v19
  %v21 = vsub.f32 %v14, %v20
  %v22 = vmul.f32 %v21, %v21
  %v23 = vsel %vm15, %v22, 0.0
  %24 = vadd.xlane.f32.xlu0 %v23
  %v25 = vpop.xlane.xlu0 %24
  %v26 = vmul.f32 %v25, %v19
  %v27 = vadd.f32 %v26, 1e-05
  %v28 = vrsqrt.pop %v27
  %v29 = vmul.f32 %v21, %v28
  %v30 = vld [vmem:[%s1] sm:$0x1]
  %v32 = vlaneseq
  %v33 = vshrl.u32 %v32, 7
  %v34 = vsub.s32 0, %v33
  %v35 = vrot.slane %v30, %v34
  %v37 = vmul.f32 %v29, %v35
  %v38 = vld [vmem:[%s2] sm:$0x1]
  %v40 = vlaneseq
  %v41 = vshrl.u32 %v40, 7
  %v42 = vsub.s32 0, %v41
  %v43 = vrot.slane %v38, %v42
  %v45 = vadd.f32 %v37, %v43
  %46 = vst.msk [vmem:[%s3] sm:$0xff] %vm15, %v45
  // Predicated region
  $region14: #{multiway_transformer_forward.44} parent=0 // pred_check
    _
  $region15: #{multiway_transformer_forward.44} parent=0 // pred_check_branch
    %48 = sbr.rel (0) target = $region17
  $region16: #{multiway_transformer_forward.44} parent=0 // pred_region
    _
  $region17: #{multiway_transformer_forward.44} parent=0 // pred_fallthru
    _
  // Predicated region
  $region18: #{multiway_transformer_forward.44} parent=0 // pred_check
    _
  $region19: #{multiway_transformer_forward.44} parent=0 // pred_check_branch
    %50 = sbr.rel (0) target = $region21
  $region20: #{multiway_transformer_forward.44} parent=0 // pred_region
    _
  $region21: #{multiway_transformer_forward.44} parent=0 // pred_fallthru
    _

</llo_original>
